<compile_context>
chip_gen: v5e
topology: v5e:2x2
jax: 0.10.0
libtpu: 0.0.40
codegen_flags: <defaults>
</compile_context>

<pallas_src>
import functools

import jax
import jax.numpy as jnp
from jax.experimental import pallas as pl
from jax.experimental.pallas import tpu as pltpu

CPAD = 128                                             # lane-dense channel pad
OFFS = [(dy, dx) for dy in (-1, 0, 1) for dx in (-1, 0, 1)]   # 3x3 tap offsets
BN_EPS = 1e-5


# ----------------------------------------------------------------------------
# In-kernel helpers
# ----------------------------------------------------------------------------
def _bn_relu(x, g, b):
    """Training-mode BatchNorm (single-pass batch stats over rows) + ReLU.
    x: (M, C) f32, g/b: (1, C) f32."""
    mean = jnp.mean(x, axis=0, keepdims=True)
    var = jnp.mean(x * x, axis=0, keepdims=True) - mean * mean
    inv = jax.lax.rsqrt(var + BN_EPS)
    return jnp.maximum((x - mean) * inv * g + b, 0.0)


def _scratch_shapes(n, h, w):
    """(padded-activation buffer, K-folded im2col buffer) for a 3x3/s1 conv."""
    if w % 8 == 0:
        return [pltpu.VMEM((n, h + 2, w + 2, CPAD), jnp.float32),
                pltpu.VMEM((n, h, w, 9 * CPAD), jnp.bfloat16)]
    # tiny spatial (w < 8): keep second-minor dims 8-aligned by flattening h*w
    return [pltpu.VMEM((n, h * w, CPAD), jnp.float32),
            pltpu.VMEM((n, h * w, 9 * CPAD), jnp.bfloat16)]


def _init_scratch(buf_ref, im_ref, w):
    # Only the regions that must stay zero (conv zero-padding) are initialized.
    if w % 8 == 0:
        buf_ref[...] = jnp.zeros(buf_ref.shape, buf_ref.dtype)
    else:
        im_ref[...] = jnp.zeros(im_ref.shape, im_ref.dtype)


def _im2col(a, buf_ref, im_ref, n, h, w):
    """Scatter the 9 zero-padded 3x3 stride-1 taps of `a` (M, CPAD) into the
    K-folded im2col scratch (..., 9*CPAD) as bf16."""
    if w % 8 == 0:
        # Write activation into the interior of the zero-padded buffer, then
        # copy 9 shifted full windows into 128-aligned lane chunks of im_ref.
        buf_ref[:, 1:h + 1, 1:w + 1, :] = a.reshape(n, h, w, CPAD)
        for k, (dy, dx) in enumerate(OFFS):
            ky, kx = dy + 1, dx + 1
            im_ref[:, :, :, k * CPAD:(k + 1) * CPAD] = (
                buf_ref[:, ky:ky + h, kx:kx + w, :].astype(jnp.bfloat16))
    else:
        # Per-output-row strips; tap borders keep im_ref's zero init.
        buf_ref[...] = a.reshape(n, h * w, CPAD)
        for k, (dy, dx) in enumerate(OFFS):
            oy0, sy = max(0, -dy), h - abs(dy)
            ox0, ix0, sx = max(0, -dx), max(0, dx), w - abs(dx)
            for oy in range(oy0, oy0 + sy):
                d0 = oy * w + ox0
                s0 = (oy + dy) * w + ix0
                im_ref[:, d0:d0 + sx, k * CPAD:(k + 1) * CPAD] = (
                    buf_ref[:, s0:s0 + sx, :].astype(jnp.bfloat16))


def _conv_from_im(im_ref, w_ref, b_ref, m):
    """Single K-folded MXU matmul: (M, 9*CPAD)bf16 @ (9*CPAD, CPAD)bf16 + b."""
    patches = im_ref[...].reshape(m, 9 * CPAD)
    return jnp.dot(patches, w_ref[...],
                   preferred_element_type=jnp.float32) + b_ref[...]


# ----------------------------------------------------------------------------
# Pallas kernels
# ----------------------------------------------------------------------------
def _stem_kernel(x_ref, w_ref, b_ref, o_ref, buf_ref, im_ref, *, n, h, w):
    """3x3 stride-1 conv (stem).  x: (M, CPAD) channel-padded."""
    _init_scratch(buf_ref, im_ref, w)
    _im2col(x_ref[...], buf_ref, im_ref, n, h, w)
    o_ref[...] = _conv_from_im(im_ref, w_ref, b_ref, n * h * w)


def _block_s1_kernel(x_ref, g1_ref, be1_ref, w1_ref, c1_ref,
                     g2_ref, be2_ref, w2_ref, c2_ref,
                     o_ref, buf_ref, im_ref, *, n, h, w):
    """Fully fused stride-1 residual block:
       out = conv2(relu(bn2(conv1(relu(bn1(x)))))) + x."""
    m = n * h * w
    _init_scratch(buf_ref, im_ref, w)
    x = x_ref[...]
    a1 = _bn_relu(x, g1_ref[...], be1_ref[...])
    _im2col(a1, buf_ref, im_ref, n, h, w)
    h1 = _conv_from_im(im_ref, w1_ref, c1_ref, m)
    a2 = _bn_relu(h1, g2_ref[...], be2_ref[...])
    _im2col(a2, buf_ref, im_ref, n, h, w)
    h2 = _conv_from_im(im_ref, w2_ref, c2_ref, m)
    o_ref[...] = h2 + x


def _bn_conv_kernel(x_ref, g_ref, be_ref, w_ref, c_ref,
                    o_ref, buf_ref, im_ref, *, n, h, w):
    """Fused bn + relu + 3x3 conv (stride-1, full resolution)."""
    _init_scratch(buf_ref, im_ref, w)
    a = _bn_relu(x_ref[...], g_ref[...], be_ref[...])
    _im2col(a, buf_ref, im_ref, n, h, w)
    o_ref[...] = _conv_from_im(im_ref, w_ref, c_ref, n * h * w)


def _block_tail_kernel(h_ref, g2_ref, be2_ref, w2_ref, c2_ref,
                       xp_ref, wid_ref, cid_ref,
                       o_ref, buf_ref, im_ref, *, n, h, w):
    """Fused bn2 + relu + conv2 + (1x1 shortcut conv on pooled input) + add."""
    m = n * h * w
    _init_scratch(buf_ref, im_ref, w)
    a2 = _bn_relu(h_ref[...], g2_ref[...], be2_ref[...])
    _im2col(a2, buf_ref, im_ref, n, h, w)
    h2 = _conv_from_im(im_ref, w2_ref, c2_ref, m)
    sc = jnp.dot(xp_ref[...].astype(jnp.bfloat16), wid_ref[...],
                 preferred_element_type=jnp.float32) + cid_ref[...]
    o_ref[...] = h2 + sc


def _head_kernel(x_ref, w_ref, b_ref, o_ref):
    """Global average pool over spatial + Linear.
    x: (N, HW, CPAD), w: (CPAD, num_class), b: (1, num_class)."""
    pooled = jnp.mean(x_ref[...], axis=1)            # (N, CPAD)
    o_ref[...] = jnp.dot(pooled, w_ref[...],
                         preferred_element_type=jnp.float32) + b_ref[...]


# ----------------------------------------------------------------------------
# pallas_call helper: single full-array block per operand, all in VMEM
# ----------------------------------------------------------------------------
def _pcall(kernel, out_shape, scratch_shapes, *args):
    in_specs = [
        pl.BlockSpec(a.shape, functools.partial(lambda nd, i: (0,) * nd, a.ndim))
        for a in args
    ]
    out_spec = pl.BlockSpec(
        out_shape.shape,
        functools.partial(lambda nd, i: (0,) * nd, len(out_shape.shape)))
    return pl.pallas_call(
        kernel,
        out_shape=out_shape,
        grid=(1,),
        in_specs=in_specs,
        out_specs=out_spec,
        scratch_shapes=list(scratch_shapes),
    )(*args)


# ----------------------------------------------------------------------------
# Layer wrappers (glue = reshapes / cheap strided slices only)
# ----------------------------------------------------------------------------
def stem(x2, p, n, h, w):
    m = n * h * w
    return _pcall(functools.partial(_stem_kernel, n=n, h=h, w=w),
                  jax.ShapeDtypeStruct((m, CPAD), jnp.float32),
                  _scratch_shapes(n, h, w),
                  x2, p['w'], p['b'])


def res_block_s1(x2, p, n, h, w):
    m = n * h * w
    return _pcall(functools.partial(_block_s1_kernel, n=n, h=h, w=w),
                  jax.ShapeDtypeStruct((m, CPAD), jnp.float32),
                  _scratch_shapes(n, h, w),
                  x2, p['g1'], p['be1'], p['w1'], p['c1'],
                  p['g2'], p['be2'], p['w2'], p['c2'])


def res_block_s2(x2, p, n, h, w):
    # TODO(synk): stride-2 transition blocks use two pallas_calls; the stride-2
    # tap selection and 2x2 avg-pool are cheap XLA strided slices in glue
    # (strided in-kernel slicing avoided for robustness).
    ho, wo = h // 2, w // 2
    m, mo = n * h * w, n * ho * wo
    # bn1 + relu + conv1 fused, computed at stride 1 (full resolution).
    h_full = _pcall(functools.partial(_bn_conv_kernel, n=n, h=h, w=w),
                    jax.ShapeDtypeStruct((m, CPAD), jnp.float32),
                    _scratch_shapes(n, h, w),
                    x2, p['g1'], p['be1'], p['w1'], p['c1'])
    # Keep every other output position (== stride-2 conv), and 2x2/s2
    # average-pool the block input for the shortcut path.
    h_down = h_full.reshape(n, h, w, CPAD)[:, ::2, ::2, :].reshape(mo, CPAD)
    xpool = x2.reshape(n, ho, 2, wo, 2, CPAD).mean(axis=(2, 4)).reshape(mo, CPAD)
    out = _pcall(functools.partial(_block_tail_kernel, n=n, h=ho, w=wo),
                 jax.ShapeDtypeStruct((mo, CPAD), jnp.float32),
                 _scratch_shapes(n, ho, wo),
                 h_down, p['g2'], p['be2'], p['w2'], p['c2'],
                 xpool, p['wid'], p['cid'])
    return out, ho, wo


def head(x2, p, n, h, w):
    # TODO(synk): the reference PyTorch NetworkHead applies nn.Linear directly
    # to the (N, C, 1, 1) avg_pool2d output (which would error); we implement
    # the intended global-average-pool -> flatten -> Linear semantics.
    num_class = p['w'].shape[-1]
    x3 = x2.reshape(n, h * w, CPAD)
    return _pcall(_head_kernel,
                  jax.ShapeDtypeStruct((n, num_class), jnp.float32),
                  [],
                  x3, p['w'], p['b'])


# ----------------------------------------------------------------------------
# Deterministic parameter construction (mirrors the PyTorch __init__ shapes)
# ----------------------------------------------------------------------------
def build_resnet_params(key, num_layer=20, num_class=10):
    arch = {'cout': [16, 32, 64], 'stride': [1, 2, 2]}
    nblocks = {20: 3, 32: 5, 44: 7, 56: 9}[num_layer]

    def nxt():
        nonlocal key
        key, sub = jax.random.split(key)
        return sub

    params = {'stem_w': jax.random.normal(nxt(), (3, 3, 3, 16)) * 0.1,
              'stem_b': jax.random.normal(nxt(), (16,)) * 0.1}
    blocks = []
    cin = 16
    for cout, stride0 in zip(arch['cout'], arch['stride']):
        for block in range(nblocks):
            stride = stride0 if block == 0 else 1
            p = {
                'stride': stride,
                'bn1_g': 1.0 + 0.1 * jax.random.normal(nxt(), (cin,)),
                'bn1_b': 0.1 * jax.random.normal(nxt(), (cin,)),
                'w1': jax.random.normal(nxt(), (3, 3, cin, cout)) * 0.1,
                'b1': jax.random.normal(nxt(), (cout,)) * 0.1,
                'bn2_g': 1.0 + 0.1 * jax.random.normal(nxt(), (cout,)),
                'bn2_b': 0.1 * jax.random.normal(nxt(), (cout,)),
                'w2': jax.random.normal(nxt(), (3, 3, cout, cout)) * 0.1,
                'b2': jax.random.normal(nxt(), (cout,)) * 0.1,
            }
            if stride != 1:
                p['wid'] = jax.random.normal(nxt(), (cin, cout)) * 0.1
                p['bid'] = jax.random.normal(nxt(), (cout,)) * 0.1
            blocks.append(p)
            cin = cout
    params['blocks'] = blocks
    params['fc_w'] = jax.random.normal(nxt(), (cin, num_class)) * 0.1
    params['fc_b'] = jax.random.normal(nxt(), (num_class,)) * 0.1
    return params


# ---- kernel-ready parameter prep: pad channels to 128, fold K, cast to bf16 --
def _pad_row(v):
    return jnp.zeros((1, CPAD), jnp.float32).at[0, :v.shape[0]].set(v)


def _fold_conv_w(w):
    """(3,3,cin,cout) -> K-folded, channel-padded (9*CPAD, CPAD) bf16."""
    kh, kw, cin, cout = w.shape
    wp = jnp.zeros((kh * kw, CPAD, CPAD), jnp.float32)
    wp = wp.at[:, :cin, :cout].set(w.reshape(kh * kw, cin, cout))
    return wp.reshape(kh * kw * CPAD, CPAD).astype(jnp.bfloat16)


def _pad_mat(w):
    cin, cout = w.shape
    return (jnp.zeros((CPAD, CPAD), jnp.float32)
            .at[:cin, :cout].set(w).astype(jnp.bfloat16))


def prepare_params(params):
    prepped = {'stem': {'w': _fold_conv_w(params['stem_w']),
                        'b': _pad_row(params['stem_b'])}}
    blocks = []
    for p in params['blocks']:
        q = {'stride': p['stride'],
             'g1': _pad_row(p['bn1_g']), 'be1': _pad_row(p['bn1_b']),
             'w1': _fold_conv_w(p['w1']), 'c1': _pad_row(p['b1']),
             'g2': _pad_row(p['bn2_g']), 'be2': _pad_row(p['bn2_b']),
             'w2': _fold_conv_w(p['w2']), 'c2': _pad_row(p['b2'])}
        if p['stride'] != 1:
            q['wid'] = _pad_mat(p['wid'])
            q['cid'] = _pad_row(p['bid'])
        blocks.append(q)
    prepped['blocks'] = blocks
    cin, num_class = params['fc_w'].shape
    prepped['head'] = {
        'w': jnp.zeros((CPAD, num_class), jnp.float32)
                .at[:cin, :].set(params['fc_w']),
        'b': params['fc_b'].reshape(1, num_class).astype(jnp.float32)}
    return prepped


# ----------------------------------------------------------------------------
# Forward pass
# ----------------------------------------------------------------------------
def resnet_forward(prepped, x_nchw):
    n, cin, h, w = x_nchw.shape
    # NCHW (PyTorch) -> NHWC -> lane-dense (M, 128) with zero channel padding.
    xnhwc = jnp.transpose(x_nchw, (0, 2, 3, 1)).astype(jnp.float32)
    x2 = (jnp.zeros((n, h, w, CPAD), jnp.float32)
          .at[..., :cin].set(xnhwc).reshape(n * h * w, CPAD))

    x2 = stem(x2, prepped['stem'], n, h, w)
    for q in prepped['blocks']:
        if q['stride'] == 1:
            x2 = res_block_s1(x2, q, n, h, w)
        else:
            x2, h, w = res_block_s2(x2, q, n, h, w)
    return head(x2, prepped['head'], n, h, w)      # (N, num_class)


if __name__ == "__main__":
    key = jax.random.PRNGKey(0)
    pkey, xkey = jax.random.split(key)

    num_layer, num_class = 20, 10
    params = build_resnet_params(pkey, num_layer=num_layer, num_class=num_class)
    prepped = prepare_params(params)

    # Small input consistent with the module: NCHW, 3 input channels.
    x = jax.random.normal(xkey, (2, 3, 16, 16), dtype=jnp.float32)

    out = resnet_forward(prepped, x)
    out = jax.block_until_ready(out)
    assert out.shape == (2, num_class), out.shape
    assert jnp.all(jnp.isfinite(out))
    print("KERNEL_OK")
</pallas_src>

<mosaic_0001>
module attributes {stable_mosaic.version = 11 : i64} {
  func.func @_stem_kernel(%arg0: i32, %arg1: memref<512x128xf32, #tpu.memory_space<vmem>>, %arg2: memref<1152x128xbf16, #tpu.memory_space<vmem>>, %arg3: memref<1x128xf32, #tpu.memory_space<vmem>>, %arg4: memref<512x128xf32, #tpu.memory_space<vmem>>, %arg5: memref<2x18x18x128xf32, #tpu.memory_space<vmem>>, %arg6: memref<2x16x16x1152xbf16, #tpu.memory_space<vmem>>) attributes {dimension_semantics = [#tpu.dimension_semantics<arbitrary>], iteration_bounds = array<i64: 1>, scalar_prefetch = 0 : i64, scratch_operands = 2 : i64, tpu.core_type = #tpu.core_type<tc>, window_params = [{pipeline_mode = #tpu.pipeline_mode<synchronous>, transform_indices = @transform_0, window_bounds = array<i64: 512, 128>}, {pipeline_mode = #tpu.pipeline_mode<synchronous>, transform_indices = @transform_1, window_bounds = array<i64: 1152, 128>}, {pipeline_mode = #tpu.pipeline_mode<synchronous>, transform_indices = @transform_2, window_bounds = array<i64: 1, 128>}, {pipeline_mode = #tpu.pipeline_mode<synchronous>, transform_indices = @transform_3, window_bounds = array<i64: 512, 128>}]} {
    %cst = arith.constant 0.000000e+00 : f32
    %0 = vector.broadcast %cst : f32 to vector<2x18x18x128xf32>
    %c0 = arith.constant 0 : index
    %c0_0 = arith.constant 0 : index
    %c0_1 = arith.constant 0 : index
    %c0_2 = arith.constant 0 : index
    %1 = vector.load %arg5[%c0, %c0_0, %c0_1, %c0_2] : memref<2x18x18x128xf32, #tpu.memory_space<vmem>>, vector<2x18x18x128xf32>
    tpu.vector_store %arg5[%c0, %c0_0, %c0_1, %c0_2], %0 {strides = array<i32>} : memref<2x18x18x128xf32, #tpu.memory_space<vmem>>, vector<2x18x18x128xf32>,
    %c0_3 = arith.constant 0 : index
    %c0_4 = arith.constant 0 : index
    %2 = vector.load %arg1[%c0_3, %c0_4] : memref<512x128xf32, #tpu.memory_space<vmem>>, vector<512x128xf32>
    %3 = vector.shape_cast %2 : vector<512x128xf32> to vector<2x16x16x128xf32>
    %c0_5 = arith.constant 0 : index
    %c1 = arith.constant 1 : index
    %c1_6 = arith.constant 1 : index
    %c0_7 = arith.constant 0 : index
    %4 = vector.load %arg5[%c0_5, %c1, %c1_6, %c0_7] : memref<2x18x18x128xf32, #tpu.memory_space<vmem>>, vector<2x16x16x128xf32>
    tpu.vector_store %arg5[%c0_5, %c1, %c1_6, %c0_7], %3 {strides = array<i32>} : memref<2x18x18x128xf32, #tpu.memory_space<vmem>>, vector<2x16x16x128xf32>,
    %c0_8 = arith.constant 0 : index
    %c0_9 = arith.constant 0 : index
    %c0_10 = arith.constant 0 : index
    %c0_11 = arith.constant 0 : index
    %5 = vector.load %arg5[%c0_8, %c0_9, %c0_10, %c0_11] : memref<2x18x18x128xf32, #tpu.memory_space<vmem>>, vector<2x16x16x128xf32>
    %6 = arith.truncf %5 : vector<2x16x16x128xf32> to vector<2x16x16x128xbf16>
    %c0_12 = arith.constant 0 : index
    %c0_13 = arith.constant 0 : index
    %c0_14 = arith.constant 0 : index
    %c0_15 = arith.constant 0 : index
    %7 = vector.load %arg6[%c0_12, %c0_13, %c0_14, %c0_15] : memref<2x16x16x1152xbf16, #tpu.memory_space<vmem>>, vector<2x16x16x128xbf16>
    tpu.vector_store %arg6[%c0_12, %c0_13, %c0_14, %c0_15], %6 {strides = array<i32>} : memref<2x16x16x1152xbf16, #tpu.memory_space<vmem>>, vector<2x16x16x128xbf16>,
    %c0_16 = arith.constant 0 : index
    %c0_17 = arith.constant 0 : index
    %c1_18 = arith.constant 1 : index
    %c0_19 = arith.constant 0 : index
    %8 = vector.load %arg5[%c0_16, %c0_17, %c1_18, %c0_19] : memref<2x18x18x128xf32, #tpu.memory_space<vmem>>, vector<2x16x16x128xf32>
    %9 = arith.truncf %8 : vector<2x16x16x128xf32> to vector<2x16x16x128xbf16>
    %c0_20 = arith.constant 0 : index
    %c0_21 = arith.constant 0 : index
    %c0_22 = arith.constant 0 : index
    %c128 = arith.constant 128 : index
    %10 = vector.load %arg6[%c0_20, %c0_21, %c0_22, %c128] : memref<2x16x16x1152xbf16, #tpu.memory_space<vmem>>, vector<2x16x16x128xbf16>
    tpu.vector_store %arg6[%c0_20, %c0_21, %c0_22, %c128], %9 {strides = array<i32>} : memref<2x16x16x1152xbf16, #tpu.memory_space<vmem>>, vector<2x16x16x128xbf16>,
    %c0_23 = arith.constant 0 : index
    %c0_24 = arith.constant 0 : index
    %c2 = arith.constant 2 : index
    %c0_25 = arith.constant 0 : index
    %11 = vector.load %arg5[%c0_23, %c0_24, %c2, %c0_25] : memref<2x18x18x128xf32, #tpu.memory_space<vmem>>, vector<2x16x16x128xf32>
    %12 = arith.truncf %11 : vector<2x16x16x128xf32> to vector<2x16x16x128xbf16>
    %c0_26 = arith.constant 0 : index
    %c0_27 = arith.constant 0 : index
    %c0_28 = arith.constant 0 : index
    %c256 = arith.constant 256 : index
    %13 = vector.load %arg6[%c0_26, %c0_27, %c0_28, %c256] : memref<2x16x16x1152xbf16, #tpu.memory_space<vmem>>, vector<2x16x16x128xbf16>
    tpu.vector_store %arg6[%c0_26, %c0_27, %c0_28, %c256], %12 {strides = array<i32>} : memref<2x16x16x1152xbf16, #tpu.memory_space<vmem>>, vector<2x16x16x128xbf16>,
    %c0_29 = arith.constant 0 : index
    %c1_30 = arith.constant 1 : index
    %c0_31 = arith.constant 0 : index
    %c0_32 = arith.constant 0 : index
    %14 = vector.load %arg5[%c0_29, %c1_30, %c0_31, %c0_32] : memref<2x18x18x128xf32, #tpu.memory_space<vmem>>, vector<2x16x16x128xf32>
    %15 = arith.truncf %14 : vector<2x16x16x128xf32> to vector<2x16x16x128xbf16>
    %c0_33 = arith.constant 0 : index
    %c0_34 = arith.constant 0 : index
    %c0_35 = arith.constant 0 : index
    %c384 = arith.constant 384 : index
    %16 = vector.load %arg6[%c0_33, %c0_34, %c0_35, %c384] : memref<2x16x16x1152xbf16, #tpu.memory_space<vmem>>, vector<2x16x16x128xbf16>
    tpu.vector_store %arg6[%c0_33, %c0_34, %c0_35, %c384], %15 {strides = array<i32>} : memref<2x16x16x1152xbf16, #tpu.memory_space<vmem>>, vector<2x16x16x128xbf16>,
    %c0_36 = arith.constant 0 : index
    %c1_37 = arith.constant 1 : index
    %c1_38 = arith.constant 1 : index
    %c0_39 = arith.constant 0 : index
    %17 = vector.load %arg5[%c0_36, %c1_37, %c1_38, %c0_39] : memref<2x18x18x128xf32, #tpu.memory_space<vmem>>, vector<2x16x16x128xf32>
    %18 = arith.truncf %17 : vector<2x16x16x128xf32> to vector<2x16x16x128xbf16>
    %c0_40 = arith.constant 0 : index
    %c0_41 = arith.constant 0 : index
    %c0_42 = arith.constant 0 : index
    %c512 = arith.constant 512 : index
    %19 = vector.load %arg6[%c0_40, %c0_41, %c0_42, %c512] : memref<2x16x16x1152xbf16, #tpu.memory_space<vmem>>, vector<2x16x16x128xbf16>
    tpu.vector_store %arg6[%c0_40, %c0_41, %c0_42, %c512], %18 {strides = array<i32>} : memref<2x16x16x1152xbf16, #tpu.memory_space<vmem>>, vector<2x16x16x128xbf16>,
    %c0_43 = arith.constant 0 : index
    %c1_44 = arith.constant 1 : index
    %c2_45 = arith.constant 2 : index
    %c0_46 = arith.constant 0 : index
    %20 = vector.load %arg5[%c0_43, %c1_44, %c2_45, %c0_46] : memref<2x18x18x128xf32, #tpu.memory_space<vmem>>, vector<2x16x16x128xf32>
    %21 = arith.truncf %20 : vector<2x16x16x128xf32> to vector<2x16x16x128xbf16>
    %c0_47 = arith.constant 0 : index
    %c0_48 = arith.constant 0 : index
    %c0_49 = arith.constant 0 : index
    %c640 = arith.constant 640 : index
    %22 = vector.load %arg6[%c0_47, %c0_48, %c0_49, %c640] : memref<2x16x16x1152xbf16, #tpu.memory_space<vmem>>, vector<2x16x16x128xbf16>
    tpu.vector_store %arg6[%c0_47, %c0_48, %c0_49, %c640], %21 {strides = array<i32>} : memref<2x16x16x1152xbf16, #tpu.memory_space<vmem>>, vector<2x16x16x128xbf16>,
    %c0_50 = arith.constant 0 : index
    %c2_51 = arith.constant 2 : index
    %c0_52 = arith.constant 0 : index
    %c0_53 = arith.constant 0 : index
    %23 = vector.load %arg5[%c0_50, %c2_51, %c0_52, %c0_53] : memref<2x18x18x128xf32, #tpu.memory_space<vmem>>, vector<2x16x16x128xf32>
    %24 = arith.truncf %23 : vector<2x16x16x128xf32> to vector<2x16x16x128xbf16>
    %c0_54 = arith.constant 0 : index
    %c0_55 = arith.constant 0 : index
    %c0_56 = arith.constant 0 : index
    %c768 = arith.constant 768 : index
    %25 = vector.load %arg6[%c0_54, %c0_55, %c0_56, %c768] : memref<2x16x16x1152xbf16, #tpu.memory_space<vmem>>, vector<2x16x16x128xbf16>
    tpu.vector_store %arg6[%c0_54, %c0_55, %c0_56, %c768], %24 {strides = array<i32>} : memref<2x16x16x1152xbf16, #tpu.memory_space<vmem>>, vector<2x16x16x128xbf16>,
    %c0_57 = arith.constant 0 : index
    %c2_58 = arith.constant 2 : index
    %c1_59 = arith.constant 1 : index
    %c0_60 = arith.constant 0 : index
    %26 = vector.load %arg5[%c0_57, %c2_58, %c1_59, %c0_60] : memref<2x18x18x128xf32, #tpu.memory_space<vmem>>, vector<2x16x16x128xf32>
    %27 = arith.truncf %26 : vector<2x16x16x128xf32> to vector<2x16x16x128xbf16>
    %c0_61 = arith.constant 0 : index
    %c0_62 = arith.constant 0 : index
    %c0_63 = arith.constant 0 : index
    %c896 = arith.constant 896 : index
    %28 = vector.load %arg6[%c0_61, %c0_62, %c0_63, %c896] : memref<2x16x16x1152xbf16, #tpu.memory_space<vmem>>, vector<2x16x16x128xbf16>
    tpu.vector_store %arg6[%c0_61, %c0_62, %c0_63, %c896], %27 {strides = array<i32>} : memref<2x16x16x1152xbf16, #tpu.memory_space<vmem>>, vector<2x16x16x128xbf16>,
    %c0_64 = arith.constant 0 : index
    %c2_65 = arith.constant 2 : index
    %c2_66 = arith.constant 2 : index
    %c0_67 = arith.constant 0 : index
    %29 = vector.load %arg5[%c0_64, %c2_65, %c2_66, %c0_67] : memref<2x18x18x128xf32, #tpu.memory_space<vmem>>, vector<2x16x16x128xf32>
    %30 = arith.truncf %29 : vector<2x16x16x128xf32> to vector<2x16x16x128xbf16>
    %c0_68 = arith.constant 0 : index
    %c0_69 = arith.constant 0 : index
    %c0_70 = arith.constant 0 : index
    %c1024 = arith.constant 1024 : index
    %31 = vector.load %arg6[%c0_68, %c0_69, %c0_70, %c1024] : memref<2x16x16x1152xbf16, #tpu.memory_space<vmem>>, vector<2x16x16x128xbf16>
    tpu.vector_store %arg6[%c0_68, %c0_69, %c0_70, %c1024], %30 {strides = array<i32>} : memref<2x16x16x1152xbf16, #tpu.memory_space<vmem>>, vector<2x16x16x128xbf16>,
    %c0_71 = arith.constant 0 : index
    %c0_72 = arith.constant 0 : index
    %c0_73 = arith.constant 0 : index
    %c0_74 = arith.constant 0 : index
    %32 = vector.load %arg6[%c0_71, %c0_72, %c0_73, %c0_74] : memref<2x16x16x1152xbf16, #tpu.memory_space<vmem>>, vector<2x16x16x1152xbf16>
    %33 = vector.shape_cast %32 : vector<2x16x16x1152xbf16> to vector<512x1152xbf16>
    %c0_75 = arith.constant 0 : index
    %c0_76 = arith.constant 0 : index
    %34 = vector.load %arg2[%c0_75, %c0_76] : memref<1152x128xbf16, #tpu.memory_space<vmem>>, vector<1152x128xbf16>
    %cst_77 = arith.constant dense<0.000000e+00> : vector<512x128xf32>
    %35 = tpu.matmul %33, %34, %cst_77 {dimension_numbers = #tpu.dot_dimension_numbers<[1], [0], [0], [1], [0, 0, 1, 1], [], []>} : vector<512x1152xbf16>, vector<1152x128xbf16>, vector<512x128xf32> -> vector<512x128xf32>
    %c0_78 = arith.constant 0 : index
    %c0_79 = arith.constant 0 : index
    %36 = vector.load %arg3[%c0_78, %c0_79] : memref<1x128xf32, #tpu.memory_space<vmem>>, vector<1x128xf32>
    %37 = vector.broadcast %36 : vector<1x128xf32> to vector<512x128xf32>
    %38 = arith.addf %35, %37 : vector<512x128xf32>
    %c0_80 = arith.constant 0 : index
    %c0_81 = arith.constant 0 : index
    %39 = vector.load %arg4[%c0_80, %c0_81] : memref<512x128xf32, #tpu.memory_space<vmem>>, vector<512x128xf32>
    tpu.vector_store %arg4[%c0_80, %c0_81], %38 {strides = array<i32>} : memref<512x128xf32, #tpu.memory_space<vmem>>, vector<512x128xf32>,
    return
  }
  func.func @transform_0(%arg0: i32) -> (i32, i32) {
    %c0_i32 = arith.constant 0 : i32
    %c0_i32_0 = arith.constant 0 : i32
    %c0_i32_1 = arith.constant 0 : i32
    return %c0_i32, %c0_i32_0 : i32, i32
  }
  func.func @transform_1(%arg0: i32) -> (i32, i32) {
    %c0_i32 = arith.constant 0 : i32
    %c0_i32_0 = arith.constant 0 : i32
    %c0_i32_1 = arith.constant 0 : i32
    return %c0_i32, %c0_i32_0 : i32, i32
  }
  func.func @transform_2(%arg0: i32) -> (i32, i32) {
    %c0_i32 = arith.constant 0 : i32
    %c0_i32_0 = arith.constant 0 : i32
    %c0_i32_1 = arith.constant 0 : i32
    return %c0_i32, %c0_i32_0 : i32, i32
  }
  func.func @transform_3(%arg0: i32) -> (i32, i32) {
    %c0_i32 = arith.constant 0 : i32
    %c0_i32_0 = arith.constant 0 : i32
    %c0_i32_1 = arith.constant 0 : i32
    return %c0_i32, %c0_i32_0 : i32, i32
  }
}

</mosaic_0001>

<llo_original>
// kernel: tpu_custom_call.1
$region0: #{tpu_custom_call.1}
  #allocation0 [shape = 'u32[]', space=smem, size = 0x4, offset = 0x4, fixed_abs, tag = 'smem constant byte address 0x4 - core index']
  #allocation1 [shape = 'u32[72,128]{1,0:T(1,128)}', space=vmem, size = 0x9000, scoped, tag = 'internal scratch']
  #allocation2 [shape = 'f32[2,18,18,128]{3,2,1,0:T(8,128)}', space=vmem, size = 0x6c000, scoped, tag = 'scratch operand']
  #allocation3 [shape = 'bf16[2,16,16,1152]{3,2,1,0:T(8,128)(2,1)}', space=vmem, size = 0x120000, scoped, tag = 'scratch operand']
  %s0 = inlined_call_operand.hbm [shape: f32[512,128], index: 0, kind: input, shape index: {}]
  %s1 = inlined_call_operand.hbm [shape: bf16[1152,128], index: 1, kind: input, shape index: {}]
  %s2 = inlined_call_operand.vmem [shape: f32[1,128], index: 2, kind: input, shape index: {}]
  %s3 = inlined_call_operand.hbm [shape: f32[512,128], index: 3, kind: output, shape index: {}]
  %s4 = sld [smem:[#allocation0]]
  $region30: #{tpu_custom_call.1} parent=0
    _
  %s6 = ssub.s32 1, %s4
  %s7 = scalar_select 0, %s6, %s4
  $region1: #{tpu_custom_call.1} parent=0
    #allocation4 [shape = 'u8[262144]{0}', space=vmem, size = 0x40000, scoped, tag = 'input window, operand 0, single buffered']
    #allocation5 [shape = 's32[1]{0}', space=sflag, size = 0x4, scoped, tag = 'scoped memory for tpu_custom_call.1']
    #allocation6 [shape = 's32[1]{0}', space=sflag, size = 0x4, scoped, tag = 'scoped memory for tpu_custom_call.1']
    #allocation7 [shape = 'u8[294912]{0}', space=vmem, size = 0x48000, scoped, tag = 'input window, operand 1, single buffered']
    #allocation8 [shape = 's32[1]{0}', space=sflag, size = 0x4, scoped, tag = 'scoped memory for tpu_custom_call.1']
    #allocation9 [shape = 'u8[262144]{0}', space=vmem, size = 0x40000, scoped, tag = 'output window, operand 0, single buffered']
    %8 = vsyncpa [#allocation5], 0
    %9 = vsyncpa [#allocation8], 0
    %10 = vsyncpa [#allocation6], 0
    // Predicated region
    $region2: #{tpu_custom_call.1} parent=1 // pred_check
      _
    $region3: #{tpu_custom_call.1} parent=1 // pred_check_branch
      %12 = sbr.rel (0) target = $region5
    $region4: #{tpu_custom_call.1} parent=1 // pred_region
      %14 = vsyncadd [#allocation5], 0
      %s15 = sshll.u32 %s0, 4
      %s16 = int_to_ptr.hbm [resolvable:$true] %s15
      %s17 = sshll.u32 [#allocation4], 4
      %s18 = int_to_ptr.vmem [resolvable:$true] %s17
      %23 = dma.hbm_to_vmem [thread:$0]  %s16, 8192, %s18, [#allocation5], 128, 128, 8
    $region5: #{tpu_custom_call.1} parent=1 // pred_fallthru
      _
    // Predicated region
    $region6: #{tpu_custom_call.1} parent=1 // pred_check
      _
    $region7: #{tpu_custom_call.1} parent=1 // pred_check_branch
      %25 = sbr.rel (0) target = $region9
    $region8: #{tpu_custom_call.1} parent=1 // pred_region
      %27 = vsyncadd [#allocation8], 0
      %s28 = sshll.u32 %s1, 4
      %s29 = int_to_ptr.hbm [resolvable:$true] %s28
      %s30 = sshll.u32 [#allocation7], 4
      %s31 = int_to_ptr.vmem [resolvable:$true] %s30
      %36 = dma.hbm_to_vmem [thread:$0]  %s29, 9216, %s31, [#allocation8], 64, 64, 4
    $region9: #{tpu_custom_call.1} parent=1 // pred_fallthru
      _
    // Predicated region
    $region10: #{tpu_custom_call.1} parent=1 // pred_check
      _
    $region11: #{tpu_custom_call.1} parent=1 // pred_check_branch
      %38 = sbr.rel (0) target = $region13
    $region12: #{tpu_custom_call.1} parent=1 // pred_region
      _
    $region13: #{tpu_custom_call.1} parent=1 // pred_fallthru
      _
    // Predicated region
    $region14: #{tpu_custom_call.1} parent=1 // pred_check
      _
    $region15: #{tpu_custom_call.1} parent=1 // pred_check_branch
      %40 = sbr.rel (0) target = $region17
    $region16: #{tpu_custom_call.1} parent=1 // pred_region
      %42 = dma.done [#allocation5], 8192
    $region17: #{tpu_custom_call.1} parent=1 // pred_fallthru
      _
    // Predicated region
    $region18: #{tpu_custom_call.1} parent=1 // pred_check
      _
    $region19: #{tpu_custom_call.1} parent=1 // pred_check_branch
      %44 = sbr.rel (0) target = $region21
    $region20: #{tpu_custom_call.1} parent=1 // pred_region
      %46 = dma.done [#allocation8], 9216
    $region21: #{tpu_custom_call.1} parent=1 // pred_fallthru
      _
    %47 = vst [vmem:[#allocation2] sm:$0xff] 0.0
    %48 = vst [vmem:[#allocation2 + $0x8] sm:$0xff] 0.0
    %49 = vst [vmem:[#allocation2 + $0x10] sm:$0x3] 0.0
    %50 = vst [vmem:[#allocation2 + $0x18] sm:$0xff] 0.0
    %51 = vst [vmem:[#allocation2 + $0x20] sm:$0xff] 0.0
    %52 = vst [vmem:[#allocation2 + $0x28] sm:$0x3] 0.0
    %53 = vst [vmem:[#allocation2 + $0x30] sm:$0xff] 0.0
    %54 = vst [vmem:[#allocation2 + $0x38] sm:$0xff] 0.0
    %55 = vst [vmem:[#allocation2 + $0x40] sm:$0x3] 0.0
    %56 = vst [vmem:[#allocation2 + $0x48] sm:$0xff] 0.0
    %57 = vst [vmem:[#allocation2 + $0x50] sm:$0xff] 0.0
    %58 = vst [vmem:[#allocation2 + $0x58] sm:$0x3] 0.0
    %59 = vst [vmem:[#allocation2 + $0x60] sm:$0xff] 0.0
    %60 = vst [vmem:[#allocation2 + $0x68] sm:$0xff] 0.0
    %61 = vst [vmem:[#allocation2 + $0x70] sm:$0x3] 0.0
    %62 = vst [vmem:[#allocation2 + $0x78] sm:$0xff] 0.0
    %63 = vst [vmem:[#allocation2 + $0x80] sm:$0xff] 0.0
    %64 = vst [vmem:[#allocation2 + $0x88] sm:$0x3] 0.0
    %65 = vst [vmem:[#allocation2 + $0x90] sm:$0xff] 0.0
    %66 = vst [vmem:[#allocation2 + $0x98] sm:$0xff] 0.0
    %67 = vst [vmem:[#allocation2 + $0xa0] sm:$0x3] 0.0
    %68 = vst [vmem:[#allocation2 + $0xa8] sm:$0xff] 0.0
    %69 = vst [vmem:[#allocation2 + $0xb0] sm:$0xff] 0.0
    %70 = vst [vmem:[#allocation2 + $0xb8] sm:$0x3] 0.0
    %71 = vst [vmem:[#allocation2 + $0xc0] sm:$0xff] 0.0
    %72 = vst [vmem:[#allocation2 + $0xc8] sm:$0xff] 0.0
    %73 = vst [vmem:[#allocation2 + $0xd0] sm:$0x3] 0.0
    %74 = vst [vmem:[#allocation2 + $0xd8] sm:$0xff] 0.0
    %75 = vst [vmem:[#allocation2 + $0xe0] sm:$0xff] 0.0
    %76 = vst [vmem:[#allocation2 + $0xe8] sm:$0x3] 0.0
    %77 = vst [vmem:[#allocation2 + $0xf0] sm:$0xff] 0.0
    %78 = vst [vmem:[#allocation2 + $0xf8] sm:$0xff] 0.0
    %79 = vst [vmem:[#allocation2 + $0x100] sm:$0x3] 0.0
    %80 = vst [vmem:[#allocation2 + $0x108] sm:$0xff] 0.0
    %81 = vst [vmem:[#allocation2 + $0x110] sm:$0xff] 0.0
    %82 = vst [vmem:[#allocation2 + $0x118] sm:$0x3] 0.0
    %83 = vst [vmem:[#allocation2 + $0x120] sm:$0xff] 0.0
    %84 = vst [vmem:[#allocation2 + $0x128] sm:$0xff] 0.0
    %85 = vst [vmem:[#allocation2 + $0x130] sm:$0x3] 0.0
    %86 = vst [vmem:[#allocation2 + $0x138] sm:$0xff] 0.0
    %87 = vst [vmem:[#allocation2 + $0x140] sm:$0xff] 0.0
    %88 = vst [vmem:[#allocation2 + $0x148] sm:$0x3] 0.0
    %89 = vst [vmem:[#allocation2 + $0x150] sm:$0xff] 0.0
    %90 = vst [vmem:[#allocation2 + $0x158] sm:$0xff] 0.0
    %91 = vst [vmem:[#allocation2 + $0x160] sm:$0x3] 0.0
    %92 = vst [vmem:[#allocation2 + $0x168] sm:$0xff] 0.0
    %93 = vst [vmem:[#allocation2 + $0x170] sm:$0xff] 0.0
    %94 = vst [vmem:[#allocation2 + $0x178] sm:$0x3] 0.0
    %95 = vst [vmem:[#allocation2 + $0x180] sm:$0xff] 0.0
    %96 = vst [vmem:[#allocation2 + $0x188] sm:$0xff] 0.0
    %97 = vst [vmem:[#allocation2 + $0x190] sm:$0x3] 0.0
    %98 = vst [vmem:[#allocation2 + $0x198] sm:$0xff] 0.0
    %99 = vst [vmem:[#allocation2 + $0x1a0] sm:$0xff] 0.0
    %100 = vst [vmem:[#allocation2 + $0x1a8] sm:$0x3] 0.0
    %101 = vst [vmem:[#allocation2 + $0x1b0] sm:$0xff] 0.0
    %102 = vst [vmem:[#allocation2 + $0x1b8] sm:$0xff] 0.0
    %103 = vst [vmem:[#allocation2 + $0x1c0] sm:$0x3] 0.0
    %104 = vst [vmem:[#allocation2 + $0x1c8] sm:$0xff] 0.0
    %105 = vst [vmem:[#allocation2 + $0x1d0] sm:$0xff] 0.0
    %106 = vst [vmem:[#allocation2 + $0x1d8] sm:$0x3] 0.0
    %107 = vst [vmem:[#allocation2 + $0x1e0] sm:$0xff] 0.0
    %108 = vst [vmem:[#allocation2 + $0x1e8] sm:$0xff] 0.0
    %109 = vst [vmem:[#allocation2 + $0x1f0] sm:$0x3] 0.0
    %110 = vst [vmem:[#allocation2 + $0x1f8] sm:$0xff] 0.0
    %111 = vst [vmem:[#allocation2 + $0x200] sm:$0xff] 0.0
    %112 = vst [vmem:[#allocation2 + $0x208] sm:$0x3] 0.0
    %113 = vst [vmem:[#allocation2 + $0x210] sm:$0xff] 0.0
    %114 = vst [vmem:[#allocation2 + $0x218] sm:$0xff] 0.0
    %115 = vst [vmem:[#allocation2 + $0x220] sm:$0x3] 0.0
    %116 = vst [vmem:[#allocation2 + $0x228] sm:$0xff] 0.0
    %117 = vst [vmem:[#allocation2 + $0x230] sm:$0xff] 0.0
    %118 = vst [vmem:[#allocation2 + $0x238] sm:$0x3] 0.0
    %119 = vst [vmem:[#allocation2 + $0x240] sm:$0xff] 0.0
    %120 = vst [vmem:[#allocation2 + $0x248] sm:$0xff] 0.0
    %121 = vst [vmem:[#allocation2 + $0x250] sm:$0x3] 0.0
    %122 = vst [vmem:[#allocation2 + $0x258] sm:$0xff] 0.0
    %123 = vst [vmem:[#allocation2 + $0x260] sm:$0xff] 0.0
    %124 = vst [vmem:[#allocation2 + $0x268] sm:$0x3] 0.0
    %125 = vst [vmem:[#allocation2 + $0x270] sm:$0xff] 0.0
    %126 = vst [vmem:[#allocation2 + $0x278] sm:$0xff] 0.0
    %127 = vst [vmem:[#allocation2 + $0x280] sm:$0x3] 0.0
    %128 = vst [vmem:[#allocation2 + $0x288] sm:$0xff] 0.0
    %129 = vst [vmem:[#allocation2 + $0x290] sm:$0xff] 0.0
    %130 = vst [vmem:[#allocation2 + $0x298] sm:$0x3] 0.0
    %131 = vst [vmem:[#allocation2 + $0x2a0] sm:$0xff] 0.0
    %132 = vst [vmem:[#allocation2 + $0x2a8] sm:$0xff] 0.0
    %133 = vst [vmem:[#allocation2 + $0x2b0] sm:$0x3] 0.0
    %134 = vst [vmem:[#allocation2 + $0x2b8] sm:$0xff] 0.0
    %135 = vst [vmem:[#allocation2 + $0x2c0] sm:$0xff] 0.0
    %136 = vst [vmem:[#allocation2 + $0x2c8] sm:$0x3] 0.0
    %137 = vst [vmem:[#allocation2 + $0x2d0] sm:$0xff] 0.0
    %138 = vst [vmem:[#allocation2 + $0x2d8] sm:$0xff] 0.0
    %139 = vst [vmem:[#allocation2 + $0x2e0] sm:$0x3] 0.0
    %140 = vst [vmem:[#allocation2 + $0x2e8] sm:$0xff] 0.0
    %141 = vst [vmem:[#allocation2 + $0x2f0] sm:$0xff] 0.0
    %142 = vst [vmem:[#allocation2 + $0x2f8] sm:$0x3] 0.0
    %143 = vst [vmem:[#allocation2 + $0x300] sm:$0xff] 0.0
    %144 = vst [vmem:[#allocation2 + $0x308] sm:$0xff] 0.0
    %145 = vst [vmem:[#allocation2 + $0x310] sm:$0x3] 0.0
    %146 = vst [vmem:[#allocation2 + $0x318] sm:$0xff] 0.0
    %147 = vst [vmem:[#allocation2 + $0x320] sm:$0xff] 0.0
    %148 = vst [vmem:[#allocation2 + $0x328] sm:$0x3] 0.0
    %149 = vst [vmem:[#allocation2 + $0x330] sm:$0xff] 0.0
    %150 = vst [vmem:[#allocation2 + $0x338] sm:$0xff] 0.0
    %151 = vst [vmem:[#allocation2 + $0x340] sm:$0x3] 0.0
    %152 = vst [vmem:[#allocation2 + $0x348] sm:$0xff] 0.0
    %153 = vst [vmem:[#allocation2 + $0x350] sm:$0xff] 0.0
    %154 = vst [vmem:[#allocation2 + $0x358] sm:$0x3] 0.0
    %v155 = vld [vmem:[#allocation4] sm:$0xff]
    %v156 = vld [vmem:[#allocation4 + $0x8] sm:$0xff]
    %v157 = vld [vmem:[#allocation4 + $0x10] sm:$0xff]
    %v158 = vld [vmem:[#allocation4 + $0x18] sm:$0xff]
    %v159 = vld [vmem:[#allocation4 + $0x20] sm:$0xff]
    %v160 = vld [vmem:[#allocation4 + $0x28] sm:$0xff]
    %v161 = vld [vmem:[#allocation4 + $0x30] sm:$0xff]
    %v162 = vld [vmem:[#allocation4 + $0x38] sm:$0xff]
    %v163 = vld [vmem:[#allocation4 + $0x40] sm:$0xff]
    %v164 = vld [vmem:[#allocation4 + $0x48] sm:$0xff]
    %v165 = vld [vmem:[#allocation4 + $0x50] sm:$0xff]
    %v166 = vld [vmem:[#allocation4 + $0x58] sm:$0xff]
    %v167 = vld [vmem:[#allocation4 + $0x60] sm:$0xff]
    %v168 = vld [vmem:[#allocation4 + $0x68] sm:$0xff]
    %v169 = vld [vmem:[#allocation4 + $0x70] sm:$0xff]
    %v170 = vld [vmem:[#allocation4 + $0x78] sm:$0xff]
    %v171 = vld [vmem:[#allocation4 + $0x80] sm:$0xff]
    %v172 = vld [vmem:[#allocation4 + $0x88] sm:$0xff]
    %v173 = vld [vmem:[#allocation4 + $0x90] sm:$0xff]
    %v174 = vld [vmem:[#allocation4 + $0x98] sm:$0xff]
    %v175 = vld [vmem:[#allocation4 + $0xa0] sm:$0xff]
    %v176 = vld [vmem:[#allocation4 + $0xa8] sm:$0xff]
    %v177 = vld [vmem:[#allocation4 + $0xb0] sm:$0xff]
    %v178 = vld [vmem:[#allocation4 + $0xb8] sm:$0xff]
    %v179 = vld [vmem:[#allocation4 + $0xc0] sm:$0xff]
    %v180 = vld [vmem:[#allocation4 + $0xc8] sm:$0xff]
    %v181 = vld [vmem:[#allocation4 + $0xd0] sm:$0xff]
    %v182 = vld [vmem:[#allocation4 + $0xd8] sm:$0xff]
    %v183 = vld [vmem:[#allocation4 + $0xe0] sm:$0xff]
    %v184 = vld [vmem:[#allocation4 + $0xe8] sm:$0xff]
    %v185 = vld [vmem:[#allocation4 + $0xf0] sm:$0xff]
    %v186 = vld [vmem:[#allocation4 + $0xf8] sm:$0xff]
    %v187 = vld [vmem:[#allocation4 + $0x100] sm:$0xff]
    %v188 = vld [vmem:[#allocation4 + $0x108] sm:$0xff]
    %v189 = vld [vmem:[#allocation4 + $0x110] sm:$0xff]
    %v190 = vld [vmem:[#allocation4 + $0x118] sm:$0xff]
    %v191 = vld [vmem:[#allocation4 + $0x120] sm:$0xff]
    %v192 = vld [vmem:[#allocation4 + $0x128] sm:$0xff]
    %v193 = vld [vmem:[#allocation4 + $0x130] sm:$0xff]
    %v194 = vld [vmem:[#allocation4 + $0x138] sm:$0xff]
    %v195 = vld [vmem:[#allocation4 + $0x140] sm:$0xff]
    %v196 = vld [vmem:[#allocation4 + $0x148] sm:$0xff]
    %v197 = vld [vmem:[#allocation4 + $0x150] sm:$0xff]
    %v198 = vld [vmem:[#allocation4 + $0x158] sm:$0xff]
    %v199 = vld [vmem:[#allocation4 + $0x160] sm:$0xff]
    %v200 = vld [vmem:[#allocation4 + $0x168] sm:$0xff]
    %v201 = vld [vmem:[#allocation4 + $0x170] sm:$0xff]
    %v202 = vld [vmem:[#allocation4 + $0x178] sm:$0xff]
    %v203 = vld [vmem:[#allocation4 + $0x180] sm:$0xff]
    %v204 = vld [vmem:[#allocation4 + $0x188] sm:$0xff]
    %v205 = vld [vmem:[#allocation4 + $0x190] sm:$0xff]
    %v206 = vld [vmem:[#allocation4 + $0x198] sm:$0xff]
    %v207 = vld [vmem:[#allocation4 + $0x1a0] sm:$0xff]
    %v208 = vld [vmem:[#allocation4 + $0x1a8] sm:$0xff]
    %v209 = vld [vmem:[#allocation4 + $0x1b0] sm:$0xff]
    %v210 = vld [vmem:[#allocation4 + $0x1b8] sm:$0xff]
    %v211 = vld [vmem:[#allocation4 + $0x1c0] sm:$0xff]
    %v212 = vld [vmem:[#allocation4 + $0x1c8] sm:$0xff]
    %v213 = vld [vmem:[#allocation4 + $0x1d0] sm:$0xff]
    %v214 = vld [vmem:[#allocation4 + $0x1d8] sm:$0xff]
    %v215 = vld [vmem:[#allocation4 + $0x1e0] sm:$0xff]
    %v216 = vld [vmem:[#allocation4 + $0x1e8] sm:$0xff]
    %v217 = vld [vmem:[#allocation4 + $0x1f0] sm:$0xff]
    %v218 = vld [vmem:[#allocation4 + $0x1f8] sm:$0xff]
    %s219 = scalar_lea.vmem [#allocation2], 24
    %220 = vst [vmem:[%s219 + $0x1] sm:$0xff] %v155
    %221 = vst [vmem:[%s219 + $0x9] sm:$0xff] %v156
    %222 = vst [vmem:[%s219 + $0x19] sm:$0xff] %v157
    %223 = vst [vmem:[%s219 + $0x21] sm:$0xff] %v158
    %224 = vst [vmem:[%s219 + $0x31] sm:$0xff] %v159
    %225 = vst [vmem:[%s219 + $0x39] sm:$0xff] %v160
    %226 = vst [vmem:[%s219 + $0x49] sm:$0xff] %v161
    %227 = vst [vmem:[%s219 + $0x51] sm:$0xff] %v162
    %228 = vst [vmem:[%s219 + $0x61] sm:$0xff] %v163
    %229 = vst [vmem:[%s219 + $0x69] sm:$0xff] %v164
    %230 = vst [vmem:[%s219 + $0x79] sm:$0xff] %v165
    %231 = vst [vmem:[%s219 + $0x81] sm:$0xff] %v166
    %232 = vst [vmem:[%s219 + $0x91] sm:$0xff] %v167
    %233 = vst [vmem:[%s219 + $0x99] sm:$0xff] %v168
    %234 = vst [vmem:[%s219 + $0xa9] sm:$0xff] %v169
    %235 = vst [vmem:[%s219 + $0xb1] sm:$0xff] %v170
    %236 = vst [vmem:[%s219 + $0xc1] sm:$0xff] %v171
    %237 = vst [vmem:[%s219 + $0xc9] sm:$0xff] %v172
    %238 = vst [vmem:[%s219 + $0xd9] sm:$0xff] %v173
    %239 = vst [vmem:[%s219 + $0xe1] sm:$0xff] %v174
    %240 = vst [vmem:[%s219 + $0xf1] sm:$0xff] %v175
    %241 = vst [vmem:[%s219 + $0xf9] sm:$0xff] %v176
    %242 = vst [vmem:[%s219 + $0x109] sm:$0xff] %v177
    %243 = vst [vmem:[%s219 + $0x111] sm:$0xff] %v178
    %244 = vst [vmem:[%s219 + $0x121] sm:$0xff] %v179
    %245 = vst [vmem:[%s219 + $0x129] sm:$0xff] %v180
    %246 = vst [vmem:[%s219 + $0x139] sm:$0xff] %v181
    %247 = vst [vmem:[%s219 + $0x141] sm:$0xff] %v182
    %248 = vst [vmem:[%s219 + $0x151] sm:$0xff] %v183
    %249 = vst [vmem:[%s219 + $0x159] sm:$0xff] %v184
    %250 = vst [vmem:[%s219 + $0x169] sm:$0xff] %v185
    %251 = vst [vmem:[%s219 + $0x171] sm:$0xff] %v186
    %252 = vst [vmem:[%s219 + $0x1b1] sm:$0xff] %v187
    %253 = vst [vmem:[%s219 + $0x1b9] sm:$0xff] %v188
    %254 = vst [vmem:[%s219 + $0x1c9] sm:$0xff] %v189
    %255 = vst [vmem:[%s219 + $0x1d1] sm:$0xff] %v190
    %256 = vst [vmem:[%s219 + $0x1e1] sm:$0xff] %v191
    %257 = vst [vmem:[%s219 + $0x1e9] sm:$0xff] %v192
    %258 = vst [vmem:[%s219 + $0x1f9] sm:$0xff] %v193
    %259 = vst [vmem:[%s219 + $0x201] sm:$0xff] %v194
    %260 = vst [vmem:[%s219 + $0x211] sm:$0xff] %v195
    %261 = vst [vmem:[%s219 + $0x219] sm:$0xff] %v196
    %262 = vst [vmem:[%s219 + $0x229] sm:$0xff] %v197
    %263 = vst [vmem:[%s219 + $0x231] sm:$0xff] %v198
    %264 = vst [vmem:[%s219 + $0x241] sm:$0xff] %v199
    %265 = vst [vmem:[%s219 + $0x249] sm:$0xff] %v200
    %266 = vst [vmem:[%s219 + $0x259] sm:$0xff] %v201
    %267 = vst [vmem:[%s219 + $0x261] sm:$0xff] %v202
    %268 = vst [vmem:[%s219 + $0x271] sm:$0xff] %v203
    %269 = vst [vmem:[%s219 + $0x279] sm:$0xff] %v204
    %270 = vst [vmem:[%s219 + $0x289] sm:$0xff] %v205
    %271 = vst [vmem:[%s219 + $0x291] sm:$0xff] %v206
    %272 = vst [vmem:[%s219 + $0x2a1] sm:$0xff] %v207
    %273 = vst [vmem:[%s219 + $0x2a9] sm:$0xff] %v208
    %274 = vst [vmem:[%s219 + $0x2b9] sm:$0xff] %v209
    %275 = vst [vmem:[%s219 + $0x2c1] sm:$0xff] %v210
    %276 = vst [vmem:[%s219 + $0x2d1] sm:$0xff] %v211
    %277 = vst [vmem:[%s219 + $0x2d9] sm:$0xff] %v212
    %278 = vst [vmem:[%s219 + $0x2e9] sm:$0xff] %v213
    %279 = vst [vmem:[%s219 + $0x2f1] sm:$0xff] %v214
    %280 = vst [vmem:[%s219 + $0x301] sm:$0xff] %v215
    %281 = vst [vmem:[%s219 + $0x309] sm:$0xff] %v216
    %282 = vst [vmem:[%s219 + $0x319] sm:$0xff] %v217
    %283 = vst [vmem:[%s219 + $0x321] sm:$0xff] %v218
    %v284 = vld [vmem:[#allocation2] sm:$0xff]
    %v285 = vld [vmem:[#allocation2 + $0x8] sm:$0xff]
    %v286 = vld [vmem:[#allocation2 + $0x18] sm:$0xff]
    %v287 = vld [vmem:[#allocation2 + $0x20] sm:$0xff]
    %v288 = vld [vmem:[#allocation2 + $0x30] sm:$0xff]
    %v289 = vld [vmem:[#allocation2 + $0x38] sm:$0xff]
    %v290 = vld [vmem:[#allocation2 + $0x48] sm:$0xff]
    %v291 = vld [vmem:[#allocation2 + $0x50] sm:$0xff]
    %v292 = vld [vmem:[#allocation2 + $0x60] sm:$0xff]
    %v293 = vld [vmem:[#allocation2 + $0x68] sm:$0xff]
    %v294 = vld [vmem:[#allocation2 + $0x78] sm:$0xff]
    %v295 = vld [vmem:[#allocation2 + $0x80] sm:$0xff]
    %v296 = vld [vmem:[#allocation2 + $0x90] sm:$0xff]
    %v297 = vld [vmem:[#allocation2 + $0x98] sm:$0xff]
    %v298 = vld [vmem:[#allocation2 + $0xa8] sm:$0xff]
    %v299 = vld [vmem:[#allocation2 + $0xb0] sm:$0xff]
    %v300 = vld [vmem:[#allocation2 + $0xc0] sm:$0xff]
    %v301 = vld [vmem:[#allocation2 + $0xc8] sm:$0xff]
    %v302 = vld [vmem:[#allocation2 + $0xd8] sm:$0xff]
    %v303 = vld [vmem:[#allocation2 + $0xe0] sm:$0xff]
    %v304 = vld [vmem:[#allocation2 + $0xf0] sm:$0xff]
    %v305 = vld [vmem:[#allocation2 + $0xf8] sm:$0xff]
    %v306 = vld [vmem:[#allocation2 + $0x108] sm:$0xff]
    %v307 = vld [vmem:[#allocation2 + $0x110] sm:$0xff]
    %v308 = vld [vmem:[#allocation2 + $0x120] sm:$0xff]
    %v309 = vld [vmem:[#allocation2 + $0x128] sm:$0xff]
    %v310 = vld [vmem:[#allocation2 + $0x138] sm:$0xff]
    %v311 = vld [vmem:[#allocation2 + $0x140] sm:$0xff]
    %v312 = vld [vmem:[#allocation2 + $0x150] sm:$0xff]
    %v313 = vld [vmem:[#allocation2 + $0x158] sm:$0xff]
    %v314 = vld [vmem:[#allocation2 + $0x168] sm:$0xff]
    %v315 = vld [vmem:[#allocation2 + $0x170] sm:$0xff]
    %v316 = vld [vmem:[#allocation2 + $0x1b0] sm:$0xff]
    %v317 = vld [vmem:[#allocation2 + $0x1b8] sm:$0xff]
    %v318 = vld [vmem:[#allocation2 + $0x1c8] sm:$0xff]
    %v319 = vld [vmem:[#allocation2 + $0x1d0] sm:$0xff]
    %v320 = vld [vmem:[#allocation2 + $0x1e0] sm:$0xff]
    %v321 = vld [vmem:[#allocation2 + $0x1e8] sm:$0xff]
    %v322 = vld [vmem:[#allocation2 + $0x1f8] sm:$0xff]
    %v323 = vld [vmem:[#allocation2 + $0x200] sm:$0xff]
    %v324 = vld [vmem:[#allocation2 + $0x210] sm:$0xff]
    %v325 = vld [vmem:[#allocation2 + $0x218] sm:$0xff]
    %v326 = vld [vmem:[#allocation2 + $0x228] sm:$0xff]
    %v327 = vld [vmem:[#allocation2 + $0x230] sm:$0xff]
    %v328 = vld [vmem:[#allocation2 + $0x240] sm:$0xff]
    %v329 = vld [vmem:[#allocation2 + $0x248] sm:$0xff]
    %v330 = vld [vmem:[#allocation2 + $0x258] sm:$0xff]
    %v331 = vld [vmem:[#allocation2 + $0x260] sm:$0xff]
    %v332 = vld [vmem:[#allocation2 + $0x270] sm:$0xff]
    %v333 = vld [vmem:[#allocation2 + $0x278] sm:$0xff]
    %v334 = vld [vmem:[#allocation2 + $0x288] sm:$0xff]
    %v335 = vld [vmem:[#allocation2 + $0x290] sm:$0xff]
    %v336 = vld [vmem:[#allocation2 + $0x2a0] sm:$0xff]
    %v337 = vld [vmem:[#allocation2 + $0x2a8] sm:$0xff]
    %v338 = vld [vmem:[#allocation2 + $0x2b8] sm:$0xff]
    %v339 = vld [vmem:[#allocation2 + $0x2c0] sm:$0xff]
    %v340 = vld [vmem:[#allocation2 + $0x2d0] sm:$0xff]
    %v341 = vld [vmem:[#allocation2 + $0x2d8] sm:$0xff]
    %v342 = vld [vmem:[#allocation2 + $0x2e8] sm:$0xff]
    %v343 = vld [vmem:[#allocation2 + $0x2f0] sm:$0xff]
    %v344 = vld [vmem:[#allocation2 + $0x300] sm:$0xff]
    %v345 = vld [vmem:[#allocation2 + $0x308] sm:$0xff]
    %v346 = vld [vmem:[#allocation2 + $0x318] sm:$0xff]
    %v347 = vld [vmem:[#allocation2 + $0x320] sm:$0xff]
    %v348 = vpack.c.bf16 %v284, %v284
    %v349 = vpack.c.bf16 %v285, %v285
    %v350 = vpack.c.bf16 %v286, %v286
    %v351 = vpack.c.bf16 %v287, %v287
    %v352 = vpack.c.bf16 %v288, %v288
    %v353 = vpack.c.bf16 %v289, %v289
    %v354 = vpack.c.bf16 %v290, %v290
    %v355 = vpack.c.bf16 %v291, %v291
    %v356 = vpack.c.bf16 %v292, %v292
    %v357 = vpack.c.bf16 %v293, %v293
    %v358 = vpack.c.bf16 %v294, %v294
    %v359 = vpack.c.bf16 %v295, %v295
    %v360 = vpack.c.bf16 %v296, %v296
    %v361 = vpack.c.bf16 %v297, %v297
    %v362 = vpack.c.bf16 %v298, %v298
    %v363 = vpack.c.bf16 %v299, %v299
    %v364 = vpack.c.bf16 %v300, %v300
    %v365 = vpack.c.bf16 %v301, %v301
    %v366 = vpack.c.bf16 %v302, %v302
    %v367 = vpack.c.bf16 %v303, %v303
    %v368 = vpack.c.bf16 %v304, %v304
    %v369 = vpack.c.bf16 %v305, %v305
    %v370 = vpack.c.bf16 %v306, %v306
    %v371 = vpack.c.bf16 %v307, %v307
    %v372 = vpack.c.bf16 %v308, %v308
    %v373 = vpack.c.bf16 %v309, %v309
    %v374 = vpack.c.bf16 %v310, %v310
    %v375 = vpack.c.bf16 %v311, %v311
    %v376 = vpack.c.bf16 %v312, %v312
    %v377 = vpack.c.bf16 %v313, %v313
    %v378 = vpack.c.bf16 %v314, %v314
    %v379 = vpack.c.bf16 %v315, %v315
    %v380 = vpack.c.bf16 %v316, %v316
    %v381 = vpack.c.bf16 %v317, %v317
    %v382 = vpack.c.bf16 %v318, %v318
    %v383 = vpack.c.bf16 %v319, %v319
    %v384 = vpack.c.bf16 %v320, %v320
    %v385 = vpack.c.bf16 %v321, %v321
    %v386 = vpack.c.bf16 %v322, %v322
    %v387 = vpack.c.bf16 %v323, %v323
    %v388 = vpack.c.bf16 %v324, %v324
    %v389 = vpack.c.bf16 %v325, %v325
    %v390 = vpack.c.bf16 %v326, %v326
    %v391 = vpack.c.bf16 %v327, %v327
    %v392 = vpack.c.bf16 %v328, %v328
    %v393 = vpack.c.bf16 %v329, %v329
    %v394 = vpack.c.bf16 %v330, %v330
    %v395 = vpack.c.bf16 %v331, %v331
    %v396 = vpack.c.bf16 %v332, %v332
    %v397 = vpack.c.bf16 %v333, %v333
    %v398 = vpack.c.bf16 %v334, %v334
    %v399 = vpack.c.bf16 %v335, %v335
    %v400 = vpack.c.bf16 %v336, %v336
    %v401 = vpack.c.bf16 %v337, %v337
    %v402 = vpack.c.bf16 %v338, %v338
    %v403 = vpack.c.bf16 %v339, %v339
    %v404 = vpack.c.bf16 %v340, %v340
    %v405 = vpack.c.bf16 %v341, %v341
    %v406 = vpack.c.bf16 %v342, %v342
    %v407 = vpack.c.bf16 %v343, %v343
    %v408 = vpack.c.bf16 %v344, %v344
    %v409 = vpack.c.bf16 %v345, %v345
    %v410 = vpack.c.bf16 %v346, %v346
    %v411 = vpack.c.bf16 %v347, %v347
    %412 = vst [vmem:[#allocation3] sm:$0xf] %v348
    %413 = vst [vmem:[#allocation3 + $0x24] sm:$0xf] %v349
    %414 = vst [vmem:[#allocation3 + $0x48] sm:$0xf] %v350
    %415 = vst [vmem:[#allocation3 + $0x6c] sm:$0xf] %v351
    %416 = vst [vmem:[#allocation3 + $0x90] sm:$0xf] %v352
    %417 = vst [vmem:[#allocation3 + $0xb4] sm:$0xf] %v353
    %418 = vst [vmem:[#allocation3 + $0xd8] sm:$0xf] %v354
    %419 = vst [vmem:[#allocation3 + $0xfc] sm:$0xf] %v355
    %420 = vst [vmem:[#allocation3 + $0x120] sm:$0xf] %v356
    %421 = vst [vmem:[#allocation3 + $0x144] sm:$0xf] %v357
    %422 = vst [vmem:[#allocation3 + $0x168] sm:$0xf] %v358
    %423 = vst [vmem:[#allocation3 + $0x18c] sm:$0xf] %v359
    %424 = vst [vmem:[#allocation3 + $0x1b0] sm:$0xf] %v360
    %425 = vst [vmem:[#allocation3 + $0x1d4] sm:$0xf] %v361
    %426 = vst [vmem:[#allocation3 + $0x1f8] sm:$0xf] %v362
    %427 = vst [vmem:[#allocation3 + $0x21c] sm:$0xf] %v363
    %428 = vst [vmem:[#allocation3 + $0x240] sm:$0xf] %v364
    %429 = vst [vmem:[#allocation3 + $0x264] sm:$0xf] %v365
    %430 = vst [vmem:[#allocation3 + $0x288] sm:$0xf] %v366
    %431 = vst [vmem:[#allocation3 + $0x2ac] sm:$0xf] %v367
    %432 = vst [vmem:[#allocation3 + $0x2d0] sm:$0xf] %v368
    %433 = vst [vmem:[#allocation3 + $0x2f4] sm:$0xf] %v369
    %434 = vst [vmem:[#allocation3 + $0x318] sm:$0xf] %v370
    %435 = vst [vmem:[#allocation3 + $0x33c] sm:$0xf] %v371
    %436 = vst [vmem:[#allocation3 + $0x360] sm:$0xf] %v372
    %437 = vst [vmem:[#allocation3 + $0x384] sm:$0xf] %v373
    %438 = vst [vmem:[#allocation3 + $0x3a8] sm:$0xf] %v374
    %439 = vst [vmem:[#allocation3 + $0x3cc] sm:$0xf] %v375
    %440 = vst [vmem:[#allocation3 + $0x3f0] sm:$0xf] %v376
    %441 = vst [vmem:[#allocation3 + $0x414] sm:$0xf] %v377
    %442 = vst [vmem:[#allocation3 + $0x438] sm:$0xf] %v378
    %443 = vst [vmem:[#allocation3 + $0x45c] sm:$0xf] %v379
    %444 = vst [vmem:[#allocation3 + $0x480] sm:$0xf] %v380
    %445 = vst [vmem:[#allocation3 + $0x4a4] sm:$0xf] %v381
    %446 = vst [vmem:[#allocation3 + $0x4c8] sm:$0xf] %v382
    %447 = vst [vmem:[#allocation3 + $0x4ec] sm:$0xf] %v383
    %448 = vst [vmem:[#allocation3 + $0x510] sm:$0xf] %v384
    %449 = vst [vmem:[#allocation3 + $0x534] sm:$0xf] %v385
    %450 = vst [vmem:[#allocation3 + $0x558] sm:$0xf] %v386
    %451 = vst [vmem:[#allocation3 + $0x57c] sm:$0xf] %v387
    %452 = vst [vmem:[#allocation3 + $0x5a0] sm:$0xf] %v388
    %453 = vst [vmem:[#allocation3 + $0x5c4] sm:$0xf] %v389
    %454 = vst [vmem:[#allocation3 + $0x5e8] sm:$0xf] %v390
    %455 = vst [vmem:[#allocation3 + $0x60c] sm:$0xf] %v391
    %456 = vst [vmem:[#allocation3 + $0x630] sm:$0xf] %v392
    %457 = vst [vmem:[#allocation3 + $0x654] sm:$0xf] %v393
    %458 = vst [vmem:[#allocation3 + $0x678] sm:$0xf] %v394
    %459 = vst [vmem:[#allocation3 + $0x69c] sm:$0xf] %v395
    %460 = vst [vmem:[#allocation3 + $0x6c0] sm:$0xf] %v396
    %461 = vst [vmem:[#allocation3 + $0x6e4] sm:$0xf] %v397
    %462 = vst [vmem:[#allocation3 + $0x708] sm:$0xf] %v398
    %463 = vst [vmem:[#allocation3 + $0x72c] sm:$0xf] %v399
    %464 = vst [vmem:[#allocation3 + $0x750] sm:$0xf] %v400
    %465 = vst [vmem:[#allocation3 + $0x774] sm:$0xf] %v401
    %466 = vst [vmem:[#allocation3 + $0x798] sm:$0xf] %v402
    %467 = vst [vmem:[#allocation3 + $0x7bc] sm:$0xf] %v403
    %468 = vst [vmem:[#allocation3 + $0x7e0] sm:$0xf] %v404
    %469 = vst [vmem:[#allocation3 + $0x804] sm:$0xf] %v405
    %470 = vst [vmem:[#allocation3 + $0x828] sm:$0xf] %v406
    %471 = vst [vmem:[#allocation3 + $0x84c] sm:$0xf] %v407
    %472 = vst [vmem:[#allocation3 + $0x870] sm:$0xf] %v408
    %473 = vst [vmem:[#allocation3 + $0x894] sm:$0xf] %v409
    %474 = vst [vmem:[#allocation3 + $0x8b8] sm:$0xf] %v410
    %475 = vst [vmem:[#allocation3 + $0x8dc] sm:$0xf] %v411
    %v476 = vld [vmem:[#allocation2 + $0x1] sm:$0xff]
    %v477 = vld [vmem:[#allocation2 + $0x9] sm:$0xff]
    %v478 = vld [vmem:[#allocation2 + $0x19] sm:$0xff]
    %v479 = vld [vmem:[#allocation2 + $0x21] sm:$0xff]
    %v480 = vld [vmem:[#allocation2 + $0x31] sm:$0xff]
    %v481 = vld [vmem:[#allocation2 + $0x39] sm:$0xff]
    %v482 = vld [vmem:[#allocation2 + $0x49] sm:$0xff]
    %v483 = vld [vmem:[#allocation2 + $0x51] sm:$0xff]
    %v484 = vld [vmem:[#allocation2 + $0x61] sm:$0xff]
    %v485 = vld [vmem:[#allocation2 + $0x69] sm:$0xff]
    %v486 = vld [vmem:[#allocation2 + $0x79] sm:$0xff]
    %v487 = vld [vmem:[#allocation2 + $0x81] sm:$0xff]
    %v488 = vld [vmem:[#allocation2 + $0x91] sm:$0xff]
    %v489 = vld [vmem:[#allocation2 + $0x99] sm:$0xff]
    %v490 = vld [vmem:[#allocation2 + $0xa9] sm:$0xff]
    %v491 = vld [vmem:[#allocation2 + $0xb1] sm:$0xff]
    %v492 = vld [vmem:[#allocation2 + $0xc1] sm:$0xff]
    %v493 = vld [vmem:[#allocation2 + $0xc9] sm:$0xff]
    %v494 = vld [vmem:[#allocation2 + $0xd9] sm:$0xff]
    %v495 = vld [vmem:[#allocation2 + $0xe1] sm:$0xff]
    %v496 = vld [vmem:[#allocation2 + $0xf1] sm:$0xff]
    %v497 = vld [vmem:[#allocation2 + $0xf9] sm:$0xff]
    %v498 = vld [vmem:[#allocation2 + $0x109] sm:$0xff]
    %v499 = vld [vmem:[#allocation2 + $0x111] sm:$0xff]
    %v500 = vld [vmem:[#allocation2 + $0x121] sm:$0xff]
    %v501 = vld [vmem:[#allocation2 + $0x129] sm:$0xff]
    %v502 = vld [vmem:[#allocation2 + $0x139] sm:$0xff]
    %v503 = vld [vmem:[#allocation2 + $0x141] sm:$0xff]
    %v504 = vld [vmem:[#allocation2 + $0x151] sm:$0xff]
    %v505 = vld [vmem:[#allocation2 + $0x159] sm:$0xff]
    %v506 = vld [vmem:[#allocation2 + $0x169] sm:$0xff]
    %v507 = vld [vmem:[#allocation2 + $0x171] sm:$0xff]
    %v508 = vld [vmem:[#allocation2 + $0x1b1] sm:$0xff]
    %v509 = vld [vmem:[#allocation2 + $0x1b9] sm:$0xff]
    %v510 = vld [vmem:[#allocation2 + $0x1c9] sm:$0xff]
    %v511 = vld [vmem:[#allocation2 + $0x1d1] sm:$0xff]
    %v512 = vld [vmem:[#allocation2 + $0x1e1] sm:$0xff]
    %v513 = vld [vmem:[#allocation2 + $0x1e9] sm:$0xff]
    %v514 = vld [vmem:[#allocation2 + $0x1f9] sm:$0xff]
    %v515 = vld [vmem:[#allocation2 + $0x201] sm:$0xff]
    %v516 = vld [vmem:[#allocation2 + $0x211] sm:$0xff]
    %v517 = vld [vmem:[#allocation2 + $0x219] sm:$0xff]
    %v518 = vld [vmem:[#allocation2 + $0x229] sm:$0xff]
    %v519 = vld [vmem:[#allocation2 + $0x231] sm:$0xff]
    %v520 = vld [vmem:[#allocation2 + $0x241] sm:$0xff]
    %v521 = vld [vmem:[#allocation2 + $0x249] sm:$0xff]
    %v522 = vld [vmem:[#allocation2 + $0x259] sm:$0xff]
    %v523 = vld [vmem:[#allocation2 + $0x261] sm:$0xff]
    %v524 = vld [vmem:[#allocation2 + $0x271] sm:$0xff]
    %v525 = vld [vmem:[#allocation2 + $0x279] sm:$0xff]
    %v526 = vld [vmem:[#allocation2 + $0x289] sm:$0xff]
    %v527 = vld [vmem:[#allocation2 + $0x291] sm:$0xff]
    %v528 = vld [vmem:[#allocation2 + $0x2a1] sm:$0xff]
    %v529 = vld [vmem:[#allocation2 + $0x2a9] sm:$0xff]
    %v530 = vld [vmem:[#allocation2 + $0x2b9] sm:$0xff]
    %v531 = vld [vmem:[#allocation2 + $0x2c1] sm:$0xff]
    %v532 = vld [vmem:[#allocation2 + $0x2d1] sm:$0xff]
    %v533 = vld [vmem:[#allocation2 + $0x2d9] sm:$0xff]
    %v534 = vld [vmem:[#allocation2 + $0x2e9] sm:$0xff]
    %v535 = vld [vmem:[#allocation2 + $0x2f1] sm:$0xff]
    %v536 = vld [vmem:[#allocation2 + $0x301] sm:$0xff]
    %v537 = vld [vmem:[#allocation2 + $0x309] sm:$0xff]
    %v538 = vld [vmem:[#allocation2 + $0x319] sm:$0xff]
    %v539 = vld [vmem:[#allocation2 + $0x321] sm:$0xff]
    %v540 = vpack.c.bf16 %v476, %v476
    %v541 = vpack.c.bf16 %v477, %v477
    %v542 = vpack.c.bf16 %v478, %v478
    %v543 = vpack.c.bf16 %v479, %v479
    %v544 = vpack.c.bf16 %v480, %v480
    %v545 = vpack.c.bf16 %v481, %v481
    %v546 = vpack.c.bf16 %v482, %v482
    %v547 = vpack.c.bf16 %v483, %v483
    %v548 = vpack.c.bf16 %v484, %v484
    %v549 = vpack.c.bf16 %v485, %v485
    %v550 = vpack.c.bf16 %v486, %v486
    %v551 = vpack.c.bf16 %v487, %v487
    %v552 = vpack.c.bf16 %v488, %v488
    %v553 = vpack.c.bf16 %v489, %v489
    %v554 = vpack.c.bf16 %v490, %v490
    %v555 = vpack.c.bf16 %v491, %v491
    %v556 = vpack.c.bf16 %v492, %v492
    %v557 = vpack.c.bf16 %v493, %v493
    %v558 = vpack.c.bf16 %v494, %v494
    %v559 = vpack.c.bf16 %v495, %v495
    %v560 = vpack.c.bf16 %v496, %v496
    %v561 = vpack.c.bf16 %v497, %v497
    %v562 = vpack.c.bf16 %v498, %v498
    %v563 = vpack.c.bf16 %v499, %v499
    %v564 = vpack.c.bf16 %v500, %v500
    %v565 = vpack.c.bf16 %v501, %v501
    %v566 = vpack.c.bf16 %v502, %v502
    %v567 = vpack.c.bf16 %v503, %v503
    %v568 = vpack.c.bf16 %v504, %v504
    %v569 = vpack.c.bf16 %v505, %v505
    %v570 = vpack.c.bf16 %v506, %v506
    %v571 = vpack.c.bf16 %v507, %v507
    %v572 = vpack.c.bf16 %v508, %v508
    %v573 = vpack.c.bf16 %v509, %v509
    %v574 = vpack.c.bf16 %v510, %v510
    %v575 = vpack.c.bf16 %v511, %v511
    %v576 = vpack.c.bf16 %v512, %v512
    %v577 = vpack.c.bf16 %v513, %v513
    %v578 = vpack.c.bf16 %v514, %v514
    %v579 = vpack.c.bf16 %v515, %v515
    %v580 = vpack.c.bf16 %v516, %v516
    %v581 = vpack.c.bf16 %v517, %v517
    %v582 = vpack.c.bf16 %v518, %v518
    %v583 = vpack.c.bf16 %v519, %v519
    %v584 = vpack.c.bf16 %v520, %v520
    %v585 = vpack.c.bf16 %v521, %v521
    %v586 = vpack.c.bf16 %v522, %v522
    %v587 = vpack.c.bf16 %v523, %v523
    %v588 = vpack.c.bf16 %v524, %v524
    %v589 = vpack.c.bf16 %v525, %v525
    %v590 = vpack.c.bf16 %v526, %v526
    %v591 = vpack.c.bf16 %v527, %v527
    %v592 = vpack.c.bf16 %v528, %v528
    %v593 = vpack.c.bf16 %v529, %v529
    %v594 = vpack.c.bf16 %v530, %v530
    %v595 = vpack.c.bf16 %v531, %v531
    %v596 = vpack.c.bf16 %v532, %v532
    %v597 = vpack.c.bf16 %v533, %v533
    %v598 = vpack.c.bf16 %v534, %v534
    %v599 = vpack.c.bf16 %v535, %v535
    %v600 = vpack.c.bf16 %v536, %v536
    %v601 = vpack.c.bf16 %v537, %v537
    %v602 = vpack.c.bf16 %v538, %v538
    %v603 = vpack.c.bf16 %v539, %v539
    %604 = vst [vmem:[#allocation3 + $0x4] sm:$0xf] %v540
    %605 = vst [vmem:[#allocation3 + $0x28] sm:$0xf] %v541
    %606 = vst [vmem:[#allocation3 + $0x4c] sm:$0xf] %v542
    %607 = vst [vmem:[#allocation3 + $0x70] sm:$0xf] %v543
    %608 = vst [vmem:[#allocation3 + $0x94] sm:$0xf] %v544
    %609 = vst [vmem:[#allocation3 + $0xb8] sm:$0xf] %v545
    %610 = vst [vmem:[#allocation3 + $0xdc] sm:$0xf] %v546
    %611 = vst [vmem:[#allocation3 + $0x100] sm:$0xf] %v547
    %612 = vst [vmem:[#allocation3 + $0x124] sm:$0xf] %v548
    %613 = vst [vmem:[#allocation3 + $0x148] sm:$0xf] %v549
    %614 = vst [vmem:[#allocation3 + $0x16c] sm:$0xf] %v550
    %615 = vst [vmem:[#allocation3 + $0x190] sm:$0xf] %v551
    %616 = vst [vmem:[#allocation3 + $0x1b4] sm:$0xf] %v552
    %617 = vst [vmem:[#allocation3 + $0x1d8] sm:$0xf] %v553
    %618 = vst [vmem:[#allocation3 + $0x1fc] sm:$0xf] %v554
    %619 = vst [vmem:[#allocation3 + $0x220] sm:$0xf] %v555
    %620 = vst [vmem:[#allocation3 + $0x244] sm:$0xf] %v556
    %621 = vst [vmem:[#allocation3 + $0x268] sm:$0xf] %v557
    %622 = vst [vmem:[#allocation3 + $0x28c] sm:$0xf] %v558
    %623 = vst [vmem:[#allocation3 + $0x2b0] sm:$0xf] %v559
    %624 = vst [vmem:[#allocation3 + $0x2d4] sm:$0xf] %v560
    %625 = vst [vmem:[#allocation3 + $0x2f8] sm:$0xf] %v561
    %626 = vst [vmem:[#allocation3 + $0x31c] sm:$0xf] %v562
    %627 = vst [vmem:[#allocation3 + $0x340] sm:$0xf] %v563
    %628 = vst [vmem:[#allocation3 + $0x364] sm:$0xf] %v564
    %629 = vst [vmem:[#allocation3 + $0x388] sm:$0xf] %v565
    %630 = vst [vmem:[#allocation3 + $0x3ac] sm:$0xf] %v566
    %631 = vst [vmem:[#allocation3 + $0x3d0] sm:$0xf] %v567
    %632 = vst [vmem:[#allocation3 + $0x3f4] sm:$0xf] %v568
    %633 = vst [vmem:[#allocation3 + $0x418] sm:$0xf] %v569
    %634 = vst [vmem:[#allocation3 + $0x43c] sm:$0xf] %v570
    %635 = vst [vmem:[#allocation3 + $0x460] sm:$0xf] %v571
    %636 = vst [vmem:[#allocation3 + $0x484] sm:$0xf] %v572
    %637 = vst [vmem:[#allocation3 + $0x4a8] sm:$0xf] %v573
    %638 = vst [vmem:[#allocation3 + $0x4cc] sm:$0xf] %v574
    %639 = vst [vmem:[#allocation3 + $0x4f0] sm:$0xf] %v575
    %640 = vst [vmem:[#allocation3 + $0x514] sm:$0xf] %v576
    %641 = vst [vmem:[#allocation3 + $0x538] sm:$0xf] %v577
    %642 = vst [vmem:[#allocation3 + $0x55c] sm:$0xf] %v578
    %643 = vst [vmem:[#allocation3 + $0x580] sm:$0xf] %v579
    %644 = vst [vmem:[#allocation3 + $0x5a4] sm:$0xf] %v580
    %645 = vst [vmem:[#allocation3 + $0x5c8] sm:$0xf] %v581
    %646 = vst [vmem:[#allocation3 + $0x5ec] sm:$0xf] %v582
    %647 = vst [vmem:[#allocation3 + $0x610] sm:$0xf] %v583
    %648 = vst [vmem:[#allocation3 + $0x634] sm:$0xf] %v584
    %649 = vst [vmem:[#allocation3 + $0x658] sm:$0xf] %v585
    %650 = vst [vmem:[#allocation3 + $0x67c] sm:$0xf] %v586
    %651 = vst [vmem:[#allocation3 + $0x6a0] sm:$0xf] %v587
    %652 = vst [vmem:[#allocation3 + $0x6c4] sm:$0xf] %v588
    %653 = vst [vmem:[#allocation3 + $0x6e8] sm:$0xf] %v589
    %654 = vst [vmem:[#allocation3 + $0x70c] sm:$0xf] %v590
    %655 = vst [vmem:[#allocation3 + $0x730] sm:$0xf] %v591
    %656 = vst [vmem:[#allocation3 + $0x754] sm:$0xf] %v592
    %657 = vst [vmem:[#allocation3 + $0x778] sm:$0xf] %v593
    %658 = vst [vmem:[#allocation3 + $0x79c] sm:$0xf] %v594
    %659 = vst [vmem:[#allocation3 + $0x7c0] sm:$0xf] %v595
    %660 = vst [vmem:[#allocation3 + $0x7e4] sm:$0xf] %v596
    %661 = vst [vmem:[#allocation3 + $0x808] sm:$0xf] %v597
    %662 = vst [vmem:[#allocation3 + $0x82c] sm:$0xf] %v598
    %663 = vst [vmem:[#allocation3 + $0x850] sm:$0xf] %v599
    %664 = vst [vmem:[#allocation3 + $0x874] sm:$0xf] %v600
    %665 = vst [vmem:[#allocation3 + $0x898] sm:$0xf] %v601
    %666 = vst [vmem:[#allocation3 + $0x8bc] sm:$0xf] %v602
    %667 = vst [vmem:[#allocation3 + $0x8e0] sm:$0xf] %v603
    %v668 = vld [vmem:[#allocation2 + $0x2] sm:$0xff]
    %v669 = vld [vmem:[#allocation2 + $0xa] sm:$0xff]
    %v670 = vld [vmem:[#allocation2 + $0x1a] sm:$0xff]
    %v671 = vld [vmem:[#allocation2 + $0x22] sm:$0xff]
    %v672 = vld [vmem:[#allocation2 + $0x32] sm:$0xff]
    %v673 = vld [vmem:[#allocation2 + $0x3a] sm:$0xff]
    %v674 = vld [vmem:[#allocation2 + $0x4a] sm:$0xff]
    %v675 = vld [vmem:[#allocation2 + $0x52] sm:$0xff]
    %v676 = vld [vmem:[#allocation2 + $0x62] sm:$0xff]
    %v677 = vld [vmem:[#allocation2 + $0x6a] sm:$0xff]
    %v678 = vld [vmem:[#allocation2 + $0x7a] sm:$0xff]
    %v679 = vld [vmem:[#allocation2 + $0x82] sm:$0xff]
    %v680 = vld [vmem:[#allocation2 + $0x92] sm:$0xff]
    %v681 = vld [vmem:[#allocation2 + $0x9a] sm:$0xff]
    %v682 = vld [vmem:[#allocation2 + $0xaa] sm:$0xff]
    %v683 = vld [vmem:[#allocation2 + $0xb2] sm:$0xff]
    %v684 = vld [vmem:[#allocation2 + $0xc2] sm:$0xff]
    %v685 = vld [vmem:[#allocation2 + $0xca] sm:$0xff]
    %v686 = vld [vmem:[#allocation2 + $0xda] sm:$0xff]
    %v687 = vld [vmem:[#allocation2 + $0xe2] sm:$0xff]
    %v688 = vld [vmem:[#allocation2 + $0xf2] sm:$0xff]
    %v689 = vld [vmem:[#allocation2 + $0xfa] sm:$0xff]
    %v690 = vld [vmem:[#allocation2 + $0x10a] sm:$0xff]
    %v691 = vld [vmem:[#allocation2 + $0x112] sm:$0xff]
    %v692 = vld [vmem:[#allocation2 + $0x122] sm:$0xff]
    %v693 = vld [vmem:[#allocation2 + $0x12a] sm:$0xff]
    %v694 = vld [vmem:[#allocation2 + $0x13a] sm:$0xff]
    %v695 = vld [vmem:[#allocation2 + $0x142] sm:$0xff]
    %v696 = vld [vmem:[#allocation2 + $0x152] sm:$0xff]
    %v697 = vld [vmem:[#allocation2 + $0x15a] sm:$0xff]
    %v698 = vld [vmem:[#allocation2 + $0x16a] sm:$0xff]
    %v699 = vld [vmem:[#allocation2 + $0x172] sm:$0xff]
    %v700 = vld [vmem:[#allocation2 + $0x1b2] sm:$0xff]
    %v701 = vld [vmem:[#allocation2 + $0x1ba] sm:$0xff]
    %v702 = vld [vmem:[#allocation2 + $0x1ca] sm:$0xff]
    %v703 = vld [vmem:[#allocation2 + $0x1d2] sm:$0xff]
    %v704 = vld [vmem:[#allocation2 + $0x1e2] sm:$0xff]
    %v705 = vld [vmem:[#allocation2 + $0x1ea] sm:$0xff]
    %v706 = vld [vmem:[#allocation2 + $0x1fa] sm:$0xff]
    %v707 = vld [vmem:[#allocation2 + $0x202] sm:$0xff]
    %v708 = vld [vmem:[#allocation2 + $0x212] sm:$0xff]
    %v709 = vld [vmem:[#allocation2 + $0x21a] sm:$0xff]
    %v710 = vld [vmem:[#allocation2 + $0x22a] sm:$0xff]
    %v711 = vld [vmem:[#allocation2 + $0x232] sm:$0xff]
    %v712 = vld [vmem:[#allocation2 + $0x242] sm:$0xff]
    %v713 = vld [vmem:[#allocation2 + $0x24a] sm:$0xff]
    %v714 = vld [vmem:[#allocation2 + $0x25a] sm:$0xff]
    %v715 = vld [vmem:[#allocation2 + $0x262] sm:$0xff]
    %v716 = vld [vmem:[#allocation2 + $0x272] sm:$0xff]
    %v717 = vld [vmem:[#allocation2 + $0x27a] sm:$0xff]
    %v718 = vld [vmem:[#allocation2 + $0x28a] sm:$0xff]
    %v719 = vld [vmem:[#allocation2 + $0x292] sm:$0xff]
    %v720 = vld [vmem:[#allocation2 + $0x2a2] sm:$0xff]
    %v721 = vld [vmem:[#allocation2 + $0x2aa] sm:$0xff]
    %v722 = vld [vmem:[#allocation2 + $0x2ba] sm:$0xff]
    %v723 = vld [vmem:[#allocation2 + $0x2c2] sm:$0xff]
    %v724 = vld [vmem:[#allocation2 + $0x2d2] sm:$0xff]
    %v725 = vld [vmem:[#allocation2 + $0x2da] sm:$0xff]
    %v726 = vld [vmem:[#allocation2 + $0x2ea] sm:$0xff]
    %v727 = vld [vmem:[#allocation2 + $0x2f2] sm:$0xff]
    %v728 = vld [vmem:[#allocation2 + $0x302] sm:$0xff]
    %v729 = vld [vmem:[#allocation2 + $0x30a] sm:$0xff]
    %v730 = vld [vmem:[#allocation2 + $0x31a] sm:$0xff]
    %v731 = vld [vmem:[#allocation2 + $0x322] sm:$0xff]
    %v732 = vpack.c.bf16 %v668, %v668
    %v733 = vpack.c.bf16 %v669, %v669
    %v734 = vpack.c.bf16 %v670, %v670
    %v735 = vpack.c.bf16 %v671, %v671
    %v736 = vpack.c.bf16 %v672, %v672
    %v737 = vpack.c.bf16 %v673, %v673
    %v738 = vpack.c.bf16 %v674, %v674
    %v739 = vpack.c.bf16 %v675, %v675
    %v740 = vpack.c.bf16 %v676, %v676
    %v741 = vpack.c.bf16 %v677, %v677
    %v742 = vpack.c.bf16 %v678, %v678
    %v743 = vpack.c.bf16 %v679, %v679
    %v744 = vpack.c.bf16 %v680, %v680
    %v745 = vpack.c.bf16 %v681, %v681
    %v746 = vpack.c.bf16 %v682, %v682
    %v747 = vpack.c.bf16 %v683, %v683
    %v748 = vpack.c.bf16 %v684, %v684
    %v749 = vpack.c.bf16 %v685, %v685
    %v750 = vpack.c.bf16 %v686, %v686
    %v751 = vpack.c.bf16 %v687, %v687
    %v752 = vpack.c.bf16 %v688, %v688
    %v753 = vpack.c.bf16 %v689, %v689
    %v754 = vpack.c.bf16 %v690, %v690
    %v755 = vpack.c.bf16 %v691, %v691
    %v756 = vpack.c.bf16 %v692, %v692
    %v757 = vpack.c.bf16 %v693, %v693
    %v758 = vpack.c.bf16 %v694, %v694
    %v759 = vpack.c.bf16 %v695, %v695
    %v760 = vpack.c.bf16 %v696, %v696
    %v761 = vpack.c.bf16 %v697, %v697
    %v762 = vpack.c.bf16 %v698, %v698
    %v763 = vpack.c.bf16 %v699, %v699
    %v764 = vpack.c.bf16 %v700, %v700
    %v765 = vpack.c.bf16 %v701, %v701
    %v766 = vpack.c.bf16 %v702, %v702
    %v767 = vpack.c.bf16 %v703, %v703
    %v768 = vpack.c.bf16 %v704, %v704
    %v769 = vpack.c.bf16 %v705, %v705
    %v770 = vpack.c.bf16 %v706, %v706
    %v771 = vpack.c.bf16 %v707, %v707
    %v772 = vpack.c.bf16 %v708, %v708
    %v773 = vpack.c.bf16 %v709, %v709
    %v774 = vpack.c.bf16 %v710, %v710
    %v775 = vpack.c.bf16 %v711, %v711
    %v776 = vpack.c.bf16 %v712, %v712
    %v777 = vpack.c.bf16 %v713, %v713
    %v778 = vpack.c.bf16 %v714, %v714
    %v779 = vpack.c.bf16 %v715, %v715
    %v780 = vpack.c.bf16 %v716, %v716
    %v781 = vpack.c.bf16 %v717, %v717
    %v782 = vpack.c.bf16 %v718, %v718
    %v783 = vpack.c.bf16 %v719, %v719
    %v784 = vpack.c.bf16 %v720, %v720
    %v785 = vpack.c.bf16 %v721, %v721
    %v786 = vpack.c.bf16 %v722, %v722
    %v787 = vpack.c.bf16 %v723, %v723
    %v788 = vpack.c.bf16 %v724, %v724
    %v789 = vpack.c.bf16 %v725, %v725
    %v790 = vpack.c.bf16 %v726, %v726
    %v791 = vpack.c.bf16 %v727, %v727
    %v792 = vpack.c.bf16 %v728, %v728
    %v793 = vpack.c.bf16 %v729, %v729
    %v794 = vpack.c.bf16 %v730, %v730
    %v795 = vpack.c.bf16 %v731, %v731
    %796 = vst [vmem:[#allocation3 + $0x8] sm:$0xf] %v732
    %797 = vst [vmem:[#allocation3 + $0x2c] sm:$0xf] %v733
    %798 = vst [vmem:[#allocation3 + $0x50] sm:$0xf] %v734
    %799 = vst [vmem:[#allocation3 + $0x74] sm:$0xf] %v735
    %800 = vst [vmem:[#allocation3 + $0x98] sm:$0xf] %v736
    %801 = vst [vmem:[#allocation3 + $0xbc] sm:$0xf] %v737
    %802 = vst [vmem:[#allocation3 + $0xe0] sm:$0xf] %v738
    %803 = vst [vmem:[#allocation3 + $0x104] sm:$0xf] %v739
    %804 = vst [vmem:[#allocation3 + $0x128] sm:$0xf] %v740
    %805 = vst [vmem:[#allocation3 + $0x14c] sm:$0xf] %v741
    %806 = vst [vmem:[#allocation3 + $0x170] sm:$0xf] %v742
    %807 = vst [vmem:[#allocation3 + $0x194] sm:$0xf] %v743
    %808 = vst [vmem:[#allocation3 + $0x1b8] sm:$0xf] %v744
    %809 = vst [vmem:[#allocation3 + $0x1dc] sm:$0xf] %v745
    %810 = vst [vmem:[#allocation3 + $0x200] sm:$0xf] %v746
    %811 = vst [vmem:[#allocation3 + $0x224] sm:$0xf] %v747
    %812 = vst [vmem:[#allocation3 + $0x248] sm:$0xf] %v748
    %813 = vst [vmem:[#allocation3 + $0x26c] sm:$0xf] %v749
    %814 = vst [vmem:[#allocation3 + $0x290] sm:$0xf] %v750
    %815 = vst [vmem:[#allocation3 + $0x2b4] sm:$0xf] %v751
    %816 = vst [vmem:[#allocation3 + $0x2d8] sm:$0xf] %v752
    %817 = vst [vmem:[#allocation3 + $0x2fc] sm:$0xf] %v753
    %818 = vst [vmem:[#allocation3 + $0x320] sm:$0xf] %v754
    %819 = vst [vmem:[#allocation3 + $0x344] sm:$0xf] %v755
    %820 = vst [vmem:[#allocation3 + $0x368] sm:$0xf] %v756
    %821 = vst [vmem:[#allocation3 + $0x38c] sm:$0xf] %v757
    %822 = vst [vmem:[#allocation3 + $0x3b0] sm:$0xf] %v758
    %823 = vst [vmem:[#allocation3 + $0x3d4] sm:$0xf] %v759
    %824 = vst [vmem:[#allocation3 + $0x3f8] sm:$0xf] %v760
    %825 = vst [vmem:[#allocation3 + $0x41c] sm:$0xf] %v761
    %826 = vst [vmem:[#allocation3 + $0x440] sm:$0xf] %v762
    %827 = vst [vmem:[#allocation3 + $0x464] sm:$0xf] %v763
    %828 = vst [vmem:[#allocation3 + $0x488] sm:$0xf] %v764
    %829 = vst [vmem:[#allocation3 + $0x4ac] sm:$0xf] %v765
    %830 = vst [vmem:[#allocation3 + $0x4d0] sm:$0xf] %v766
    %831 = vst [vmem:[#allocation3 + $0x4f4] sm:$0xf] %v767
    %832 = vst [vmem:[#allocation3 + $0x518] sm:$0xf] %v768
    %833 = vst [vmem:[#allocation3 + $0x53c] sm:$0xf] %v769
    %834 = vst [vmem:[#allocation3 + $0x560] sm:$0xf] %v770
    %835 = vst [vmem:[#allocation3 + $0x584] sm:$0xf] %v771
    %836 = vst [vmem:[#allocation3 + $0x5a8] sm:$0xf] %v772
    %837 = vst [vmem:[#allocation3 + $0x5cc] sm:$0xf] %v773
    %838 = vst [vmem:[#allocation3 + $0x5f0] sm:$0xf] %v774
    %839 = vst [vmem:[#allocation3 + $0x614] sm:$0xf] %v775
    %840 = vst [vmem:[#allocation3 + $0x638] sm:$0xf] %v776
    %841 = vst [vmem:[#allocation3 + $0x65c] sm:$0xf] %v777
    %842 = vst [vmem:[#allocation3 + $0x680] sm:$0xf] %v778
    %843 = vst [vmem:[#allocation3 + $0x6a4] sm:$0xf] %v779
    %844 = vst [vmem:[#allocation3 + $0x6c8] sm:$0xf] %v780
    %845 = vst [vmem:[#allocation3 + $0x6ec] sm:$0xf] %v781
    %846 = vst [vmem:[#allocation3 + $0x710] sm:$0xf] %v782
    %847 = vst [vmem:[#allocation3 + $0x734] sm:$0xf] %v783
    %848 = vst [vmem:[#allocation3 + $0x758] sm:$0xf] %v784
    %849 = vst [vmem:[#allocation3 + $0x77c] sm:$0xf] %v785
    %850 = vst [vmem:[#allocation3 + $0x7a0] sm:$0xf] %v786
    %851 = vst [vmem:[#allocation3 + $0x7c4] sm:$0xf] %v787
    %852 = vst [vmem:[#allocation3 + $0x7e8] sm:$0xf] %v788
    %853 = vst [vmem:[#allocation3 + $0x80c] sm:$0xf] %v789
    %854 = vst [vmem:[#allocation3 + $0x830] sm:$0xf] %v790
    %855 = vst [vmem:[#allocation3 + $0x854] sm:$0xf] %v791
    %856 = vst [vmem:[#allocation3 + $0x878] sm:$0xf] %v792
    %857 = vst [vmem:[#allocation3 + $0x89c] sm:$0xf] %v793
    %858 = vst [vmem:[#allocation3 + $0x8c0] sm:$0xf] %v794
    %859 = vst [vmem:[#allocation3 + $0x8e4] sm:$0xf] %v795
    %v860 = vld [vmem:[%s219] sm:$0xff]
    %v861 = vld [vmem:[%s219 + $0x8] sm:$0xff]
    %v862 = vld [vmem:[%s219 + $0x18] sm:$0xff]
    %v863 = vld [vmem:[%s219 + $0x20] sm:$0xff]
    %v864 = vld [vmem:[%s219 + $0x30] sm:$0xff]
    %v865 = vld [vmem:[%s219 + $0x38] sm:$0xff]
    %v866 = vld [vmem:[%s219 + $0x48] sm:$0xff]
    %v867 = vld [vmem:[%s219 + $0x50] sm:$0xff]
    %v868 = vld [vmem:[%s219 + $0x60] sm:$0xff]
    %v869 = vld [vmem:[%s219 + $0x68] sm:$0xff]
    %v870 = vld [vmem:[%s219 + $0x78] sm:$0xff]
    %v871 = vld [vmem:[%s219 + $0x80] sm:$0xff]
    %v872 = vld [vmem:[%s219 + $0x90] sm:$0xff]
    %v873 = vld [vmem:[%s219 + $0x98] sm:$0xff]
    %v874 = vld [vmem:[%s219 + $0xa8] sm:$0xff]
    %v875 = vld [vmem:[%s219 + $0xb0] sm:$0xff]
    %v876 = vld [vmem:[%s219 + $0xc0] sm:$0xff]
    %v877 = vld [vmem:[%s219 + $0xc8] sm:$0xff]
    %v878 = vld [vmem:[%s219 + $0xd8] sm:$0xff]
    %v879 = vld [vmem:[%s219 + $0xe0] sm:$0xff]
    %v880 = vld [vmem:[%s219 + $0xf0] sm:$0xff]
    %v881 = vld [vmem:[%s219 + $0xf8] sm:$0xff]
    %v882 = vld [vmem:[%s219 + $0x108] sm:$0xff]
    %v883 = vld [vmem:[%s219 + $0x110] sm:$0xff]
    %v884 = vld [vmem:[%s219 + $0x120] sm:$0xff]
    %v885 = vld [vmem:[%s219 + $0x128] sm:$0xff]
    %v886 = vld [vmem:[%s219 + $0x138] sm:$0xff]
    %v887 = vld [vmem:[%s219 + $0x140] sm:$0xff]
    %v888 = vld [vmem:[%s219 + $0x150] sm:$0xff]
    %v889 = vld [vmem:[%s219 + $0x158] sm:$0xff]
    %v890 = vld [vmem:[%s219 + $0x168] sm:$0xff]
    %v891 = vld [vmem:[%s219 + $0x170] sm:$0xff]
    %v892 = vld [vmem:[%s219 + $0x1b0] sm:$0xff]
    %v893 = vld [vmem:[%s219 + $0x1b8] sm:$0xff]
    %v894 = vld [vmem:[%s219 + $0x1c8] sm:$0xff]
    %v895 = vld [vmem:[%s219 + $0x1d0] sm:$0xff]
    %v896 = vld [vmem:[%s219 + $0x1e0] sm:$0xff]
    %v897 = vld [vmem:[%s219 + $0x1e8] sm:$0xff]
    %v898 = vld [vmem:[%s219 + $0x1f8] sm:$0xff]
    %v899 = vld [vmem:[%s219 + $0x200] sm:$0xff]
    %v900 = vld [vmem:[%s219 + $0x210] sm:$0xff]
    %v901 = vld [vmem:[%s219 + $0x218] sm:$0xff]
    %v902 = vld [vmem:[%s219 + $0x228] sm:$0xff]
    %v903 = vld [vmem:[%s219 + $0x230] sm:$0xff]
    %v904 = vld [vmem:[%s219 + $0x240] sm:$0xff]
    %v905 = vld [vmem:[%s219 + $0x248] sm:$0xff]
    %v906 = vld [vmem:[%s219 + $0x258] sm:$0xff]
    %v907 = vld [vmem:[%s219 + $0x260] sm:$0xff]
    %v908 = vld [vmem:[%s219 + $0x270] sm:$0xff]
    %v909 = vld [vmem:[%s219 + $0x278] sm:$0xff]
    %v910 = vld [vmem:[%s219 + $0x288] sm:$0xff]
    %v911 = vld [vmem:[%s219 + $0x290] sm:$0xff]
    %v912 = vld [vmem:[%s219 + $0x2a0] sm:$0xff]
    %v913 = vld [vmem:[%s219 + $0x2a8] sm:$0xff]
    %v914 = vld [vmem:[%s219 + $0x2b8] sm:$0xff]
    %v915 = vld [vmem:[%s219 + $0x2c0] sm:$0xff]
    %v916 = vld [vmem:[%s219 + $0x2d0] sm:$0xff]
    %v917 = vld [vmem:[%s219 + $0x2d8] sm:$0xff]
    %v918 = vld [vmem:[%s219 + $0x2e8] sm:$0xff]
    %v919 = vld [vmem:[%s219 + $0x2f0] sm:$0xff]
    %v920 = vld [vmem:[%s219 + $0x300] sm:$0xff]
    %v921 = vld [vmem:[%s219 + $0x308] sm:$0xff]
    %v922 = vld [vmem:[%s219 + $0x318] sm:$0xff]
    %v923 = vld [vmem:[%s219 + $0x320] sm:$0xff]
    %v924 = vpack.c.bf16 %v860, %v860
    %v925 = vpack.c.bf16 %v861, %v861
    %v926 = vpack.c.bf16 %v862, %v862
    %v927 = vpack.c.bf16 %v863, %v863
    %v928 = vpack.c.bf16 %v864, %v864
    %v929 = vpack.c.bf16 %v865, %v865
    %v930 = vpack.c.bf16 %v866, %v866
    %v931 = vpack.c.bf16 %v867, %v867
    %v932 = vpack.c.bf16 %v868, %v868
    %v933 = vpack.c.bf16 %v869, %v869
    %v934 = vpack.c.bf16 %v870, %v870
    %v935 = vpack.c.bf16 %v871, %v871
    %v936 = vpack.c.bf16 %v872, %v872
    %v937 = vpack.c.bf16 %v873, %v873
    %v938 = vpack.c.bf16 %v874, %v874
    %v939 = vpack.c.bf16 %v875, %v875
    %v940 = vpack.c.bf16 %v876, %v876
    %v941 = vpack.c.bf16 %v877, %v877
    %v942 = vpack.c.bf16 %v878, %v878
    %v943 = vpack.c.bf16 %v879, %v879
    %v944 = vpack.c.bf16 %v880, %v880
    %v945 = vpack.c.bf16 %v881, %v881
    %v946 = vpack.c.bf16 %v882, %v882
    %v947 = vpack.c.bf16 %v883, %v883
    %v948 = vpack.c.bf16 %v884, %v884
    %v949 = vpack.c.bf16 %v885, %v885
    %v950 = vpack.c.bf16 %v886, %v886
    %v951 = vpack.c.bf16 %v887, %v887
    %v952 = vpack.c.bf16 %v888, %v888
    %v953 = vpack.c.bf16 %v889, %v889
    %v954 = vpack.c.bf16 %v890, %v890
    %v955 = vpack.c.bf16 %v891, %v891
    %v956 = vpack.c.bf16 %v892, %v892
    %v957 = vpack.c.bf16 %v893, %v893
    %v958 = vpack.c.bf16 %v894, %v894
    %v959 = vpack.c.bf16 %v895, %v895
    %v960 = vpack.c.bf16 %v896, %v896
    %v961 = vpack.c.bf16 %v897, %v897
    %v962 = vpack.c.bf16 %v898, %v898
    %v963 = vpack.c.bf16 %v899, %v899
    %v964 = vpack.c.bf16 %v900, %v900
    %v965 = vpack.c.bf16 %v901, %v901
    %v966 = vpack.c.bf16 %v902, %v902
    %v967 = vpack.c.bf16 %v903, %v903
    %v968 = vpack.c.bf16 %v904, %v904
    %v969 = vpack.c.bf16 %v905, %v905
    %v970 = vpack.c.bf16 %v906, %v906
    %v971 = vpack.c.bf16 %v907, %v907
    %v972 = vpack.c.bf16 %v908, %v908
    %v973 = vpack.c.bf16 %v909, %v909
    %v974 = vpack.c.bf16 %v910, %v910
    %v975 = vpack.c.bf16 %v911, %v911
    %v976 = vpack.c.bf16 %v912, %v912
    %v977 = vpack.c.bf16 %v913, %v913
    %v978 = vpack.c.bf16 %v914, %v914
    %v979 = vpack.c.bf16 %v915, %v915
    %v980 = vpack.c.bf16 %v916, %v916
    %v981 = vpack.c.bf16 %v917, %v917
    %v982 = vpack.c.bf16 %v918, %v918
    %v983 = vpack.c.bf16 %v919, %v919
    %v984 = vpack.c.bf16 %v920, %v920
    %v985 = vpack.c.bf16 %v921, %v921
    %v986 = vpack.c.bf16 %v922, %v922
    %v987 = vpack.c.bf16 %v923, %v923
    %988 = vst [vmem:[#allocation3 + $0xc] sm:$0xf] %v924
    %989 = vst [vmem:[#allocation3 + $0x30] sm:$0xf] %v925
    %990 = vst [vmem:[#allocation3 + $0x54] sm:$0xf] %v926
    %991 = vst [vmem:[#allocation3 + $0x78] sm:$0xf] %v927
    %992 = vst [vmem:[#allocation3 + $0x9c] sm:$0xf] %v928
    %993 = vst [vmem:[#allocation3 + $0xc0] sm:$0xf] %v929
    %994 = vst [vmem:[#allocation3 + $0xe4] sm:$0xf] %v930
    %995 = vst [vmem:[#allocation3 + $0x108] sm:$0xf] %v931
    %996 = vst [vmem:[#allocation3 + $0x12c] sm:$0xf] %v932
    %997 = vst [vmem:[#allocation3 + $0x150] sm:$0xf] %v933
    %998 = vst [vmem:[#allocation3 + $0x174] sm:$0xf] %v934
    %999 = vst [vmem:[#allocation3 + $0x198] sm:$0xf] %v935
    %1000 = vst [vmem:[#allocation3 + $0x1bc] sm:$0xf] %v936
    %1001 = vst [vmem:[#allocation3 + $0x1e0] sm:$0xf] %v937
    %1002 = vst [vmem:[#allocation3 + $0x204] sm:$0xf] %v938
    %1003 = vst [vmem:[#allocation3 + $0x228] sm:$0xf] %v939
    %1004 = vst [vmem:[#allocation3 + $0x24c] sm:$0xf] %v940
    %1005 = vst [vmem:[#allocation3 + $0x270] sm:$0xf] %v941
    %1006 = vst [vmem:[#allocation3 + $0x294] sm:$0xf] %v942
    %1007 = vst [vmem:[#allocation3 + $0x2b8] sm:$0xf] %v943
    %1008 = vst [vmem:[#allocation3 + $0x2dc] sm:$0xf] %v944
    %1009 = vst [vmem:[#allocation3 + $0x300] sm:$0xf] %v945
    %1010 = vst [vmem:[#allocation3 + $0x324] sm:$0xf] %v946
    %1011 = vst [vmem:[#allocation3 + $0x348] sm:$0xf] %v947
    %1012 = vst [vmem:[#allocation3 + $0x36c] sm:$0xf] %v948
    %1013 = vst [vmem:[#allocation3 + $0x390] sm:$0xf] %v949
    %1014 = vst [vmem:[#allocation3 + $0x3b4] sm:$0xf] %v950
    %1015 = vst [vmem:[#allocation3 + $0x3d8] sm:$0xf] %v951
    %1016 = vst [vmem:[#allocation3 + $0x3fc] sm:$0xf] %v952
    %1017 = vst [vmem:[#allocation3 + $0x420] sm:$0xf] %v953
    %1018 = vst [vmem:[#allocation3 + $0x444] sm:$0xf] %v954
    %1019 = vst [vmem:[#allocation3 + $0x468] sm:$0xf] %v955
    %1020 = vst [vmem:[#allocation3 + $0x48c] sm:$0xf] %v956
    %1021 = vst [vmem:[#allocation3 + $0x4b0] sm:$0xf] %v957
    %1022 = vst [vmem:[#allocation3 + $0x4d4] sm:$0xf] %v958
    %1023 = vst [vmem:[#allocation3 + $0x4f8] sm:$0xf] %v959
    %1024 = vst [vmem:[#allocation3 + $0x51c] sm:$0xf] %v960
    %1025 = vst [vmem:[#allocation3 + $0x540] sm:$0xf] %v961
    %1026 = vst [vmem:[#allocation3 + $0x564] sm:$0xf] %v962
    %1027 = vst [vmem:[#allocation3 + $0x588] sm:$0xf] %v963
    %1028 = vst [vmem:[#allocation3 + $0x5ac] sm:$0xf] %v964
    %1029 = vst [vmem:[#allocation3 + $0x5d0] sm:$0xf] %v965
    %1030 = vst [vmem:[#allocation3 + $0x5f4] sm:$0xf] %v966
    %1031 = vst [vmem:[#allocation3 + $0x618] sm:$0xf] %v967
    %1032 = vst [vmem:[#allocation3 + $0x63c] sm:$0xf] %v968
    %1033 = vst [vmem:[#allocation3 + $0x660] sm:$0xf] %v969
    %1034 = vst [vmem:[#allocation3 + $0x684] sm:$0xf] %v970
    %1035 = vst [vmem:[#allocation3 + $0x6a8] sm:$0xf] %v971
    %1036 = vst [vmem:[#allocation3 + $0x6cc] sm:$0xf] %v972
    %1037 = vst [vmem:[#allocation3 + $0x6f0] sm:$0xf] %v973
    %1038 = vst [vmem:[#allocation3 + $0x714] sm:$0xf] %v974
    %1039 = vst [vmem:[#allocation3 + $0x738] sm:$0xf] %v975
    %1040 = vst [vmem:[#allocation3 + $0x75c] sm:$0xf] %v976
    %1041 = vst [vmem:[#allocation3 + $0x780] sm:$0xf] %v977
    %1042 = vst [vmem:[#allocation3 + $0x7a4] sm:$0xf] %v978
    %1043 = vst [vmem:[#allocation3 + $0x7c8] sm:$0xf] %v979
    %1044 = vst [vmem:[#allocation3 + $0x7ec] sm:$0xf] %v980
    %1045 = vst [vmem:[#allocation3 + $0x810] sm:$0xf] %v981
    %1046 = vst [vmem:[#allocation3 + $0x834] sm:$0xf] %v982
    %1047 = vst [vmem:[#allocation3 + $0x858] sm:$0xf] %v983
    %1048 = vst [vmem:[#allocation3 + $0x87c] sm:$0xf] %v984
    %1049 = vst [vmem:[#allocation3 + $0x8a0] sm:$0xf] %v985
    %1050 = vst [vmem:[#allocation3 + $0x8c4] sm:$0xf] %v986
    %1051 = vst [vmem:[#allocation3 + $0x8e8] sm:$0xf] %v987
    %v1052 = vld [vmem:[%s219 + $0x1] sm:$0xff]
    %v1053 = vld [vmem:[%s219 + $0x9] sm:$0xff]
    %v1054 = vld [vmem:[%s219 + $0x19] sm:$0xff]
    %v1055 = vld [vmem:[%s219 + $0x21] sm:$0xff]
    %v1056 = vld [vmem:[%s219 + $0x31] sm:$0xff]
    %v1057 = vld [vmem:[%s219 + $0x39] sm:$0xff]
    %v1058 = vld [vmem:[%s219 + $0x49] sm:$0xff]
    %v1059 = vld [vmem:[%s219 + $0x51] sm:$0xff]
    %v1060 = vld [vmem:[%s219 + $0x61] sm:$0xff]
    %v1061 = vld [vmem:[%s219 + $0x69] sm:$0xff]
    %v1062 = vld [vmem:[%s219 + $0x79] sm:$0xff]
    %v1063 = vld [vmem:[%s219 + $0x81] sm:$0xff]
    %v1064 = vld [vmem:[%s219 + $0x91] sm:$0xff]
    %v1065 = vld [vmem:[%s219 + $0x99] sm:$0xff]
    %v1066 = vld [vmem:[%s219 + $0xa9] sm:$0xff]
    %v1067 = vld [vmem:[%s219 + $0xb1] sm:$0xff]
    %v1068 = vld [vmem:[%s219 + $0xc1] sm:$0xff]
    %v1069 = vld [vmem:[%s219 + $0xc9] sm:$0xff]
    %v1070 = vld [vmem:[%s219 + $0xd9] sm:$0xff]
    %v1071 = vld [vmem:[%s219 + $0xe1] sm:$0xff]
    %v1072 = vld [vmem:[%s219 + $0xf1] sm:$0xff]
    %v1073 = vld [vmem:[%s219 + $0xf9] sm:$0xff]
    %v1074 = vld [vmem:[%s219 + $0x109] sm:$0xff]
    %v1075 = vld [vmem:[%s219 + $0x111] sm:$0xff]
    %v1076 = vld [vmem:[%s219 + $0x121] sm:$0xff]
    %v1077 = vld [vmem:[%s219 + $0x129] sm:$0xff]
    %v1078 = vld [vmem:[%s219 + $0x139] sm:$0xff]
    %v1079 = vld [vmem:[%s219 + $0x141] sm:$0xff]
    %v1080 = vld [vmem:[%s219 + $0x151] sm:$0xff]
    %v1081 = vld [vmem:[%s219 + $0x159] sm:$0xff]
    %v1082 = vld [vmem:[%s219 + $0x169] sm:$0xff]
    %v1083 = vld [vmem:[%s219 + $0x171] sm:$0xff]
    %v1084 = vld [vmem:[%s219 + $0x1b1] sm:$0xff]
    %v1085 = vld [vmem:[%s219 + $0x1b9] sm:$0xff]
    %v1086 = vld [vmem:[%s219 + $0x1c9] sm:$0xff]
    %v1087 = vld [vmem:[%s219 + $0x1d1] sm:$0xff]
    %v1088 = vld [vmem:[%s219 + $0x1e1] sm:$0xff]
    %v1089 = vld [vmem:[%s219 + $0x1e9] sm:$0xff]
    %v1090 = vld [vmem:[%s219 + $0x1f9] sm:$0xff]
    %v1091 = vld [vmem:[%s219 + $0x201] sm:$0xff]
    %v1092 = vld [vmem:[%s219 + $0x211] sm:$0xff]
    %v1093 = vld [vmem:[%s219 + $0x219] sm:$0xff]
    %v1094 = vld [vmem:[%s219 + $0x229] sm:$0xff]
    %v1095 = vld [vmem:[%s219 + $0x231] sm:$0xff]
    %v1096 = vld [vmem:[%s219 + $0x241] sm:$0xff]
    %v1097 = vld [vmem:[%s219 + $0x249] sm:$0xff]
    %v1098 = vld [vmem:[%s219 + $0x259] sm:$0xff]
    %v1099 = vld [vmem:[%s219 + $0x261] sm:$0xff]
    %v1100 = vld [vmem:[%s219 + $0x271] sm:$0xff]
    %v1101 = vld [vmem:[%s219 + $0x279] sm:$0xff]
    %v1102 = vld [vmem:[%s219 + $0x289] sm:$0xff]
    %v1103 = vld [vmem:[%s219 + $0x291] sm:$0xff]
    %v1104 = vld [vmem:[%s219 + $0x2a1] sm:$0xff]
    %v1105 = vld [vmem:[%s219 + $0x2a9] sm:$0xff]
    %v1106 = vld [vmem:[%s219 + $0x2b9] sm:$0xff]
    %v1107 = vld [vmem:[%s219 + $0x2c1] sm:$0xff]
    %v1108 = vld [vmem:[%s219 + $0x2d1] sm:$0xff]
    %v1109 = vld [vmem:[%s219 + $0x2d9] sm:$0xff]
    %v1110 = vld [vmem:[%s219 + $0x2e9] sm:$0xff]
    %v1111 = vld [vmem:[%s219 + $0x2f1] sm:$0xff]
    %v1112 = vld [vmem:[%s219 + $0x301] sm:$0xff]
    %v1113 = vld [vmem:[%s219 + $0x309] sm:$0xff]
    %v1114 = vld [vmem:[%s219 + $0x319] sm:$0xff]
    %v1115 = vld [vmem:[%s219 + $0x321] sm:$0xff]
    %v1116 = vpack.c.bf16 %v1052, %v1052
    %v1117 = vpack.c.bf16 %v1053, %v1053
    %v1118 = vpack.c.bf16 %v1054, %v1054
    %v1119 = vpack.c.bf16 %v1055, %v1055
    %v1120 = vpack.c.bf16 %v1056, %v1056
    %v1121 = vpack.c.bf16 %v1057, %v1057
    %v1122 = vpack.c.bf16 %v1058, %v1058
    %v1123 = vpack.c.bf16 %v1059, %v1059
    %v1124 = vpack.c.bf16 %v1060, %v1060
    %v1125 = vpack.c.bf16 %v1061, %v1061
    %v1126 = vpack.c.bf16 %v1062, %v1062
    %v1127 = vpack.c.bf16 %v1063, %v1063
    %v1128 = vpack.c.bf16 %v1064, %v1064
    %v1129 = vpack.c.bf16 %v1065, %v1065
    %v1130 = vpack.c.bf16 %v1066, %v1066
    %v1131 = vpack.c.bf16 %v1067, %v1067
    %v1132 = vpack.c.bf16 %v1068, %v1068
    %v1133 = vpack.c.bf16 %v1069, %v1069
    %v1134 = vpack.c.bf16 %v1070, %v1070
    %v1135 = vpack.c.bf16 %v1071, %v1071
    %v1136 = vpack.c.bf16 %v1072, %v1072
    %v1137 = vpack.c.bf16 %v1073, %v1073
    %v1138 = vpack.c.bf16 %v1074, %v1074
    %v1139 = vpack.c.bf16 %v1075, %v1075
    %v1140 = vpack.c.bf16 %v1076, %v1076
    %v1141 = vpack.c.bf16 %v1077, %v1077
    %v1142 = vpack.c.bf16 %v1078, %v1078
    %v1143 = vpack.c.bf16 %v1079, %v1079
    %v1144 = vpack.c.bf16 %v1080, %v1080
    %v1145 = vpack.c.bf16 %v1081, %v1081
    %v1146 = vpack.c.bf16 %v1082, %v1082
    %v1147 = vpack.c.bf16 %v1083, %v1083
    %v1148 = vpack.c.bf16 %v1084, %v1084
    %v1149 = vpack.c.bf16 %v1085, %v1085
    %v1150 = vpack.c.bf16 %v1086, %v1086
    %v1151 = vpack.c.bf16 %v1087, %v1087
    %v1152 = vpack.c.bf16 %v1088, %v1088
    %v1153 = vpack.c.bf16 %v1089, %v1089
    %v1154 = vpack.c.bf16 %v1090, %v1090
    %v1155 = vpack.c.bf16 %v1091, %v1091
    %v1156 = vpack.c.bf16 %v1092, %v1092
    %v1157 = vpack.c.bf16 %v1093, %v1093
    %v1158 = vpack.c.bf16 %v1094, %v1094
    %v1159 = vpack.c.bf16 %v1095, %v1095
    %v1160 = vpack.c.bf16 %v1096, %v1096
    %v1161 = vpack.c.bf16 %v1097, %v1097
    %v1162 = vpack.c.bf16 %v1098, %v1098
    %v1163 = vpack.c.bf16 %v1099, %v1099
    %v1164 = vpack.c.bf16 %v1100, %v1100
    %v1165 = vpack.c.bf16 %v1101, %v1101
    %v1166 = vpack.c.bf16 %v1102, %v1102
    %v1167 = vpack.c.bf16 %v1103, %v1103
    %v1168 = vpack.c.bf16 %v1104, %v1104
    %v1169 = vpack.c.bf16 %v1105, %v1105
    %v1170 = vpack.c.bf16 %v1106, %v1106
    %v1171 = vpack.c.bf16 %v1107, %v1107
    %v1172 = vpack.c.bf16 %v1108, %v1108
    %v1173 = vpack.c.bf16 %v1109, %v1109
    %v1174 = vpack.c.bf16 %v1110, %v1110
    %v1175 = vpack.c.bf16 %v1111, %v1111
    %v1176 = vpack.c.bf16 %v1112, %v1112
    %v1177 = vpack.c.bf16 %v1113, %v1113
    %v1178 = vpack.c.bf16 %v1114, %v1114
    %v1179 = vpack.c.bf16 %v1115, %v1115
    %1180 = vst [vmem:[#allocation3 + $0x10] sm:$0xf] %v1116
    %1181 = vst [vmem:[#allocation3 + $0x34] sm:$0xf] %v1117
    %1182 = vst [vmem:[#allocation3 + $0x58] sm:$0xf] %v1118
    %1183 = vst [vmem:[#allocation3 + $0x7c] sm:$0xf] %v1119
    %1184 = vst [vmem:[#allocation3 + $0xa0] sm:$0xf] %v1120
    %1185 = vst [vmem:[#allocation3 + $0xc4] sm:$0xf] %v1121
    %1186 = vst [vmem:[#allocation3 + $0xe8] sm:$0xf] %v1122
    %1187 = vst [vmem:[#allocation3 + $0x10c] sm:$0xf] %v1123
    %1188 = vst [vmem:[#allocation3 + $0x130] sm:$0xf] %v1124
    %1189 = vst [vmem:[#allocation3 + $0x154] sm:$0xf] %v1125
    %1190 = vst [vmem:[#allocation3 + $0x178] sm:$0xf] %v1126
    %1191 = vst [vmem:[#allocation3 + $0x19c] sm:$0xf] %v1127
    %1192 = vst [vmem:[#allocation3 + $0x1c0] sm:$0xf] %v1128
    %1193 = vst [vmem:[#allocation3 + $0x1e4] sm:$0xf] %v1129
    %1194 = vst [vmem:[#allocation3 + $0x208] sm:$0xf] %v1130
    %1195 = vst [vmem:[#allocation3 + $0x22c] sm:$0xf] %v1131
    %1196 = vst [vmem:[#allocation3 + $0x250] sm:$0xf] %v1132
    %1197 = vst [vmem:[#allocation3 + $0x274] sm:$0xf] %v1133
    %1198 = vst [vmem:[#allocation3 + $0x298] sm:$0xf] %v1134
    %1199 = vst [vmem:[#allocation3 + $0x2bc] sm:$0xf] %v1135
    %1200 = vst [vmem:[#allocation3 + $0x2e0] sm:$0xf] %v1136
    %1201 = vst [vmem:[#allocation3 + $0x304] sm:$0xf] %v1137
    %1202 = vst [vmem:[#allocation3 + $0x328] sm:$0xf] %v1138
    %1203 = vst [vmem:[#allocation3 + $0x34c] sm:$0xf] %v1139
    %1204 = vst [vmem:[#allocation3 + $0x370] sm:$0xf] %v1140
    %1205 = vst [vmem:[#allocation3 + $0x394] sm:$0xf] %v1141
    %1206 = vst [vmem:[#allocation3 + $0x3b8] sm:$0xf] %v1142
    %1207 = vst [vmem:[#allocation3 + $0x3dc] sm:$0xf] %v1143
    %1208 = vst [vmem:[#allocation3 + $0x400] sm:$0xf] %v1144
    %1209 = vst [vmem:[#allocation3 + $0x424] sm:$0xf] %v1145
    %1210 = vst [vmem:[#allocation3 + $0x448] sm:$0xf] %v1146
    %1211 = vst [vmem:[#allocation3 + $0x46c] sm:$0xf] %v1147
    %1212 = vst [vmem:[#allocation3 + $0x490] sm:$0xf] %v1148
    %1213 = vst [vmem:[#allocation3 + $0x4b4] sm:$0xf] %v1149
    %1214 = vst [vmem:[#allocation3 + $0x4d8] sm:$0xf] %v1150
    %1215 = vst [vmem:[#allocation3 + $0x4fc] sm:$0xf] %v1151
    %1216 = vst [vmem:[#allocation3 + $0x520] sm:$0xf] %v1152
    %1217 = vst [vmem:[#allocation3 + $0x544] sm:$0xf] %v1153
    %1218 = vst [vmem:[#allocation3 + $0x568] sm:$0xf] %v1154
    %1219 = vst [vmem:[#allocation3 + $0x58c] sm:$0xf] %v1155
    %1220 = vst [vmem:[#allocation3 + $0x5b0] sm:$0xf] %v1156
    %1221 = vst [vmem:[#allocation3 + $0x5d4] sm:$0xf] %v1157
    %1222 = vst [vmem:[#allocation3 + $0x5f8] sm:$0xf] %v1158
    %1223 = vst [vmem:[#allocation3 + $0x61c] sm:$0xf] %v1159
    %1224 = vst [vmem:[#allocation3 + $0x640] sm:$0xf] %v1160
    %1225 = vst [vmem:[#allocation3 + $0x664] sm:$0xf] %v1161
    %1226 = vst [vmem:[#allocation3 + $0x688] sm:$0xf] %v1162
    %1227 = vst [vmem:[#allocation3 + $0x6ac] sm:$0xf] %v1163
    %1228 = vst [vmem:[#allocation3 + $0x6d0] sm:$0xf] %v1164
    %1229 = vst [vmem:[#allocation3 + $0x6f4] sm:$0xf] %v1165
    %1230 = vst [vmem:[#allocation3 + $0x718] sm:$0xf] %v1166
    %1231 = vst [vmem:[#allocation3 + $0x73c] sm:$0xf] %v1167
    %1232 = vst [vmem:[#allocation3 + $0x760] sm:$0xf] %v1168
    %1233 = vst [vmem:[#allocation3 + $0x784] sm:$0xf] %v1169
    %1234 = vst [vmem:[#allocation3 + $0x7a8] sm:$0xf] %v1170
    %1235 = vst [vmem:[#allocation3 + $0x7cc] sm:$0xf] %v1171
    %1236 = vst [vmem:[#allocation3 + $0x7f0] sm:$0xf] %v1172
    %1237 = vst [vmem:[#allocation3 + $0x814] sm:$0xf] %v1173
    %1238 = vst [vmem:[#allocation3 + $0x838] sm:$0xf] %v1174
    %1239 = vst [vmem:[#allocation3 + $0x85c] sm:$0xf] %v1175
    %1240 = vst [vmem:[#allocation3 + $0x880] sm:$0xf] %v1176
    %1241 = vst [vmem:[#allocation3 + $0x8a4] sm:$0xf] %v1177
    %1242 = vst [vmem:[#allocation3 + $0x8c8] sm:$0xf] %v1178
    %1243 = vst [vmem:[#allocation3 + $0x8ec] sm:$0xf] %v1179
    %v1244 = vld [vmem:[%s219 + $0x2] sm:$0xff]
    %v1245 = vld [vmem:[%s219 + $0xa] sm:$0xff]
    %v1246 = vld [vmem:[%s219 + $0x1a] sm:$0xff]
    %v1247 = vld [vmem:[%s219 + $0x22] sm:$0xff]
    %v1248 = vld [vmem:[%s219 + $0x32] sm:$0xff]
    %v1249 = vld [vmem:[%s219 + $0x3a] sm:$0xff]
    %v1250 = vld [vmem:[%s219 + $0x4a] sm:$0xff]
    %v1251 = vld [vmem:[%s219 + $0x52] sm:$0xff]
    %v1252 = vld [vmem:[%s219 + $0x62] sm:$0xff]
    %v1253 = vld [vmem:[%s219 + $0x6a] sm:$0xff]
    %v1254 = vld [vmem:[%s219 + $0x7a] sm:$0xff]
    %v1255 = vld [vmem:[%s219 + $0x82] sm:$0xff]
    %v1256 = vld [vmem:[%s219 + $0x92] sm:$0xff]
    %v1257 = vld [vmem:[%s219 + $0x9a] sm:$0xff]
    %v1258 = vld [vmem:[%s219 + $0xaa] sm:$0xff]
    %v1259 = vld [vmem:[%s219 + $0xb2] sm:$0xff]
    %v1260 = vld [vmem:[%s219 + $0xc2] sm:$0xff]
    %v1261 = vld [vmem:[%s219 + $0xca] sm:$0xff]
    %v1262 = vld [vmem:[%s219 + $0xda] sm:$0xff]
    %v1263 = vld [vmem:[%s219 + $0xe2] sm:$0xff]
    %v1264 = vld [vmem:[%s219 + $0xf2] sm:$0xff]
    %v1265 = vld [vmem:[%s219 + $0xfa] sm:$0xff]
    %v1266 = vld [vmem:[%s219 + $0x10a] sm:$0xff]
    %v1267 = vld [vmem:[%s219 + $0x112] sm:$0xff]
    %v1268 = vld [vmem:[%s219 + $0x122] sm:$0xff]
    %v1269 = vld [vmem:[%s219 + $0x12a] sm:$0xff]
    %v1270 = vld [vmem:[%s219 + $0x13a] sm:$0xff]
    %v1271 = vld [vmem:[%s219 + $0x142] sm:$0xff]
    %v1272 = vld [vmem:[%s219 + $0x152] sm:$0xff]
    %v1273 = vld [vmem:[%s219 + $0x15a] sm:$0xff]
    %v1274 = vld [vmem:[%s219 + $0x16a] sm:$0xff]
    %v1275 = vld [vmem:[%s219 + $0x172] sm:$0xff]
    %v1276 = vld [vmem:[%s219 + $0x1b2] sm:$0xff]
    %v1277 = vld [vmem:[%s219 + $0x1ba] sm:$0xff]
    %v1278 = vld [vmem:[%s219 + $0x1ca] sm:$0xff]
    %v1279 = vld [vmem:[%s219 + $0x1d2] sm:$0xff]
    %v1280 = vld [vmem:[%s219 + $0x1e2] sm:$0xff]
    %v1281 = vld [vmem:[%s219 + $0x1ea] sm:$0xff]
    %v1282 = vld [vmem:[%s219 + $0x1fa] sm:$0xff]
    %v1283 = vld [vmem:[%s219 + $0x202] sm:$0xff]
    %v1284 = vld [vmem:[%s219 + $0x212] sm:$0xff]
    %v1285 = vld [vmem:[%s219 + $0x21a] sm:$0xff]
    %v1286 = vld [vmem:[%s219 + $0x22a] sm:$0xff]
    %v1287 = vld [vmem:[%s219 + $0x232] sm:$0xff]
    %v1288 = vld [vmem:[%s219 + $0x242] sm:$0xff]
    %v1289 = vld [vmem:[%s219 + $0x24a] sm:$0xff]
    %v1290 = vld [vmem:[%s219 + $0x25a] sm:$0xff]
    %v1291 = vld [vmem:[%s219 + $0x262] sm:$0xff]
    %v1292 = vld [vmem:[%s219 + $0x272] sm:$0xff]
    %v1293 = vld [vmem:[%s219 + $0x27a] sm:$0xff]
    %v1294 = vld [vmem:[%s219 + $0x28a] sm:$0xff]
    %v1295 = vld [vmem:[%s219 + $0x292] sm:$0xff]
    %v1296 = vld [vmem:[%s219 + $0x2a2] sm:$0xff]
    %v1297 = vld [vmem:[%s219 + $0x2aa] sm:$0xff]
    %v1298 = vld [vmem:[%s219 + $0x2ba] sm:$0xff]
    %v1299 = vld [vmem:[%s219 + $0x2c2] sm:$0xff]
    %v1300 = vld [vmem:[%s219 + $0x2d2] sm:$0xff]
    %v1301 = vld [vmem:[%s219 + $0x2da] sm:$0xff]
    %v1302 = vld [vmem:[%s219 + $0x2ea] sm:$0xff]
    %v1303 = vld [vmem:[%s219 + $0x2f2] sm:$0xff]
    %v1304 = vld [vmem:[%s219 + $0x302] sm:$0xff]
    %v1305 = vld [vmem:[%s219 + $0x30a] sm:$0xff]
    %v1306 = vld [vmem:[%s219 + $0x31a] sm:$0xff]
    %v1307 = vld [vmem:[%s219 + $0x322] sm:$0xff]
    %v1308 = vpack.c.bf16 %v1244, %v1244
    %v1309 = vpack.c.bf16 %v1245, %v1245
    %v1310 = vpack.c.bf16 %v1246, %v1246
    %v1311 = vpack.c.bf16 %v1247, %v1247
    %v1312 = vpack.c.bf16 %v1248, %v1248
    %v1313 = vpack.c.bf16 %v1249, %v1249
    %v1314 = vpack.c.bf16 %v1250, %v1250
    %v1315 = vpack.c.bf16 %v1251, %v1251
    %v1316 = vpack.c.bf16 %v1252, %v1252
    %v1317 = vpack.c.bf16 %v1253, %v1253
    %v1318 = vpack.c.bf16 %v1254, %v1254
    %v1319 = vpack.c.bf16 %v1255, %v1255
    %v1320 = vpack.c.bf16 %v1256, %v1256
    %v1321 = vpack.c.bf16 %v1257, %v1257
    %v1322 = vpack.c.bf16 %v1258, %v1258
    %v1323 = vpack.c.bf16 %v1259, %v1259
    %v1324 = vpack.c.bf16 %v1260, %v1260
    %v1325 = vpack.c.bf16 %v1261, %v1261
    %v1326 = vpack.c.bf16 %v1262, %v1262
    %v1327 = vpack.c.bf16 %v1263, %v1263
    %v1328 = vpack.c.bf16 %v1264, %v1264
    %v1329 = vpack.c.bf16 %v1265, %v1265
    %v1330 = vpack.c.bf16 %v1266, %v1266
    %v1331 = vpack.c.bf16 %v1267, %v1267
    %v1332 = vpack.c.bf16 %v1268, %v1268
    %v1333 = vpack.c.bf16 %v1269, %v1269
    %v1334 = vpack.c.bf16 %v1270, %v1270
    %v1335 = vpack.c.bf16 %v1271, %v1271
    %v1336 = vpack.c.bf16 %v1272, %v1272
    %v1337 = vpack.c.bf16 %v1273, %v1273
    %v1338 = vpack.c.bf16 %v1274, %v1274
    %v1339 = vpack.c.bf16 %v1275, %v1275
    %v1340 = vpack.c.bf16 %v1276, %v1276
    %v1341 = vpack.c.bf16 %v1277, %v1277
    %v1342 = vpack.c.bf16 %v1278, %v1278
    %v1343 = vpack.c.bf16 %v1279, %v1279
    %v1344 = vpack.c.bf16 %v1280, %v1280
    %v1345 = vpack.c.bf16 %v1281, %v1281
    %v1346 = vpack.c.bf16 %v1282, %v1282
    %v1347 = vpack.c.bf16 %v1283, %v1283
    %v1348 = vpack.c.bf16 %v1284, %v1284
    %v1349 = vpack.c.bf16 %v1285, %v1285
    %v1350 = vpack.c.bf16 %v1286, %v1286
    %v1351 = vpack.c.bf16 %v1287, %v1287
    %v1352 = vpack.c.bf16 %v1288, %v1288
    %v1353 = vpack.c.bf16 %v1289, %v1289
    %v1354 = vpack.c.bf16 %v1290, %v1290
    %v1355 = vpack.c.bf16 %v1291, %v1291
    %v1356 = vpack.c.bf16 %v1292, %v1292
    %v1357 = vpack.c.bf16 %v1293, %v1293
    %v1358 = vpack.c.bf16 %v1294, %v1294
    %v1359 = vpack.c.bf16 %v1295, %v1295
    %v1360 = vpack.c.bf16 %v1296, %v1296
    %v1361 = vpack.c.bf16 %v1297, %v1297
    %v1362 = vpack.c.bf16 %v1298, %v1298
    %v1363 = vpack.c.bf16 %v1299, %v1299
    %v1364 = vpack.c.bf16 %v1300, %v1300
    %v1365 = vpack.c.bf16 %v1301, %v1301
    %v1366 = vpack.c.bf16 %v1302, %v1302
    %v1367 = vpack.c.bf16 %v1303, %v1303
    %v1368 = vpack.c.bf16 %v1304, %v1304
    %v1369 = vpack.c.bf16 %v1305, %v1305
    %v1370 = vpack.c.bf16 %v1306, %v1306
    %v1371 = vpack.c.bf16 %v1307, %v1307
    %1372 = vst [vmem:[#allocation3 + $0x14] sm:$0xf] %v1308
    %1373 = vst [vmem:[#allocation3 + $0x38] sm:$0xf] %v1309
    %1374 = vst [vmem:[#allocation3 + $0x5c] sm:$0xf] %v1310
    %1375 = vst [vmem:[#allocation3 + $0x80] sm:$0xf] %v1311
    %1376 = vst [vmem:[#allocation3 + $0xa4] sm:$0xf] %v1312
    %1377 = vst [vmem:[#allocation3 + $0xc8] sm:$0xf] %v1313
    %1378 = vst [vmem:[#allocation3 + $0xec] sm:$0xf] %v1314
    %1379 = vst [vmem:[#allocation3 + $0x110] sm:$0xf] %v1315
    %1380 = vst [vmem:[#allocation3 + $0x134] sm:$0xf] %v1316
    %1381 = vst [vmem:[#allocation3 + $0x158] sm:$0xf] %v1317
    %1382 = vst [vmem:[#allocation3 + $0x17c] sm:$0xf] %v1318
    %1383 = vst [vmem:[#allocation3 + $0x1a0] sm:$0xf] %v1319
    %1384 = vst [vmem:[#allocation3 + $0x1c4] sm:$0xf] %v1320
    %1385 = vst [vmem:[#allocation3 + $0x1e8] sm:$0xf] %v1321
    %1386 = vst [vmem:[#allocation3 + $0x20c] sm:$0xf] %v1322
    %1387 = vst [vmem:[#allocation3 + $0x230] sm:$0xf] %v1323
    %1388 = vst [vmem:[#allocation3 + $0x254] sm:$0xf] %v1324
    %1389 = vst [vmem:[#allocation3 + $0x278] sm:$0xf] %v1325
    %1390 = vst [vmem:[#allocation3 + $0x29c] sm:$0xf] %v1326
    %1391 = vst [vmem:[#allocation3 + $0x2c0] sm:$0xf] %v1327
    %1392 = vst [vmem:[#allocation3 + $0x2e4] sm:$0xf] %v1328
    %1393 = vst [vmem:[#allocation3 + $0x308] sm:$0xf] %v1329
    %1394 = vst [vmem:[#allocation3 + $0x32c] sm:$0xf] %v1330
    %1395 = vst [vmem:[#allocation3 + $0x350] sm:$0xf] %v1331
    %1396 = vst [vmem:[#allocation3 + $0x374] sm:$0xf] %v1332
    %1397 = vst [vmem:[#allocation3 + $0x398] sm:$0xf] %v1333
    %1398 = vst [vmem:[#allocation3 + $0x3bc] sm:$0xf] %v1334
    %1399 = vst [vmem:[#allocation3 + $0x3e0] sm:$0xf] %v1335
    %1400 = vst [vmem:[#allocation3 + $0x404] sm:$0xf] %v1336
    %1401 = vst [vmem:[#allocation3 + $0x428] sm:$0xf] %v1337
    %1402 = vst [vmem:[#allocation3 + $0x44c] sm:$0xf] %v1338
    %1403 = vst [vmem:[#allocation3 + $0x470] sm:$0xf] %v1339
    %1404 = vst [vmem:[#allocation3 + $0x494] sm:$0xf] %v1340
    %1405 = vst [vmem:[#allocation3 + $0x4b8] sm:$0xf] %v1341
    %1406 = vst [vmem:[#allocation3 + $0x4dc] sm:$0xf] %v1342
    %1407 = vst [vmem:[#allocation3 + $0x500] sm:$0xf] %v1343
    %1408 = vst [vmem:[#allocation3 + $0x524] sm:$0xf] %v1344
    %1409 = vst [vmem:[#allocation3 + $0x548] sm:$0xf] %v1345
    %1410 = vst [vmem:[#allocation3 + $0x56c] sm:$0xf] %v1346
    %1411 = vst [vmem:[#allocation3 + $0x590] sm:$0xf] %v1347
    %1412 = vst [vmem:[#allocation3 + $0x5b4] sm:$0xf] %v1348
    %1413 = vst [vmem:[#allocation3 + $0x5d8] sm:$0xf] %v1349
    %1414 = vst [vmem:[#allocation3 + $0x5fc] sm:$0xf] %v1350
    %1415 = vst [vmem:[#allocation3 + $0x620] sm:$0xf] %v1351
    %1416 = vst [vmem:[#allocation3 + $0x644] sm:$0xf] %v1352
    %1417 = vst [vmem:[#allocation3 + $0x668] sm:$0xf] %v1353
    %1418 = vst [vmem:[#allocation3 + $0x68c] sm:$0xf] %v1354
    %1419 = vst [vmem:[#allocation3 + $0x6b0] sm:$0xf] %v1355
    %1420 = vst [vmem:[#allocation3 + $0x6d4] sm:$0xf] %v1356
    %1421 = vst [vmem:[#allocation3 + $0x6f8] sm:$0xf] %v1357
    %1422 = vst [vmem:[#allocation3 + $0x71c] sm:$0xf] %v1358
    %1423 = vst [vmem:[#allocation3 + $0x740] sm:$0xf] %v1359
    %1424 = vst [vmem:[#allocation3 + $0x764] sm:$0xf] %v1360
    %1425 = vst [vmem:[#allocation3 + $0x788] sm:$0xf] %v1361
    %1426 = vst [vmem:[#allocation3 + $0x7ac] sm:$0xf] %v1362
    %1427 = vst [vmem:[#allocation3 + $0x7d0] sm:$0xf] %v1363
    %1428 = vst [vmem:[#allocation3 + $0x7f4] sm:$0xf] %v1364
    %1429 = vst [vmem:[#allocation3 + $0x818] sm:$0xf] %v1365
    %1430 = vst [vmem:[#allocation3 + $0x83c] sm:$0xf] %v1366
    %1431 = vst [vmem:[#allocation3 + $0x860] sm:$0xf] %v1367
    %1432 = vst [vmem:[#allocation3 + $0x884] sm:$0xf] %v1368
    %1433 = vst [vmem:[#allocation3 + $0x8a8] sm:$0xf] %v1369
    %1434 = vst [vmem:[#allocation3 + $0x8cc] sm:$0xf] %v1370
    %1435 = vst [vmem:[#allocation3 + $0x8f0] sm:$0xf] %v1371
    %s1436 = scalar_lea.vmem [#allocation2], 48
    %v1437 = vld [vmem:[%s1436] sm:$0xff]
    %v1438 = vld [vmem:[%s1436 + $0x8] sm:$0xff]
    %v1439 = vld [vmem:[%s1436 + $0x18] sm:$0xff]
    %v1440 = vld [vmem:[%s1436 + $0x20] sm:$0xff]
    %v1441 = vld [vmem:[%s1436 + $0x30] sm:$0xff]
    %v1442 = vld [vmem:[%s1436 + $0x38] sm:$0xff]
    %v1443 = vld [vmem:[%s1436 + $0x48] sm:$0xff]
    %v1444 = vld [vmem:[%s1436 + $0x50] sm:$0xff]
    %v1445 = vld [vmem:[%s1436 + $0x60] sm:$0xff]
    %v1446 = vld [vmem:[%s1436 + $0x68] sm:$0xff]
    %v1447 = vld [vmem:[%s1436 + $0x78] sm:$0xff]
    %v1448 = vld [vmem:[%s1436 + $0x80] sm:$0xff]
    %v1449 = vld [vmem:[%s1436 + $0x90] sm:$0xff]
    %v1450 = vld [vmem:[%s1436 + $0x98] sm:$0xff]
    %v1451 = vld [vmem:[%s1436 + $0xa8] sm:$0xff]
    %v1452 = vld [vmem:[%s1436 + $0xb0] sm:$0xff]
    %v1453 = vld [vmem:[%s1436 + $0xc0] sm:$0xff]
    %v1454 = vld [vmem:[%s1436 + $0xc8] sm:$0xff]
    %v1455 = vld [vmem:[%s1436 + $0xd8] sm:$0xff]
    %v1456 = vld [vmem:[%s1436 + $0xe0] sm:$0xff]
    %v1457 = vld [vmem:[%s1436 + $0xf0] sm:$0xff]
    %v1458 = vld [vmem:[%s1436 + $0xf8] sm:$0xff]
    %v1459 = vld [vmem:[%s1436 + $0x108] sm:$0xff]
    %v1460 = vld [vmem:[%s1436 + $0x110] sm:$0xff]
    %v1461 = vld [vmem:[%s1436 + $0x120] sm:$0xff]
    %v1462 = vld [vmem:[%s1436 + $0x128] sm:$0xff]
    %v1463 = vld [vmem:[%s1436 + $0x138] sm:$0xff]
    %v1464 = vld [vmem:[%s1436 + $0x140] sm:$0xff]
    %v1465 = vld [vmem:[%s1436 + $0x150] sm:$0xff]
    %v1466 = vld [vmem:[%s1436 + $0x158] sm:$0xff]
    %v1467 = vld [vmem:[%s1436 + $0x168] sm:$0xff]
    %v1468 = vld [vmem:[%s1436 + $0x170] sm:$0xff]
    %v1469 = vld [vmem:[%s1436 + $0x1b0] sm:$0xff]
    %v1470 = vld [vmem:[%s1436 + $0x1b8] sm:$0xff]
    %v1471 = vld [vmem:[%s1436 + $0x1c8] sm:$0xff]
    %v1472 = vld [vmem:[%s1436 + $0x1d0] sm:$0xff]
    %v1473 = vld [vmem:[%s1436 + $0x1e0] sm:$0xff]
    %v1474 = vld [vmem:[%s1436 + $0x1e8] sm:$0xff]
    %v1475 = vld [vmem:[%s1436 + $0x1f8] sm:$0xff]
    %v1476 = vld [vmem:[%s1436 + $0x200] sm:$0xff]
    %v1477 = vld [vmem:[%s1436 + $0x210] sm:$0xff]
    %v1478 = vld [vmem:[%s1436 + $0x218] sm:$0xff]
    %v1479 = vld [vmem:[%s1436 + $0x228] sm:$0xff]
    %v1480 = vld [vmem:[%s1436 + $0x230] sm:$0xff]
    %v1481 = vld [vmem:[%s1436 + $0x240] sm:$0xff]
    %v1482 = vld [vmem:[%s1436 + $0x248] sm:$0xff]
    %v1483 = vld [vmem:[%s1436 + $0x258] sm:$0xff]
    %v1484 = vld [vmem:[%s1436 + $0x260] sm:$0xff]
    %v1485 = vld [vmem:[%s1436 + $0x270] sm:$0xff]
    %v1486 = vld [vmem:[%s1436 + $0x278] sm:$0xff]
    %v1487 = vld [vmem:[%s1436 + $0x288] sm:$0xff]
    %v1488 = vld [vmem:[%s1436 + $0x290] sm:$0xff]
    %v1489 = vld [vmem:[%s1436 + $0x2a0] sm:$0xff]
    %v1490 = vld [vmem:[%s1436 + $0x2a8] sm:$0xff]
    %v1491 = vld [vmem:[%s1436 + $0x2b8] sm:$0xff]
    %v1492 = vld [vmem:[%s1436 + $0x2c0] sm:$0xff]
    %v1493 = vld [vmem:[%s1436 + $0x2d0] sm:$0xff]
    %v1494 = vld [vmem:[%s1436 + $0x2d8] sm:$0xff]
    %v1495 = vld [vmem:[%s1436 + $0x2e8] sm:$0xff]
    %v1496 = vld [vmem:[%s1436 + $0x2f0] sm:$0xff]
    %v1497 = vld [vmem:[%s1436 + $0x300] sm:$0xff]
    %v1498 = vld [vmem:[%s1436 + $0x308] sm:$0xff]
    %v1499 = vld [vmem:[%s1436 + $0x318] sm:$0xff]
    %v1500 = vld [vmem:[%s1436 + $0x320] sm:$0xff]
    %v1501 = vpack.c.bf16 %v1437, %v1437
    %v1502 = vpack.c.bf16 %v1438, %v1438
    %v1503 = vpack.c.bf16 %v1439, %v1439
    %v1504 = vpack.c.bf16 %v1440, %v1440
    %v1505 = vpack.c.bf16 %v1441, %v1441
    %v1506 = vpack.c.bf16 %v1442, %v1442
    %v1507 = vpack.c.bf16 %v1443, %v1443
    %v1508 = vpack.c.bf16 %v1444, %v1444
    %v1509 = vpack.c.bf16 %v1445, %v1445
    %v1510 = vpack.c.bf16 %v1446, %v1446
    %v1511 = vpack.c.bf16 %v1447, %v1447
    %v1512 = vpack.c.bf16 %v1448, %v1448
    %v1513 = vpack.c.bf16 %v1449, %v1449
    %v1514 = vpack.c.bf16 %v1450, %v1450
    %v1515 = vpack.c.bf16 %v1451, %v1451
    %v1516 = vpack.c.bf16 %v1452, %v1452
    %v1517 = vpack.c.bf16 %v1453, %v1453
    %v1518 = vpack.c.bf16 %v1454, %v1454
    %v1519 = vpack.c.bf16 %v1455, %v1455
    %v1520 = vpack.c.bf16 %v1456, %v1456
    %v1521 = vpack.c.bf16 %v1457, %v1457
    %v1522 = vpack.c.bf16 %v1458, %v1458
    %v1523 = vpack.c.bf16 %v1459, %v1459
    %v1524 = vpack.c.bf16 %v1460, %v1460
    %v1525 = vpack.c.bf16 %v1461, %v1461
    %v1526 = vpack.c.bf16 %v1462, %v1462
    %v1527 = vpack.c.bf16 %v1463, %v1463
    %v1528 = vpack.c.bf16 %v1464, %v1464
    %v1529 = vpack.c.bf16 %v1465, %v1465
    %v1530 = vpack.c.bf16 %v1466, %v1466
    %v1531 = vpack.c.bf16 %v1467, %v1467
    %v1532 = vpack.c.bf16 %v1468, %v1468
    %v1533 = vpack.c.bf16 %v1469, %v1469
    %v1534 = vpack.c.bf16 %v1470, %v1470
    %v1535 = vpack.c.bf16 %v1471, %v1471
    %v1536 = vpack.c.bf16 %v1472, %v1472
    %v1537 = vpack.c.bf16 %v1473, %v1473
    %v1538 = vpack.c.bf16 %v1474, %v1474
    %v1539 = vpack.c.bf16 %v1475, %v1475
    %v1540 = vpack.c.bf16 %v1476, %v1476
    %v1541 = vpack.c.bf16 %v1477, %v1477
    %v1542 = vpack.c.bf16 %v1478, %v1478
    %v1543 = vpack.c.bf16 %v1479, %v1479
    %v1544 = vpack.c.bf16 %v1480, %v1480
    %v1545 = vpack.c.bf16 %v1481, %v1481
    %v1546 = vpack.c.bf16 %v1482, %v1482
    %v1547 = vpack.c.bf16 %v1483, %v1483
    %v1548 = vpack.c.bf16 %v1484, %v1484
    %v1549 = vpack.c.bf16 %v1485, %v1485
    %v1550 = vpack.c.bf16 %v1486, %v1486
    %v1551 = vpack.c.bf16 %v1487, %v1487
    %v1552 = vpack.c.bf16 %v1488, %v1488
    %v1553 = vpack.c.bf16 %v1489, %v1489
    %v1554 = vpack.c.bf16 %v1490, %v1490
    %v1555 = vpack.c.bf16 %v1491, %v1491
    %v1556 = vpack.c.bf16 %v1492, %v1492
    %v1557 = vpack.c.bf16 %v1493, %v1493
    %v1558 = vpack.c.bf16 %v1494, %v1494
    %v1559 = vpack.c.bf16 %v1495, %v1495
    %v1560 = vpack.c.bf16 %v1496, %v1496
    %v1561 = vpack.c.bf16 %v1497, %v1497
    %v1562 = vpack.c.bf16 %v1498, %v1498
    %v1563 = vpack.c.bf16 %v1499, %v1499
    %v1564 = vpack.c.bf16 %v1500, %v1500
    %1565 = vst [vmem:[#allocation3 + $0x18] sm:$0xf] %v1501
    %1566 = vst [vmem:[#allocation3 + $0x3c] sm:$0xf] %v1502
    %1567 = vst [vmem:[#allocation3 + $0x60] sm:$0xf] %v1503
    %1568 = vst [vmem:[#allocation3 + $0x84] sm:$0xf] %v1504
    %1569 = vst [vmem:[#allocation3 + $0xa8] sm:$0xf] %v1505
    %1570 = vst [vmem:[#allocation3 + $0xcc] sm:$0xf] %v1506
    %1571 = vst [vmem:[#allocation3 + $0xf0] sm:$0xf] %v1507
    %1572 = vst [vmem:[#allocation3 + $0x114] sm:$0xf] %v1508
    %1573 = vst [vmem:[#allocation3 + $0x138] sm:$0xf] %v1509
    %1574 = vst [vmem:[#allocation3 + $0x15c] sm:$0xf] %v1510
    %1575 = vst [vmem:[#allocation3 + $0x180] sm:$0xf] %v1511
    %1576 = vst [vmem:[#allocation3 + $0x1a4] sm:$0xf] %v1512
    %1577 = vst [vmem:[#allocation3 + $0x1c8] sm:$0xf] %v1513
    %1578 = vst [vmem:[#allocation3 + $0x1ec] sm:$0xf] %v1514
    %1579 = vst [vmem:[#allocation3 + $0x210] sm:$0xf] %v1515
    %1580 = vst [vmem:[#allocation3 + $0x234] sm:$0xf] %v1516
    %1581 = vst [vmem:[#allocation3 + $0x258] sm:$0xf] %v1517
    %1582 = vst [vmem:[#allocation3 + $0x27c] sm:$0xf] %v1518
    %1583 = vst [vmem:[#allocation3 + $0x2a0] sm:$0xf] %v1519
    %1584 = vst [vmem:[#allocation3 + $0x2c4] sm:$0xf] %v1520
    %1585 = vst [vmem:[#allocation3 + $0x2e8] sm:$0xf] %v1521
    %1586 = vst [vmem:[#allocation3 + $0x30c] sm:$0xf] %v1522
    %1587 = vst [vmem:[#allocation3 + $0x330] sm:$0xf] %v1523
    %1588 = vst [vmem:[#allocation3 + $0x354] sm:$0xf] %v1524
    %1589 = vst [vmem:[#allocation3 + $0x378] sm:$0xf] %v1525
    %1590 = vst [vmem:[#allocation3 + $0x39c] sm:$0xf] %v1526
    %1591 = vst [vmem:[#allocation3 + $0x3c0] sm:$0xf] %v1527
    %1592 = vst [vmem:[#allocation3 + $0x3e4] sm:$0xf] %v1528
    %1593 = vst [vmem:[#allocation3 + $0x408] sm:$0xf] %v1529
    %1594 = vst [vmem:[#allocation3 + $0x42c] sm:$0xf] %v1530
    %1595 = vst [vmem:[#allocation3 + $0x450] sm:$0xf] %v1531
    %1596 = vst [vmem:[#allocation3 + $0x474] sm:$0xf] %v1532
    %1597 = vst [vmem:[#allocation3 + $0x498] sm:$0xf] %v1533
    %1598 = vst [vmem:[#allocation3 + $0x4bc] sm:$0xf] %v1534
    %1599 = vst [vmem:[#allocation3 + $0x4e0] sm:$0xf] %v1535
    %1600 = vst [vmem:[#allocation3 + $0x504] sm:$0xf] %v1536
    %1601 = vst [vmem:[#allocation3 + $0x528] sm:$0xf] %v1537
    %1602 = vst [vmem:[#allocation3 + $0x54c] sm:$0xf] %v1538
    %1603 = vst [vmem:[#allocation3 + $0x570] sm:$0xf] %v1539
    %1604 = vst [vmem:[#allocation3 + $0x594] sm:$0xf] %v1540
    %1605 = vst [vmem:[#allocation3 + $0x5b8] sm:$0xf] %v1541
    %1606 = vst [vmem:[#allocation3 + $0x5dc] sm:$0xf] %v1542
    %1607 = vst [vmem:[#allocation3 + $0x600] sm:$0xf] %v1543
    %1608 = vst [vmem:[#allocation3 + $0x624] sm:$0xf] %v1544
    %1609 = vst [vmem:[#allocation3 + $0x648] sm:$0xf] %v1545
    %1610 = vst [vmem:[#allocation3 + $0x66c] sm:$0xf] %v1546
    %1611 = vst [vmem:[#allocation3 + $0x690] sm:$0xf] %v1547
    %1612 = vst [vmem:[#allocation3 + $0x6b4] sm:$0xf] %v1548
    %1613 = vst [vmem:[#allocation3 + $0x6d8] sm:$0xf] %v1549
    %1614 = vst [vmem:[#allocation3 + $0x6fc] sm:$0xf] %v1550
    %1615 = vst [vmem:[#allocation3 + $0x720] sm:$0xf] %v1551
    %1616 = vst [vmem:[#allocation3 + $0x744] sm:$0xf] %v1552
    %1617 = vst [vmem:[#allocation3 + $0x768] sm:$0xf] %v1553
    %1618 = vst [vmem:[#allocation3 + $0x78c] sm:$0xf] %v1554
    %1619 = vst [vmem:[#allocation3 + $0x7b0] sm:$0xf] %v1555
    %1620 = vst [vmem:[#allocation3 + $0x7d4] sm:$0xf] %v1556
    %1621 = vst [vmem:[#allocation3 + $0x7f8] sm:$0xf] %v1557
    %1622 = vst [vmem:[#allocation3 + $0x81c] sm:$0xf] %v1558
    %1623 = vst [vmem:[#allocation3 + $0x840] sm:$0xf] %v1559
    %1624 = vst [vmem:[#allocation3 + $0x864] sm:$0xf] %v1560
    %1625 = vst [vmem:[#allocation3 + $0x888] sm:$0xf] %v1561
    %1626 = vst [vmem:[#allocation3 + $0x8ac] sm:$0xf] %v1562
    %1627 = vst [vmem:[#allocation3 + $0x8d0] sm:$0xf] %v1563
    %1628 = vst [vmem:[#allocation3 + $0x8f4] sm:$0xf] %v1564
    %v1629 = vld [vmem:[%s1436 + $0x1] sm:$0xff]
    %v1630 = vld [vmem:[%s1436 + $0x9] sm:$0xff]
    %v1631 = vld [vmem:[%s1436 + $0x19] sm:$0xff]
    %v1632 = vld [vmem:[%s1436 + $0x21] sm:$0xff]
    %v1633 = vld [vmem:[%s1436 + $0x31] sm:$0xff]
    %v1634 = vld [vmem:[%s1436 + $0x39] sm:$0xff]
    %v1635 = vld [vmem:[%s1436 + $0x49] sm:$0xff]
    %v1636 = vld [vmem:[%s1436 + $0x51] sm:$0xff]
    %v1637 = vld [vmem:[%s1436 + $0x61] sm:$0xff]
    %v1638 = vld [vmem:[%s1436 + $0x69] sm:$0xff]
    %v1639 = vld [vmem:[%s1436 + $0x79] sm:$0xff]
    %v1640 = vld [vmem:[%s1436 + $0x81] sm:$0xff]
    %v1641 = vld [vmem:[%s1436 + $0x91] sm:$0xff]
    %v1642 = vld [vmem:[%s1436 + $0x99] sm:$0xff]
    %v1643 = vld [vmem:[%s1436 + $0xa9] sm:$0xff]
    %v1644 = vld [vmem:[%s1436 + $0xb1] sm:$0xff]
    %v1645 = vld [vmem:[%s1436 + $0xc1] sm:$0xff]
    %v1646 = vld [vmem:[%s1436 + $0xc9] sm:$0xff]
    %v1647 = vld [vmem:[%s1436 + $0xd9] sm:$0xff]
    %v1648 = vld [vmem:[%s1436 + $0xe1] sm:$0xff]
    %v1649 = vld [vmem:[%s1436 + $0xf1] sm:$0xff]
    %v1650 = vld [vmem:[%s1436 + $0xf9] sm:$0xff]
    %v1651 = vld [vmem:[%s1436 + $0x109] sm:$0xff]
    %v1652 = vld [vmem:[%s1436 + $0x111] sm:$0xff]
    %v1653 = vld [vmem:[%s1436 + $0x121] sm:$0xff]
    %v1654 = vld [vmem:[%s1436 + $0x129] sm:$0xff]
    %v1655 = vld [vmem:[%s1436 + $0x139] sm:$0xff]
    %v1656 = vld [vmem:[%s1436 + $0x141] sm:$0xff]
    %v1657 = vld [vmem:[%s1436 + $0x151] sm:$0xff]
    %v1658 = vld [vmem:[%s1436 + $0x159] sm:$0xff]
    %v1659 = vld [vmem:[%s1436 + $0x169] sm:$0xff]
    %v1660 = vld [vmem:[%s1436 + $0x171] sm:$0xff]
    %v1661 = vld [vmem:[%s1436 + $0x1b1] sm:$0xff]
    %v1662 = vld [vmem:[%s1436 + $0x1b9] sm:$0xff]
    %v1663 = vld [vmem:[%s1436 + $0x1c9] sm:$0xff]
    %v1664 = vld [vmem:[%s1436 + $0x1d1] sm:$0xff]
    %v1665 = vld [vmem:[%s1436 + $0x1e1] sm:$0xff]
    %v1666 = vld [vmem:[%s1436 + $0x1e9] sm:$0xff]
    %v1667 = vld [vmem:[%s1436 + $0x1f9] sm:$0xff]
    %v1668 = vld [vmem:[%s1436 + $0x201] sm:$0xff]
    %v1669 = vld [vmem:[%s1436 + $0x211] sm:$0xff]
    %v1670 = vld [vmem:[%s1436 + $0x219] sm:$0xff]
    %v1671 = vld [vmem:[%s1436 + $0x229] sm:$0xff]
    %v1672 = vld [vmem:[%s1436 + $0x231] sm:$0xff]
    %v1673 = vld [vmem:[%s1436 + $0x241] sm:$0xff]
    %v1674 = vld [vmem:[%s1436 + $0x249] sm:$0xff]
    %v1675 = vld [vmem:[%s1436 + $0x259] sm:$0xff]
    %v1676 = vld [vmem:[%s1436 + $0x261] sm:$0xff]
    %v1677 = vld [vmem:[%s1436 + $0x271] sm:$0xff]
    %v1678 = vld [vmem:[%s1436 + $0x279] sm:$0xff]
    %v1679 = vld [vmem:[%s1436 + $0x289] sm:$0xff]
    %v1680 = vld [vmem:[%s1436 + $0x291] sm:$0xff]
    %v1681 = vld [vmem:[%s1436 + $0x2a1] sm:$0xff]
    %v1682 = vld [vmem:[%s1436 + $0x2a9] sm:$0xff]
    %v1683 = vld [vmem:[%s1436 + $0x2b9] sm:$0xff]
    %v1684 = vld [vmem:[%s1436 + $0x2c1] sm:$0xff]
    %v1685 = vld [vmem:[%s1436 + $0x2d1] sm:$0xff]
    %v1686 = vld [vmem:[%s1436 + $0x2d9] sm:$0xff]
    %v1687 = vld [vmem:[%s1436 + $0x2e9] sm:$0xff]
    %v1688 = vld [vmem:[%s1436 + $0x2f1] sm:$0xff]
    %v1689 = vld [vmem:[%s1436 + $0x301] sm:$0xff]
    %v1690 = vld [vmem:[%s1436 + $0x309] sm:$0xff]
    %v1691 = vld [vmem:[%s1436 + $0x319] sm:$0xff]
    %v1692 = vld [vmem:[%s1436 + $0x321] sm:$0xff]
    %v1693 = vpack.c.bf16 %v1629, %v1629
    %v1694 = vpack.c.bf16 %v1630, %v1630
    %v1695 = vpack.c.bf16 %v1631, %v1631
    %v1696 = vpack.c.bf16 %v1632, %v1632
    %v1697 = vpack.c.bf16 %v1633, %v1633
    %v1698 = vpack.c.bf16 %v1634, %v1634
    %v1699 = vpack.c.bf16 %v1635, %v1635
    %v1700 = vpack.c.bf16 %v1636, %v1636
    %v1701 = vpack.c.bf16 %v1637, %v1637
    %v1702 = vpack.c.bf16 %v1638, %v1638
    %v1703 = vpack.c.bf16 %v1639, %v1639
    %v1704 = vpack.c.bf16 %v1640, %v1640
    %v1705 = vpack.c.bf16 %v1641, %v1641
    %v1706 = vpack.c.bf16 %v1642, %v1642
    %v1707 = vpack.c.bf16 %v1643, %v1643
    %v1708 = vpack.c.bf16 %v1644, %v1644
    %v1709 = vpack.c.bf16 %v1645, %v1645
    %v1710 = vpack.c.bf16 %v1646, %v1646
    %v1711 = vpack.c.bf16 %v1647, %v1647
    %v1712 = vpack.c.bf16 %v1648, %v1648
    %v1713 = vpack.c.bf16 %v1649, %v1649
    %v1714 = vpack.c.bf16 %v1650, %v1650
    %v1715 = vpack.c.bf16 %v1651, %v1651
    %v1716 = vpack.c.bf16 %v1652, %v1652
    %v1717 = vpack.c.bf16 %v1653, %v1653
    %v1718 = vpack.c.bf16 %v1654, %v1654
    %v1719 = vpack.c.bf16 %v1655, %v1655
    %v1720 = vpack.c.bf16 %v1656, %v1656
    %v1721 = vpack.c.bf16 %v1657, %v1657
    %v1722 = vpack.c.bf16 %v1658, %v1658
    %v1723 = vpack.c.bf16 %v1659, %v1659
    %v1724 = vpack.c.bf16 %v1660, %v1660
    %v1725 = vpack.c.bf16 %v1661, %v1661
    %v1726 = vpack.c.bf16 %v1662, %v1662
    %v1727 = vpack.c.bf16 %v1663, %v1663
    %v1728 = vpack.c.bf16 %v1664, %v1664
    %v1729 = vpack.c.bf16 %v1665, %v1665
    %v1730 = vpack.c.bf16 %v1666, %v1666
    %v1731 = vpack.c.bf16 %v1667, %v1667
    %v1732 = vpack.c.bf16 %v1668, %v1668
    %v1733 = vpack.c.bf16 %v1669, %v1669
    %v1734 = vpack.c.bf16 %v1670, %v1670
    %v1735 = vpack.c.bf16 %v1671, %v1671
    %v1736 = vpack.c.bf16 %v1672, %v1672
    %v1737 = vpack.c.bf16 %v1673, %v1673
    %v1738 = vpack.c.bf16 %v1674, %v1674
    %v1739 = vpack.c.bf16 %v1675, %v1675
    %v1740 = vpack.c.bf16 %v1676, %v1676
    %v1741 = vpack.c.bf16 %v1677, %v1677
    %v1742 = vpack.c.bf16 %v1678, %v1678
    %v1743 = vpack.c.bf16 %v1679, %v1679
    %v1744 = vpack.c.bf16 %v1680, %v1680
    %v1745 = vpack.c.bf16 %v1681, %v1681
    %v1746 = vpack.c.bf16 %v1682, %v1682
    %v1747 = vpack.c.bf16 %v1683, %v1683
    %v1748 = vpack.c.bf16 %v1684, %v1684
    %v1749 = vpack.c.bf16 %v1685, %v1685
    %v1750 = vpack.c.bf16 %v1686, %v1686
    %v1751 = vpack.c.bf16 %v1687, %v1687
    %v1752 = vpack.c.bf16 %v1688, %v1688
    %v1753 = vpack.c.bf16 %v1689, %v1689
    %v1754 = vpack.c.bf16 %v1690, %v1690
    %v1755 = vpack.c.bf16 %v1691, %v1691
    %v1756 = vpack.c.bf16 %v1692, %v1692
    %1757 = vst [vmem:[#allocation3 + $0x1c] sm:$0xf] %v1693
    %1758 = vst [vmem:[#allocation3 + $0x40] sm:$0xf] %v1694
    %1759 = vst [vmem:[#allocation3 + $0x64] sm:$0xf] %v1695
    %1760 = vst [vmem:[#allocation3 + $0x88] sm:$0xf] %v1696
    %1761 = vst [vmem:[#allocation3 + $0xac] sm:$0xf] %v1697
    %1762 = vst [vmem:[#allocation3 + $0xd0] sm:$0xf] %v1698
    %1763 = vst [vmem:[#allocation3 + $0xf4] sm:$0xf] %v1699
    %1764 = vst [vmem:[#allocation3 + $0x118] sm:$0xf] %v1700
    %1765 = vst [vmem:[#allocation3 + $0x13c] sm:$0xf] %v1701
    %1766 = vst [vmem:[#allocation3 + $0x160] sm:$0xf] %v1702
    %1767 = vst [vmem:[#allocation3 + $0x184] sm:$0xf] %v1703
    %1768 = vst [vmem:[#allocation3 + $0x1a8] sm:$0xf] %v1704
    %1769 = vst [vmem:[#allocation3 + $0x1cc] sm:$0xf] %v1705
    %1770 = vst [vmem:[#allocation3 + $0x1f0] sm:$0xf] %v1706
    %1771 = vst [vmem:[#allocation3 + $0x214] sm:$0xf] %v1707
    %1772 = vst [vmem:[#allocation3 + $0x238] sm:$0xf] %v1708
    %1773 = vst [vmem:[#allocation3 + $0x25c] sm:$0xf] %v1709
    %1774 = vst [vmem:[#allocation3 + $0x280] sm:$0xf] %v1710
    %1775 = vst [vmem:[#allocation3 + $0x2a4] sm:$0xf] %v1711
    %1776 = vst [vmem:[#allocation3 + $0x2c8] sm:$0xf] %v1712
    %1777 = vst [vmem:[#allocation3 + $0x2ec] sm:$0xf] %v1713
    %1778 = vst [vmem:[#allocation3 + $0x310] sm:$0xf] %v1714
    %1779 = vst [vmem:[#allocation3 + $0x334] sm:$0xf] %v1715
    %1780 = vst [vmem:[#allocation3 + $0x358] sm:$0xf] %v1716
    %1781 = vst [vmem:[#allocation3 + $0x37c] sm:$0xf] %v1717
    %1782 = vst [vmem:[#allocation3 + $0x3a0] sm:$0xf] %v1718
    %1783 = vst [vmem:[#allocation3 + $0x3c4] sm:$0xf] %v1719
    %1784 = vst [vmem:[#allocation3 + $0x3e8] sm:$0xf] %v1720
    %1785 = vst [vmem:[#allocation3 + $0x40c] sm:$0xf] %v1721
    %1786 = vst [vmem:[#allocation3 + $0x430] sm:$0xf] %v1722
    %1787 = vst [vmem:[#allocation3 + $0x454] sm:$0xf] %v1723
    %1788 = vst [vmem:[#allocation3 + $0x478] sm:$0xf] %v1724
    %1789 = vst [vmem:[#allocation3 + $0x49c] sm:$0xf] %v1725
    %1790 = vst [vmem:[#allocation3 + $0x4c0] sm:$0xf] %v1726
    %1791 = vst [vmem:[#allocation3 + $0x4e4] sm:$0xf] %v1727
    %1792 = vst [vmem:[#allocation3 + $0x508] sm:$0xf] %v1728
    %1793 = vst [vmem:[#allocation3 + $0x52c] sm:$0xf] %v1729
    %1794 = vst [vmem:[#allocation3 + $0x550] sm:$0xf] %v1730
    %1795 = vst [vmem:[#allocation3 + $0x574] sm:$0xf] %v1731
    %1796 = vst [vmem:[#allocation3 + $0x598] sm:$0xf] %v1732
    %1797 = vst [vmem:[#allocation3 + $0x5bc] sm:$0xf] %v1733
    %1798 = vst [vmem:[#allocation3 + $0x5e0] sm:$0xf] %v1734
    %1799 = vst [vmem:[#allocation3 + $0x604] sm:$0xf] %v1735
    %1800 = vst [vmem:[#allocation3 + $0x628] sm:$0xf] %v1736
    %1801 = vst [vmem:[#allocation3 + $0x64c] sm:$0xf] %v1737
    %1802 = vst [vmem:[#allocation3 + $0x670] sm:$0xf] %v1738
    %1803 = vst [vmem:[#allocation3 + $0x694] sm:$0xf] %v1739
    %1804 = vst [vmem:[#allocation3 + $0x6b8] sm:$0xf] %v1740
    %1805 = vst [vmem:[#allocation3 + $0x6dc] sm:$0xf] %v1741
    %1806 = vst [vmem:[#allocation3 + $0x700] sm:$0xf] %v1742
    %1807 = vst [vmem:[#allocation3 + $0x724] sm:$0xf] %v1743
    %1808 = vst [vmem:[#allocation3 + $0x748] sm:$0xf] %v1744
    %1809 = vst [vmem:[#allocation3 + $0x76c] sm:$0xf] %v1745
    %1810 = vst [vmem:[#allocation3 + $0x790] sm:$0xf] %v1746
    %1811 = vst [vmem:[#allocation3 + $0x7b4] sm:$0xf] %v1747
    %1812 = vst [vmem:[#allocation3 + $0x7d8] sm:$0xf] %v1748
    %1813 = vst [vmem:[#allocation3 + $0x7fc] sm:$0xf] %v1749
    %1814 = vst [vmem:[#allocation3 + $0x820] sm:$0xf] %v1750
    %1815 = vst [vmem:[#allocation3 + $0x844] sm:$0xf] %v1751
    %1816 = vst [vmem:[#allocation3 + $0x868] sm:$0xf] %v1752
    %1817 = vst [vmem:[#allocation3 + $0x88c] sm:$0xf] %v1753
    %1818 = vst [vmem:[#allocation3 + $0x8b0] sm:$0xf] %v1754
    %1819 = vst [vmem:[#allocation3 + $0x8d4] sm:$0xf] %v1755
    %1820 = vst [vmem:[#allocation3 + $0x8f8] sm:$0xf] %v1756
    %v1821 = vld [vmem:[%s1436 + $0x2] sm:$0xff]
    %v1822 = vld [vmem:[%s1436 + $0xa] sm:$0xff]
    %v1823 = vld [vmem:[%s1436 + $0x1a] sm:$0xff]
    %v1824 = vld [vmem:[%s1436 + $0x22] sm:$0xff]
    %v1825 = vld [vmem:[%s1436 + $0x32] sm:$0xff]
    %v1826 = vld [vmem:[%s1436 + $0x3a] sm:$0xff]
    %v1827 = vld [vmem:[%s1436 + $0x4a] sm:$0xff]
    %v1828 = vld [vmem:[%s1436 + $0x52] sm:$0xff]
    %v1829 = vld [vmem:[%s1436 + $0x62] sm:$0xff]
    %v1830 = vld [vmem:[%s1436 + $0x6a] sm:$0xff]
    %v1831 = vld [vmem:[%s1436 + $0x7a] sm:$0xff]
    %v1832 = vld [vmem:[%s1436 + $0x82] sm:$0xff]
    %v1833 = vld [vmem:[%s1436 + $0x92] sm:$0xff]
    %v1834 = vld [vmem:[%s1436 + $0x9a] sm:$0xff]
    %v1835 = vld [vmem:[%s1436 + $0xaa] sm:$0xff]
    %v1836 = vld [vmem:[%s1436 + $0xb2] sm:$0xff]
    %v1837 = vld [vmem:[%s1436 + $0xc2] sm:$0xff]
    %v1838 = vld [vmem:[%s1436 + $0xca] sm:$0xff]
    %v1839 = vld [vmem:[%s1436 + $0xda] sm:$0xff]
    %v1840 = vld [vmem:[%s1436 + $0xe2] sm:$0xff]
    %v1841 = vld [vmem:[%s1436 + $0xf2] sm:$0xff]
    %v1842 = vld [vmem:[%s1436 + $0xfa] sm:$0xff]
    %v1843 = vld [vmem:[%s1436 + $0x10a] sm:$0xff]
    %v1844 = vld [vmem:[%s1436 + $0x112] sm:$0xff]
    %v1845 = vld [vmem:[%s1436 + $0x122] sm:$0xff]
    %v1846 = vld [vmem:[%s1436 + $0x12a] sm:$0xff]
    %v1847 = vld [vmem:[%s1436 + $0x13a] sm:$0xff]
    %v1848 = vld [vmem:[%s1436 + $0x142] sm:$0xff]
    %v1849 = vld [vmem:[%s1436 + $0x152] sm:$0xff]
    %v1850 = vld [vmem:[%s1436 + $0x15a] sm:$0xff]
    %v1851 = vld [vmem:[%s1436 + $0x16a] sm:$0xff]
    %v1852 = vld [vmem:[%s1436 + $0x172] sm:$0xff]
    %v1853 = vld [vmem:[%s1436 + $0x1b2] sm:$0xff]
    %v1854 = vld [vmem:[%s1436 + $0x1ba] sm:$0xff]
    %v1855 = vld [vmem:[%s1436 + $0x1ca] sm:$0xff]
    %v1856 = vld [vmem:[%s1436 + $0x1d2] sm:$0xff]
    %v1857 = vld [vmem:[%s1436 + $0x1e2] sm:$0xff]
    %v1858 = vld [vmem:[%s1436 + $0x1ea] sm:$0xff]
    %v1859 = vld [vmem:[%s1436 + $0x1fa] sm:$0xff]
    %v1860 = vld [vmem:[%s1436 + $0x202] sm:$0xff]
    %v1861 = vld [vmem:[%s1436 + $0x212] sm:$0xff]
    %v1862 = vld [vmem:[%s1436 + $0x21a] sm:$0xff]
    %v1863 = vld [vmem:[%s1436 + $0x22a] sm:$0xff]
    %v1864 = vld [vmem:[%s1436 + $0x232] sm:$0xff]
    %v1865 = vld [vmem:[%s1436 + $0x242] sm:$0xff]
    %v1866 = vld [vmem:[%s1436 + $0x24a] sm:$0xff]
    %v1867 = vld [vmem:[%s1436 + $0x25a] sm:$0xff]
    %v1868 = vld [vmem:[%s1436 + $0x262] sm:$0xff]
    %v1869 = vld [vmem:[%s1436 + $0x272] sm:$0xff]
    %v1870 = vld [vmem:[%s1436 + $0x27a] sm:$0xff]
    %v1871 = vld [vmem:[%s1436 + $0x28a] sm:$0xff]
    %v1872 = vld [vmem:[%s1436 + $0x292] sm:$0xff]
    %v1873 = vld [vmem:[%s1436 + $0x2a2] sm:$0xff]
    %v1874 = vld [vmem:[%s1436 + $0x2aa] sm:$0xff]
    %v1875 = vld [vmem:[%s1436 + $0x2ba] sm:$0xff]
    %v1876 = vld [vmem:[%s1436 + $0x2c2] sm:$0xff]
    %v1877 = vld [vmem:[%s1436 + $0x2d2] sm:$0xff]
    %v1878 = vld [vmem:[%s1436 + $0x2da] sm:$0xff]
    %v1879 = vld [vmem:[%s1436 + $0x2ea] sm:$0xff]
    %v1880 = vld [vmem:[%s1436 + $0x2f2] sm:$0xff]
    %v1881 = vld [vmem:[%s1436 + $0x302] sm:$0xff]
    %v1882 = vld [vmem:[%s1436 + $0x30a] sm:$0xff]
    %v1883 = vld [vmem:[%s1436 + $0x31a] sm:$0xff]
    %v1884 = vld [vmem:[%s1436 + $0x322] sm:$0xff]
    %v1885 = vpack.c.bf16 %v1821, %v1821
    %v1886 = vpack.c.bf16 %v1822, %v1822
    %v1887 = vpack.c.bf16 %v1823, %v1823
    %v1888 = vpack.c.bf16 %v1824, %v1824
    %v1889 = vpack.c.bf16 %v1825, %v1825
    %v1890 = vpack.c.bf16 %v1826, %v1826
    %v1891 = vpack.c.bf16 %v1827, %v1827
    %v1892 = vpack.c.bf16 %v1828, %v1828
    %v1893 = vpack.c.bf16 %v1829, %v1829
    %v1894 = vpack.c.bf16 %v1830, %v1830
    %v1895 = vpack.c.bf16 %v1831, %v1831
    %v1896 = vpack.c.bf16 %v1832, %v1832
    %v1897 = vpack.c.bf16 %v1833, %v1833
    %v1898 = vpack.c.bf16 %v1834, %v1834
    %v1899 = vpack.c.bf16 %v1835, %v1835
    %v1900 = vpack.c.bf16 %v1836, %v1836
    %v1901 = vpack.c.bf16 %v1837, %v1837
    %v1902 = vpack.c.bf16 %v1838, %v1838
    %v1903 = vpack.c.bf16 %v1839, %v1839
    %v1904 = vpack.c.bf16 %v1840, %v1840
    %v1905 = vpack.c.bf16 %v1841, %v1841
    %v1906 = vpack.c.bf16 %v1842, %v1842
    %v1907 = vpack.c.bf16 %v1843, %v1843
    %v1908 = vpack.c.bf16 %v1844, %v1844
    %v1909 = vpack.c.bf16 %v1845, %v1845
    %v1910 = vpack.c.bf16 %v1846, %v1846
    %v1911 = vpack.c.bf16 %v1847, %v1847
    %v1912 = vpack.c.bf16 %v1848, %v1848
    %v1913 = vpack.c.bf16 %v1849, %v1849
    %v1914 = vpack.c.bf16 %v1850, %v1850
    %v1915 = vpack.c.bf16 %v1851, %v1851
    %v1916 = vpack.c.bf16 %v1852, %v1852
    %v1917 = vpack.c.bf16 %v1853, %v1853
    %v1918 = vpack.c.bf16 %v1854, %v1854
    %v1919 = vpack.c.bf16 %v1855, %v1855
    %v1920 = vpack.c.bf16 %v1856, %v1856
    %v1921 = vpack.c.bf16 %v1857, %v1857
    %v1922 = vpack.c.bf16 %v1858, %v1858
    %v1923 = vpack.c.bf16 %v1859, %v1859
    %v1924 = vpack.c.bf16 %v1860, %v1860
    %v1925 = vpack.c.bf16 %v1861, %v1861
    %v1926 = vpack.c.bf16 %v1862, %v1862
    %v1927 = vpack.c.bf16 %v1863, %v1863
    %v1928 = vpack.c.bf16 %v1864, %v1864
    %v1929 = vpack.c.bf16 %v1865, %v1865
    %v1930 = vpack.c.bf16 %v1866, %v1866
    %v1931 = vpack.c.bf16 %v1867, %v1867
    %v1932 = vpack.c.bf16 %v1868, %v1868
    %v1933 = vpack.c.bf16 %v1869, %v1869
    %v1934 = vpack.c.bf16 %v1870, %v1870
    %v1935 = vpack.c.bf16 %v1871, %v1871
    %v1936 = vpack.c.bf16 %v1872, %v1872
    %v1937 = vpack.c.bf16 %v1873, %v1873
    %v1938 = vpack.c.bf16 %v1874, %v1874
    %v1939 = vpack.c.bf16 %v1875, %v1875
    %v1940 = vpack.c.bf16 %v1876, %v1876
    %v1941 = vpack.c.bf16 %v1877, %v1877
    %v1942 = vpack.c.bf16 %v1878, %v1878
    %v1943 = vpack.c.bf16 %v1879, %v1879
    %v1944 = vpack.c.bf16 %v1880, %v1880
    %v1945 = vpack.c.bf16 %v1881, %v1881
    %v1946 = vpack.c.bf16 %v1882, %v1882
    %v1947 = vpack.c.bf16 %v1883, %v1883
    %v1948 = vpack.c.bf16 %v1884, %v1884
    %1949 = vst [vmem:[#allocation3 + $0x20] sm:$0xf] %v1885
    %1950 = vst [vmem:[#allocation3 + $0x44] sm:$0xf] %v1886
    %1951 = vst [vmem:[#allocation3 + $0x68] sm:$0xf] %v1887
    %1952 = vst [vmem:[#allocation3 + $0x8c] sm:$0xf] %v1888
    %1953 = vst [vmem:[#allocation3 + $0xb0] sm:$0xf] %v1889
    %1954 = vst [vmem:[#allocation3 + $0xd4] sm:$0xf] %v1890
    %1955 = vst [vmem:[#allocation3 + $0xf8] sm:$0xf] %v1891
    %1956 = vst [vmem:[#allocation3 + $0x11c] sm:$0xf] %v1892
    %1957 = vst [vmem:[#allocation3 + $0x140] sm:$0xf] %v1893
    %1958 = vst [vmem:[#allocation3 + $0x164] sm:$0xf] %v1894
    %1959 = vst [vmem:[#allocation3 + $0x188] sm:$0xf] %v1895
    %1960 = vst [vmem:[#allocation3 + $0x1ac] sm:$0xf] %v1896
    %1961 = vst [vmem:[#allocation3 + $0x1d0] sm:$0xf] %v1897
    %1962 = vst [vmem:[#allocation3 + $0x1f4] sm:$0xf] %v1898
    %1963 = vst [vmem:[#allocation3 + $0x218] sm:$0xf] %v1899
    %1964 = vst [vmem:[#allocation3 + $0x23c] sm:$0xf] %v1900
    %1965 = vst [vmem:[#allocation3 + $0x260] sm:$0xf] %v1901
    %1966 = vst [vmem:[#allocation3 + $0x284] sm:$0xf] %v1902
    %1967 = vst [vmem:[#allocation3 + $0x2a8] sm:$0xf] %v1903
    %1968 = vst [vmem:[#allocation3 + $0x2cc] sm:$0xf] %v1904
    %1969 = vst [vmem:[#allocation3 + $0x2f0] sm:$0xf] %v1905
    %1970 = vst [vmem:[#allocation3 + $0x314] sm:$0xf] %v1906
    %1971 = vst [vmem:[#allocation3 + $0x338] sm:$0xf] %v1907
    %1972 = vst [vmem:[#allocation3 + $0x35c] sm:$0xf] %v1908
    %1973 = vst [vmem:[#allocation3 + $0x380] sm:$0xf] %v1909
    %1974 = vst [vmem:[#allocation3 + $0x3a4] sm:$0xf] %v1910
    %1975 = vst [vmem:[#allocation3 + $0x3c8] sm:$0xf] %v1911
    %1976 = vst [vmem:[#allocation3 + $0x3ec] sm:$0xf] %v1912
    %1977 = vst [vmem:[#allocation3 + $0x410] sm:$0xf] %v1913
    %1978 = vst [vmem:[#allocation3 + $0x434] sm:$0xf] %v1914
    %1979 = vst [vmem:[#allocation3 + $0x458] sm:$0xf] %v1915
    %1980 = vst [vmem:[#allocation3 + $0x47c] sm:$0xf] %v1916
    %1981 = vst [vmem:[#allocation3 + $0x4a0] sm:$0xf] %v1917
    %1982 = vst [vmem:[#allocation3 + $0x4c4] sm:$0xf] %v1918
    %1983 = vst [vmem:[#allocation3 + $0x4e8] sm:$0xf] %v1919
    %1984 = vst [vmem:[#allocation3 + $0x50c] sm:$0xf] %v1920
    %1985 = vst [vmem:[#allocation3 + $0x530] sm:$0xf] %v1921
    %1986 = vst [vmem:[#allocation3 + $0x554] sm:$0xf] %v1922
    %1987 = vst [vmem:[#allocation3 + $0x578] sm:$0xf] %v1923
    %1988 = vst [vmem:[#allocation3 + $0x59c] sm:$0xf] %v1924
    %1989 = vst [vmem:[#allocation3 + $0x5c0] sm:$0xf] %v1925
    %1990 = vst [vmem:[#allocation3 + $0x5e4] sm:$0xf] %v1926
    %1991 = vst [vmem:[#allocation3 + $0x608] sm:$0xf] %v1927
    %1992 = vst [vmem:[#allocation3 + $0x62c] sm:$0xf] %v1928
    %1993 = vst [vmem:[#allocation3 + $0x650] sm:$0xf] %v1929
    %1994 = vst [vmem:[#allocation3 + $0x674] sm:$0xf] %v1930
    %1995 = vst [vmem:[#allocation3 + $0x698] sm:$0xf] %v1931
    %1996 = vst [vmem:[#allocation3 + $0x6bc] sm:$0xf] %v1932
    %1997 = vst [vmem:[#allocation3 + $0x6e0] sm:$0xf] %v1933
    %1998 = vst [vmem:[#allocation3 + $0x704] sm:$0xf] %v1934
    %1999 = vst [vmem:[#allocation3 + $0x728] sm:$0xf] %v1935
    %2000 = vst [vmem:[#allocation3 + $0x74c] sm:$0xf] %v1936
    %2001 = vst [vmem:[#allocation3 + $0x770] sm:$0xf] %v1937
    %2002 = vst [vmem:[#allocation3 + $0x794] sm:$0xf] %v1938
    %2003 = vst [vmem:[#allocation3 + $0x7b8] sm:$0xf] %v1939
    %2004 = vst [vmem:[#allocation3 + $0x7dc] sm:$0xf] %v1940
    %2005 = vst [vmem:[#allocation3 + $0x800] sm:$0xf] %v1941
    %2006 = vst [vmem:[#allocation3 + $0x824] sm:$0xf] %v1942
    %2007 = vst [vmem:[#allocation3 + $0x848] sm:$0xf] %v1943
    %2008 = vst [vmem:[#allocation3 + $0x86c] sm:$0xf] %v1944
    %2009 = vst [vmem:[#allocation3 + $0x890] sm:$0xf] %v1945
    %2010 = vst [vmem:[#allocation3 + $0x8b4] sm:$0xf] %v1946
    %2011 = vst [vmem:[#allocation3 + $0x8d8] sm:$0xf] %v1947
    %2012 = vst [vmem:[#allocation3 + $0x8fc] sm:$0xf] %v1948
    %v2013 = vld [vmem:[#allocation3] sm:$0xff]
    %v2014 = vld [vmem:[#allocation3 + $0x8] sm:$0xff]
    %v2015 = vld [vmem:[#allocation3 + $0x10] sm:$0xff]
    %v2016 = vld [vmem:[#allocation3 + $0x18] sm:$0xff]
    %v2017 = vld [vmem:[#allocation3 + $0x20] sm:$0xf]
    %v2018 = vld [vmem:[#allocation3 + $0x24] sm:$0xff]
    %v2019 = vld [vmem:[#allocation3 + $0x2c] sm:$0xff]
    %v2020 = vld [vmem:[#allocation3 + $0x34] sm:$0xff]
    %v2021 = vld [vmem:[#allocation3 + $0x3c] sm:$0xff]
    %v2022 = vld [vmem:[#allocation3 + $0x44] sm:$0xf]
    %v2023 = vld [vmem:[#allocation3 + $0x48] sm:$0xff]
    %v2024 = vld [vmem:[#allocation3 + $0x50] sm:$0xff]
    %v2025 = vld [vmem:[#allocation3 + $0x58] sm:$0xff]
    %v2026 = vld [vmem:[#allocation3 + $0x60] sm:$0xff]
    %v2027 = vld [vmem:[#allocation3 + $0x68] sm:$0xf]
    %v2028 = vld [vmem:[#allocation3 + $0x6c] sm:$0xff]
    %v2029 = vld [vmem:[#allocation3 + $0x74] sm:$0xff]
    %v2030 = vld [vmem:[#allocation3 + $0x7c] sm:$0xff]
    %v2031 = vld [vmem:[#allocation3 + $0x84] sm:$0xff]
    %v2032 = vld [vmem:[#allocation3 + $0x8c] sm:$0xf]
    %v2033 = vld [vmem:[#allocation3 + $0x90] sm:$0xff]
    %v2034 = vld [vmem:[#allocation3 + $0x98] sm:$0xff]
    %v2035 = vld [vmem:[#allocation3 + $0xa0] sm:$0xff]
    %v2036 = vld [vmem:[#allocation3 + $0xa8] sm:$0xff]
    %v2037 = vld [vmem:[#allocation3 + $0xb0] sm:$0xf]
    %v2038 = vld [vmem:[#allocation3 + $0xb4] sm:$0xff]
    %v2039 = vld [vmem:[#allocation3 + $0xbc] sm:$0xff]
    %v2040 = vld [vmem:[#allocation3 + $0xc4] sm:$0xff]
    %v2041 = vld [vmem:[#allocation3 + $0xcc] sm:$0xff]
    %v2042 = vld [vmem:[#allocation3 + $0xd4] sm:$0xf]
    %v2043 = vld [vmem:[#allocation3 + $0xd8] sm:$0xff]
    %v2044 = vld [vmem:[#allocation3 + $0xe0] sm:$0xff]
    %v2045 = vld [vmem:[#allocation3 + $0xe8] sm:$0xff]
    %v2046 = vld [vmem:[#allocation3 + $0xf0] sm:$0xff]
    %v2047 = vld [vmem:[#allocation3 + $0xf8] sm:$0xf]
    %v2048 = vld [vmem:[#allocation3 + $0xfc] sm:$0xff]
    %v2049 = vld [vmem:[#allocation3 + $0x104] sm:$0xff]
    %v2050 = vld [vmem:[#allocation3 + $0x10c] sm:$0xff]
    %v2051 = vld [vmem:[#allocation3 + $0x114] sm:$0xff]
    %v2052 = vld [vmem:[#allocation3 + $0x11c] sm:$0xf]
    %v2053 = vld [vmem:[#allocation3 + $0x120] sm:$0xff]
    %v2054 = vld [vmem:[#allocation3 + $0x128] sm:$0xff]
    %v2055 = vld [vmem:[#allocation3 + $0x130] sm:$0xff]
    %v2056 = vld [vmem:[#allocation3 + $0x138] sm:$0xff]
    %v2057 = vld [vmem:[#allocation3 + $0x140] sm:$0xf]
    %v2058 = vld [vmem:[#allocation3 + $0x144] sm:$0xff]
    %v2059 = vld [vmem:[#allocation3 + $0x14c] sm:$0xff]
    %v2060 = vld [vmem:[#allocation3 + $0x154] sm:$0xff]
    %v2061 = vld [vmem:[#allocation3 + $0x15c] sm:$0xff]
    %v2062 = vld [vmem:[#allocation3 + $0x164] sm:$0xf]
    %v2063 = vld [vmem:[#allocation3 + $0x168] sm:$0xff]
    %v2064 = vld [vmem:[#allocation3 + $0x170] sm:$0xff]
    %v2065 = vld [vmem:[#allocation3 + $0x178] sm:$0xff]
    %v2066 = vld [vmem:[#allocation3 + $0x180] sm:$0xff]
    %v2067 = vld [vmem:[#allocation3 + $0x188] sm:$0xf]
    %v2068 = vld [vmem:[#allocation3 + $0x18c] sm:$0xff]
    %v2069 = vld [vmem:[#allocation3 + $0x194] sm:$0xff]
    %v2070 = vld [vmem:[#allocation3 + $0x19c] sm:$0xff]
    %v2071 = vld [vmem:[#allocation3 + $0x1a4] sm:$0xff]
    %v2072 = vld [vmem:[#allocation3 + $0x1ac] sm:$0xf]
    %v2073 = vld [vmem:[#allocation3 + $0x1b0] sm:$0xff]
    %v2074 = vld [vmem:[#allocation3 + $0x1b8] sm:$0xff]
    %v2075 = vld [vmem:[#allocation3 + $0x1c0] sm:$0xff]
    %v2076 = vld [vmem:[#allocation3 + $0x1c8] sm:$0xff]
    %v2077 = vld [vmem:[#allocation3 + $0x1d0] sm:$0xf]
    %v2078 = vld [vmem:[#allocation3 + $0x1d4] sm:$0xff]
    %v2079 = vld [vmem:[#allocation3 + $0x1dc] sm:$0xff]
    %v2080 = vld [vmem:[#allocation3 + $0x1e4] sm:$0xff]
    %v2081 = vld [vmem:[#allocation3 + $0x1ec] sm:$0xff]
    %v2082 = vld [vmem:[#allocation3 + $0x1f4] sm:$0xf]
    %v2083 = vld [vmem:[#allocation3 + $0x1f8] sm:$0xff]
    %v2084 = vld [vmem:[#allocation3 + $0x200] sm:$0xff]
    %v2085 = vld [vmem:[#allocation3 + $0x208] sm:$0xff]
    %v2086 = vld [vmem:[#allocation3 + $0x210] sm:$0xff]
    %v2087 = vld [vmem:[#allocation3 + $0x218] sm:$0xf]
    %v2088 = vld [vmem:[#allocation3 + $0x21c] sm:$0xff]
    %v2089 = vld [vmem:[#allocation3 + $0x224] sm:$0xff]
    %v2090 = vld [vmem:[#allocation3 + $0x22c] sm:$0xff]
    %v2091 = vld [vmem:[#allocation3 + $0x234] sm:$0xff]
    %v2092 = vld [vmem:[#allocation3 + $0x23c] sm:$0xf]
    %v2093 = vld [vmem:[#allocation3 + $0x240] sm:$0xff]
    %v2094 = vld [vmem:[#allocation3 + $0x248] sm:$0xff]
    %v2095 = vld [vmem:[#allocation3 + $0x250] sm:$0xff]
    %v2096 = vld [vmem:[#allocation3 + $0x258] sm:$0xff]
    %v2097 = vld [vmem:[#allocation3 + $0x260] sm:$0xf]
    %v2098 = vld [vmem:[#allocation3 + $0x264] sm:$0xff]
    %v2099 = vld [vmem:[#allocation3 + $0x26c] sm:$0xff]
    %v2100 = vld [vmem:[#allocation3 + $0x274] sm:$0xff]
    %v2101 = vld [vmem:[#allocation3 + $0x27c] sm:$0xff]
    %v2102 = vld [vmem:[#allocation3 + $0x284] sm:$0xf]
    %v2103 = vld [vmem:[#allocation3 + $0x288] sm:$0xff]
    %v2104 = vld [vmem:[#allocation3 + $0x290] sm:$0xff]
    %v2105 = vld [vmem:[#allocation3 + $0x298] sm:$0xff]
    %v2106 = vld [vmem:[#allocation3 + $0x2a0] sm:$0xff]
    %v2107 = vld [vmem:[#allocation3 + $0x2a8] sm:$0xf]
    %v2108 = vld [vmem:[#allocation3 + $0x2ac] sm:$0xff]
    %v2109 = vld [vmem:[#allocation3 + $0x2b4] sm:$0xff]
    %v2110 = vld [vmem:[#allocation3 + $0x2bc] sm:$0xff]
    %v2111 = vld [vmem:[#allocation3 + $0x2c4] sm:$0xff]
    %v2112 = vld [vmem:[#allocation3 + $0x2cc] sm:$0xf]
    %v2113 = vld [vmem:[#allocation3 + $0x2d0] sm:$0xff]
    %v2114 = vld [vmem:[#allocation3 + $0x2d8] sm:$0xff]
    %v2115 = vld [vmem:[#allocation3 + $0x2e0] sm:$0xff]
    %v2116 = vld [vmem:[#allocation3 + $0x2e8] sm:$0xff]
    %v2117 = vld [vmem:[#allocation3 + $0x2f0] sm:$0xf]
    %v2118 = vld [vmem:[#allocation3 + $0x2f4] sm:$0xff]
    %v2119 = vld [vmem:[#allocation3 + $0x2fc] sm:$0xff]
    %v2120 = vld [vmem:[#allocation3 + $0x304] sm:$0xff]
    %v2121 = vld [vmem:[#allocation3 + $0x30c] sm:$0xff]
    %v2122 = vld [vmem:[#allocation3 + $0x314] sm:$0xf]
    %v2123 = vld [vmem:[#allocation3 + $0x318] sm:$0xff]
    %v2124 = vld [vmem:[#allocation3 + $0x320] sm:$0xff]
    %v2125 = vld [vmem:[#allocation3 + $0x328] sm:$0xff]
    %v2126 = vld [vmem:[#allocation3 + $0x330] sm:$0xff]
    %v2127 = vld [vmem:[#allocation3 + $0x338] sm:$0xf]
    %v2128 = vld [vmem:[#allocation3 + $0x33c] sm:$0xff]
    %v2129 = vld [vmem:[#allocation3 + $0x344] sm:$0xff]
    %v2130 = vld [vmem:[#allocation3 + $0x34c] sm:$0xff]
    %v2131 = vld [vmem:[#allocation3 + $0x354] sm:$0xff]
    %v2132 = vld [vmem:[#allocation3 + $0x35c] sm:$0xf]
    %v2133 = vld [vmem:[#allocation3 + $0x360] sm:$0xff]
    %v2134 = vld [vmem:[#allocation3 + $0x368] sm:$0xff]
    %v2135 = vld [vmem:[#allocation3 + $0x370] sm:$0xff]
    %v2136 = vld [vmem:[#allocation3 + $0x378] sm:$0xff]
    %v2137 = vld [vmem:[#allocation3 + $0x380] sm:$0xf]
    %v2138 = vld [vmem:[#allocation3 + $0x384] sm:$0xff]
    %v2139 = vld [vmem:[#allocation3 + $0x38c] sm:$0xff]
    %v2140 = vld [vmem:[#allocation3 + $0x394] sm:$0xff]
    %v2141 = vld [vmem:[#allocation3 + $0x39c] sm:$0xff]
    %v2142 = vld [vmem:[#allocation3 + $0x3a4] sm:$0xf]
    %v2143 = vld [vmem:[#allocation3 + $0x3a8] sm:$0xff]
    %v2144 = vld [vmem:[#allocation3 + $0x3b0] sm:$0xff]
    %v2145 = vld [vmem:[#allocation3 + $0x3b8] sm:$0xff]
    %v2146 = vld [vmem:[#allocation3 + $0x3c0] sm:$0xff]
    %v2147 = vld [vmem:[#allocation3 + $0x3c8] sm:$0xf]
    %v2148 = vld [vmem:[#allocation3 + $0x3cc] sm:$0xff]
    %v2149 = vld [vmem:[#allocation3 + $0x3d4] sm:$0xff]
    %v2150 = vld [vmem:[#allocation3 + $0x3dc] sm:$0xff]
    %v2151 = vld [vmem:[#allocation3 + $0x3e4] sm:$0xff]
    %v2152 = vld [vmem:[#allocation3 + $0x3ec] sm:$0xf]
    %v2153 = vld [vmem:[#allocation3 + $0x3f0] sm:$0xff]
    %v2154 = vld [vmem:[#allocation3 + $0x3f8] sm:$0xff]
    %v2155 = vld [vmem:[#allocation3 + $0x400] sm:$0xff]
    %v2156 = vld [vmem:[#allocation3 + $0x408] sm:$0xff]
    %v2157 = vld [vmem:[#allocation3 + $0x410] sm:$0xf]
    %v2158 = vld [vmem:[#allocation3 + $0x414] sm:$0xff]
    %v2159 = vld [vmem:[#allocation3 + $0x41c] sm:$0xff]
    %v2160 = vld [vmem:[#allocation3 + $0x424] sm:$0xff]
    %v2161 = vld [vmem:[#allocation3 + $0x42c] sm:$0xff]
    %v2162 = vld [vmem:[#allocation3 + $0x434] sm:$0xf]
    %v2163 = vld [vmem:[#allocation3 + $0x438] sm:$0xff]
    %v2164 = vld [vmem:[#allocation3 + $0x440] sm:$0xff]
    %v2165 = vld [vmem:[#allocation3 + $0x448] sm:$0xff]
    %v2166 = vld [vmem:[#allocation3 + $0x450] sm:$0xff]
    %v2167 = vld [vmem:[#allocation3 + $0x458] sm:$0xf]
    %v2168 = vld [vmem:[#allocation3 + $0x45c] sm:$0xff]
    %v2169 = vld [vmem:[#allocation3 + $0x464] sm:$0xff]
    %v2170 = vld [vmem:[#allocation3 + $0x46c] sm:$0xff]
    %v2171 = vld [vmem:[#allocation3 + $0x474] sm:$0xff]
    %v2172 = vld [vmem:[#allocation3 + $0x47c] sm:$0xf]
    %v2173 = vld [vmem:[#allocation3 + $0x480] sm:$0xff]
    %v2174 = vld [vmem:[#allocation3 + $0x488] sm:$0xff]
    %v2175 = vld [vmem:[#allocation3 + $0x490] sm:$0xff]
    %v2176 = vld [vmem:[#allocation3 + $0x498] sm:$0xff]
    %v2177 = vld [vmem:[#allocation3 + $0x4a0] sm:$0xf]
    %v2178 = vld [vmem:[#allocation3 + $0x4a4] sm:$0xff]
    %v2179 = vld [vmem:[#allocation3 + $0x4ac] sm:$0xff]
    %v2180 = vld [vmem:[#allocation3 + $0x4b4] sm:$0xff]
    %v2181 = vld [vmem:[#allocation3 + $0x4bc] sm:$0xff]
    %v2182 = vld [vmem:[#allocation3 + $0x4c4] sm:$0xf]
    %v2183 = vld [vmem:[#allocation3 + $0x4c8] sm:$0xff]
    %v2184 = vld [vmem:[#allocation3 + $0x4d0] sm:$0xff]
    %v2185 = vld [vmem:[#allocation3 + $0x4d8] sm:$0xff]
    %v2186 = vld [vmem:[#allocation3 + $0x4e0] sm:$0xff]
    %v2187 = vld [vmem:[#allocation3 + $0x4e8] sm:$0xf]
    %v2188 = vld [vmem:[#allocation3 + $0x4ec] sm:$0xff]
    %v2189 = vld [vmem:[#allocation3 + $0x4f4] sm:$0xff]
    %v2190 = vld [vmem:[#allocation3 + $0x4fc] sm:$0xff]
    %v2191 = vld [vmem:[#allocation3 + $0x504] sm:$0xff]
    %v2192 = vld [vmem:[#allocation3 + $0x50c] sm:$0xf]
    %v2193 = vld [vmem:[#allocation3 + $0x510] sm:$0xff]
    %v2194 = vld [vmem:[#allocation3 + $0x518] sm:$0xff]
    %v2195 = vld [vmem:[#allocation3 + $0x520] sm:$0xff]
    %v2196 = vld [vmem:[#allocation3 + $0x528] sm:$0xff]
    %v2197 = vld [vmem:[#allocation3 + $0x530] sm:$0xf]
    %v2198 = vld [vmem:[#allocation3 + $0x534] sm:$0xff]
    %v2199 = vld [vmem:[#allocation3 + $0x53c] sm:$0xff]
    %v2200 = vld [vmem:[#allocation3 + $0x544] sm:$0xff]
    %v2201 = vld [vmem:[#allocation3 + $0x54c] sm:$0xff]
    %v2202 = vld [vmem:[#allocation3 + $0x554] sm:$0xf]
    %v2203 = vld [vmem:[#allocation3 + $0x558] sm:$0xff]
    %v2204 = vld [vmem:[#allocation3 + $0x560] sm:$0xff]
    %v2205 = vld [vmem:[#allocation3 + $0x568] sm:$0xff]
    %v2206 = vld [vmem:[#allocation3 + $0x570] sm:$0xff]
    %v2207 = vld [vmem:[#allocation3 + $0x578] sm:$0xf]
    %v2208 = vld [vmem:[#allocation3 + $0x57c] sm:$0xff]
    %v2209 = vld [vmem:[#allocation3 + $0x584] sm:$0xff]
    %v2210 = vld [vmem:[#allocation3 + $0x58c] sm:$0xff]
    %v2211 = vld [vmem:[#allocation3 + $0x594] sm:$0xff]
    %v2212 = vld [vmem:[#allocation3 + $0x59c] sm:$0xf]
    %v2213 = vld [vmem:[#allocation3 + $0x5a0] sm:$0xff]
    %v2214 = vld [vmem:[#allocation3 + $0x5a8] sm:$0xff]
    %v2215 = vld [vmem:[#allocation3 + $0x5b0] sm:$0xff]
    %v2216 = vld [vmem:[#allocation3 + $0x5b8] sm:$0xff]
    %v2217 = vld [vmem:[#allocation3 + $0x5c0] sm:$0xf]
    %v2218 = vld [vmem:[#allocation3 + $0x5c4] sm:$0xff]
    %v2219 = vld [vmem:[#allocation3 + $0x5cc] sm:$0xff]
    %v2220 = vld [vmem:[#allocation3 + $0x5d4] sm:$0xff]
    %v2221 = vld [vmem:[#allocation3 + $0x5dc] sm:$0xff]
    %v2222 = vld [vmem:[#allocation3 + $0x5e4] sm:$0xf]
    %v2223 = vld [vmem:[#allocation3 + $0x5e8] sm:$0xff]
    %v2224 = vld [vmem:[#allocation3 + $0x5f0] sm:$0xff]
    %v2225 = vld [vmem:[#allocation3 + $0x5f8] sm:$0xff]
    %v2226 = vld [vmem:[#allocation3 + $0x600] sm:$0xff]
    %v2227 = vld [vmem:[#allocation3 + $0x608] sm:$0xf]
    %v2228 = vld [vmem:[#allocation3 + $0x60c] sm:$0xff]
    %v2229 = vld [vmem:[#allocation3 + $0x614] sm:$0xff]
    %v2230 = vld [vmem:[#allocation3 + $0x61c] sm:$0xff]
    %v2231 = vld [vmem:[#allocation3 + $0x624] sm:$0xff]
    %v2232 = vld [vmem:[#allocation3 + $0x62c] sm:$0xf]
    %v2233 = vld [vmem:[#allocation3 + $0x630] sm:$0xff]
    %v2234 = vld [vmem:[#allocation3 + $0x638] sm:$0xff]
    %v2235 = vld [vmem:[#allocation3 + $0x640] sm:$0xff]
    %v2236 = vld [vmem:[#allocation3 + $0x648] sm:$0xff]
    %v2237 = vld [vmem:[#allocation3 + $0x650] sm:$0xf]
    %v2238 = vld [vmem:[#allocation3 + $0x654] sm:$0xff]
    %v2239 = vld [vmem:[#allocation3 + $0x65c] sm:$0xff]
    %v2240 = vld [vmem:[#allocation3 + $0x664] sm:$0xff]
    %v2241 = vld [vmem:[#allocation3 + $0x66c] sm:$0xff]
    %v2242 = vld [vmem:[#allocation3 + $0x674] sm:$0xf]
    %v2243 = vld [vmem:[#allocation3 + $0x678] sm:$0xff]
    %v2244 = vld [vmem:[#allocation3 + $0x680] sm:$0xff]
    %v2245 = vld [vmem:[#allocation3 + $0x688] sm:$0xff]
    %v2246 = vld [vmem:[#allocation3 + $0x690] sm:$0xff]
    %v2247 = vld [vmem:[#allocation3 + $0x698] sm:$0xf]
    %v2248 = vld [vmem:[#allocation3 + $0x69c] sm:$0xff]
    %v2249 = vld [vmem:[#allocation3 + $0x6a4] sm:$0xff]
    %v2250 = vld [vmem:[#allocation3 + $0x6ac] sm:$0xff]
    %v2251 = vld [vmem:[#allocation3 + $0x6b4] sm:$0xff]
    %v2252 = vld [vmem:[#allocation3 + $0x6bc] sm:$0xf]
    %v2253 = vld [vmem:[#allocation3 + $0x6c0] sm:$0xff]
    %v2254 = vld [vmem:[#allocation3 + $0x6c8] sm:$0xff]
    %v2255 = vld [vmem:[#allocation3 + $0x6d0] sm:$0xff]
    %v2256 = vld [vmem:[#allocation3 + $0x6d8] sm:$0xff]
    %v2257 = vld [vmem:[#allocation3 + $0x6e0] sm:$0xf]
    %v2258 = vld [vmem:[#allocation3 + $0x6e4] sm:$0xff]
    %v2259 = vld [vmem:[#allocation3 + $0x6ec] sm:$0xff]
    %v2260 = vld [vmem:[#allocation3 + $0x6f4] sm:$0xff]
    %v2261 = vld [vmem:[#allocation3 + $0x6fc] sm:$0xff]
    %v2262 = vld [vmem:[#allocation3 + $0x704] sm:$0xf]
    %v2263 = vld [vmem:[#allocation3 + $0x708] sm:$0xff]
    %v2264 = vld [vmem:[#allocation3 + $0x710] sm:$0xff]
    %v2265 = vld [vmem:[#allocation3 + $0x718] sm:$0xff]
    %v2266 = vld [vmem:[#allocation3 + $0x720] sm:$0xff]
    %v2267 = vld [vmem:[#allocation3 + $0x728] sm:$0xf]
    %v2268 = vld [vmem:[#allocation3 + $0x72c] sm:$0xff]
    %v2269 = vld [vmem:[#allocation3 + $0x734] sm:$0xff]
    %v2270 = vld [vmem:[#allocation3 + $0x73c] sm:$0xff]
    %v2271 = vld [vmem:[#allocation3 + $0x744] sm:$0xff]
    %v2272 = vld [vmem:[#allocation3 + $0x74c] sm:$0xf]
    %v2273 = vld [vmem:[#allocation3 + $0x750] sm:$0xff]
    %v2274 = vld [vmem:[#allocation3 + $0x758] sm:$0xff]
    %v2275 = vld [vmem:[#allocation3 + $0x760] sm:$0xff]
    %v2276 = vld [vmem:[#allocation3 + $0x768] sm:$0xff]
    %v2277 = vld [vmem:[#allocation3 + $0x770] sm:$0xf]
    %v2278 = vld [vmem:[#allocation3 + $0x774] sm:$0xff]
    %v2279 = vld [vmem:[#allocation3 + $0x77c] sm:$0xff]
    %v2280 = vld [vmem:[#allocation3 + $0x784] sm:$0xff]
    %v2281 = vld [vmem:[#allocation3 + $0x78c] sm:$0xff]
    %v2282 = vld [vmem:[#allocation3 + $0x794] sm:$0xf]
    %v2283 = vld [vmem:[#allocation3 + $0x798] sm:$0xff]
    %v2284 = vld [vmem:[#allocation3 + $0x7a0] sm:$0xff]
    %v2285 = vld [vmem:[#allocation3 + $0x7a8] sm:$0xff]
    %v2286 = vld [vmem:[#allocation3 + $0x7b0] sm:$0xff]
    %v2287 = vld [vmem:[#allocation3 + $0x7b8] sm:$0xf]
    %v2288 = vld [vmem:[#allocation3 + $0x7bc] sm:$0xff]
    %v2289 = vld [vmem:[#allocation3 + $0x7c4] sm:$0xff]
    %v2290 = vld [vmem:[#allocation3 + $0x7cc] sm:$0xff]
    %v2291 = vld [vmem:[#allocation3 + $0x7d4] sm:$0xff]
    %v2292 = vld [vmem:[#allocation3 + $0x7dc] sm:$0xf]
    %v2293 = vld [vmem:[#allocation3 + $0x7e0] sm:$0xff]
    %v2294 = vld [vmem:[#allocation3 + $0x7e8] sm:$0xff]
    %v2295 = vld [vmem:[#allocation3 + $0x7f0] sm:$0xff]
    %v2296 = vld [vmem:[#allocation3 + $0x7f8] sm:$0xff]
    %v2297 = vld [vmem:[#allocation3 + $0x800] sm:$0xf]
    %v2298 = vld [vmem:[#allocation3 + $0x804] sm:$0xff]
    %v2299 = vld [vmem:[#allocation3 + $0x80c] sm:$0xff]
    %v2300 = vld [vmem:[#allocation3 + $0x814] sm:$0xff]
    %v2301 = vld [vmem:[#allocation3 + $0x81c] sm:$0xff]
    %v2302 = vld [vmem:[#allocation3 + $0x824] sm:$0xf]
    %v2303 = vld [vmem:[#allocation3 + $0x828] sm:$0xff]
    %v2304 = vld [vmem:[#allocation3 + $0x830] sm:$0xff]
    %v2305 = vld [vmem:[#allocation3 + $0x838] sm:$0xff]
    %v2306 = vld [vmem:[#allocation3 + $0x840] sm:$0xff]
    %v2307 = vld [vmem:[#allocation3 + $0x848] sm:$0xf]
    %v2308 = vld [vmem:[#allocation3 + $0x84c] sm:$0xff]
    %v2309 = vld [vmem:[#allocation3 + $0x854] sm:$0xff]
    %v2310 = vld [vmem:[#allocation3 + $0x85c] sm:$0xff]
    %v2311 = vld [vmem:[#allocation3 + $0x864] sm:$0xff]
    %v2312 = vld [vmem:[#allocation3 + $0x86c] sm:$0xf]
    %v2313 = vld [vmem:[#allocation3 + $0x870] sm:$0xff]
    %v2314 = vld [vmem:[#allocation3 + $0x878] sm:$0xff]
    %v2315 = vld [vmem:[#allocation3 + $0x880] sm:$0xff]
    %v2316 = vld [vmem:[#allocation3 + $0x888] sm:$0xff]
    %v2317 = vld [vmem:[#allocation3 + $0x890] sm:$0xf]
    %v2318 = vld [vmem:[#allocation3 + $0x894] sm:$0xff]
    %v2319 = vld [vmem:[#allocation3 + $0x89c] sm:$0xff]
    %v2320 = vld [vmem:[#allocation3 + $0x8a4] sm:$0xff]
    %v2321 = vld [vmem:[#allocation3 + $0x8ac] sm:$0xff]
    %v2322 = vld [vmem:[#allocation3 + $0x8b4] sm:$0xf]
    %v2323 = vld [vmem:[#allocation3 + $0x8b8] sm:$0xff]
    %v2324 = vld [vmem:[#allocation3 + $0x8c0] sm:$0xff]
    %v2325 = vld [vmem:[#allocation3 + $0x8c8] sm:$0xff]
    %v2326 = vld [vmem:[#allocation3 + $0x8d0] sm:$0xff]
    %v2327 = vld [vmem:[#allocation3 + $0x8d8] sm:$0xf]
    %v2328 = vld [vmem:[#allocation3 + $0x8dc] sm:$0xff]
    %v2329 = vld [vmem:[#allocation3 + $0x8e4] sm:$0xff]
    %v2330 = vld [vmem:[#allocation3 + $0x8ec] sm:$0xff]
    %v2331 = vld [vmem:[#allocation3 + $0x8f4] sm:$0xff]
    %v2332 = vld [vmem:[#allocation3 + $0x8fc] sm:$0xf]
    %v2333 = vld [vmem:[#allocation7] sm:$0xf]
    %v2334 = vld [vmem:[#allocation7 + $0x4] sm:$0xf]
    %v2335 = vld [vmem:[#allocation7 + $0x8] sm:$0xf]
    %v2336 = vld [vmem:[#allocation7 + $0xc] sm:$0xf]
    %v2337 = vld [vmem:[#allocation7 + $0x10] sm:$0xf]
    %v2338 = vld [vmem:[#allocation7 + $0x14] sm:$0xf]
    %v2339 = vld [vmem:[#allocation7 + $0x18] sm:$0xf]
    %v2340 = vld [vmem:[#allocation7 + $0x1c] sm:$0xf]
    %v2341 = vld [vmem:[#allocation7 + $0x20] sm:$0xf]
    %v2342 = vld [vmem:[#allocation7 + $0x24] sm:$0xf]
    %v2343 = vld [vmem:[#allocation7 + $0x28] sm:$0xf]
    %v2344 = vld [vmem:[#allocation7 + $0x2c] sm:$0xf]
    %v2345 = vld [vmem:[#allocation7 + $0x30] sm:$0xf]
    %v2346 = vld [vmem:[#allocation7 + $0x34] sm:$0xf]
    %v2347 = vld [vmem:[#allocation7 + $0x38] sm:$0xf]
    %v2348 = vld [vmem:[#allocation7 + $0x3c] sm:$0xf]
    %v2349 = vld [vmem:[#allocation7 + $0x40] sm:$0xf]
    %v2350 = vld [vmem:[#allocation7 + $0x44] sm:$0xf]
    %v2351 = vld [vmem:[#allocation7 + $0x48] sm:$0xf]
    %v2352 = vld [vmem:[#allocation7 + $0x4c] sm:$0xf]
    %v2353 = vld [vmem:[#allocation7 + $0x50] sm:$0xf]
    %v2354 = vld [vmem:[#allocation7 + $0x54] sm:$0xf]
    %v2355 = vld [vmem:[#allocation7 + $0x58] sm:$0xf]
    %v2356 = vld [vmem:[#allocation7 + $0x5c] sm:$0xf]
    %v2357 = vld [vmem:[#allocation7 + $0x60] sm:$0xf]
    %v2358 = vld [vmem:[#allocation7 + $0x64] sm:$0xf]
    %v2359 = vld [vmem:[#allocation7 + $0x68] sm:$0xf]
    %v2360 = vld [vmem:[#allocation7 + $0x6c] sm:$0xf]
    %v2361 = vld [vmem:[#allocation7 + $0x70] sm:$0xf]
    %v2362 = vld [vmem:[#allocation7 + $0x74] sm:$0xf]
    %v2363 = vld [vmem:[#allocation7 + $0x78] sm:$0xf]
    %v2364 = vld [vmem:[#allocation7 + $0x7c] sm:$0xf]
    %v2365 = vld [vmem:[#allocation7 + $0x80] sm:$0xf]
    %v2366 = vld [vmem:[#allocation7 + $0x84] sm:$0xf]
    %v2367 = vld [vmem:[#allocation7 + $0x88] sm:$0xf]
    %v2368 = vld [vmem:[#allocation7 + $0x8c] sm:$0xf]
    %v2369 = vld [vmem:[#allocation7 + $0x90] sm:$0xf]
    %v2370 = vld [vmem:[#allocation7 + $0x94] sm:$0xf]
    %v2371 = vld [vmem:[#allocation7 + $0x98] sm:$0xf]
    %v2372 = vld [vmem:[#allocation7 + $0x9c] sm:$0xf]
    %v2373 = vld [vmem:[#allocation7 + $0xa0] sm:$0xf]
    %v2374 = vld [vmem:[#allocation7 + $0xa4] sm:$0xf]
    %v2375 = vld [vmem:[#allocation7 + $0xa8] sm:$0xf]
    %v2376 = vld [vmem:[#allocation7 + $0xac] sm:$0xf]
    %v2377 = vld [vmem:[#allocation7 + $0xb0] sm:$0xf]
    %v2378 = vld [vmem:[#allocation7 + $0xb4] sm:$0xf]
    %v2379 = vld [vmem:[#allocation7 + $0xb8] sm:$0xf]
    %v2380 = vld [vmem:[#allocation7 + $0xbc] sm:$0xf]
    %v2381 = vld [vmem:[#allocation7 + $0xc0] sm:$0xf]
    %v2382 = vld [vmem:[#allocation7 + $0xc4] sm:$0xf]
    %v2383 = vld [vmem:[#allocation7 + $0xc8] sm:$0xf]
    %v2384 = vld [vmem:[#allocation7 + $0xcc] sm:$0xf]
    %v2385 = vld [vmem:[#allocation7 + $0xd0] sm:$0xf]
    %v2386 = vld [vmem:[#allocation7 + $0xd4] sm:$0xf]
    %v2387 = vld [vmem:[#allocation7 + $0xd8] sm:$0xf]
    %v2388 = vld [vmem:[#allocation7 + $0xdc] sm:$0xf]
    %v2389 = vld [vmem:[#allocation7 + $0xe0] sm:$0xf]
    %v2390 = vld [vmem:[#allocation7 + $0xe4] sm:$0xf]
    %v2391 = vld [vmem:[#allocation7 + $0xe8] sm:$0xf]
    %v2392 = vld [vmem:[#allocation7 + $0xec] sm:$0xf]
    %v2393 = vld [vmem:[#allocation7 + $0xf0] sm:$0xf]
    %v2394 = vld [vmem:[#allocation7 + $0xf4] sm:$0xf]
    %v2395 = vld [vmem:[#allocation7 + $0xf8] sm:$0xf]
    %v2396 = vld [vmem:[#allocation7 + $0xfc] sm:$0xf]
    %v2397 = vld [vmem:[#allocation7 + $0x100] sm:$0xf]
    %v2398 = vld [vmem:[#allocation7 + $0x104] sm:$0xf]
    %v2399 = vld [vmem:[#allocation7 + $0x108] sm:$0xf]
    %v2400 = vld [vmem:[#allocation7 + $0x10c] sm:$0xf]
    %v2401 = vld [vmem:[#allocation7 + $0x110] sm:$0xf]
    %v2402 = vld [vmem:[#allocation7 + $0x114] sm:$0xf]
    %v2403 = vld [vmem:[#allocation7 + $0x118] sm:$0xf]
    %v2404 = vld [vmem:[#allocation7 + $0x11c] sm:$0xf]
    %v2405 = vld [vmem:[#allocation7 + $0x120] sm:$0xf]
    %v2406 = vld [vmem:[#allocation7 + $0x124] sm:$0xf]
    %v2407 = vld [vmem:[#allocation7 + $0x128] sm:$0xf]
    %v2408 = vld [vmem:[#allocation7 + $0x12c] sm:$0xf]
    %v2409 = vld [vmem:[#allocation7 + $0x130] sm:$0xf]
    %v2410 = vld [vmem:[#allocation7 + $0x134] sm:$0xf]
    %v2411 = vld [vmem:[#allocation7 + $0x138] sm:$0xf]
    %v2412 = vld [vmem:[#allocation7 + $0x13c] sm:$0xf]
    %v2413 = vld [vmem:[#allocation7 + $0x140] sm:$0xf]
    %v2414 = vld [vmem:[#allocation7 + $0x144] sm:$0xf]
    %v2415 = vld [vmem:[#allocation7 + $0x148] sm:$0xf]
    %v2416 = vld [vmem:[#allocation7 + $0x14c] sm:$0xf]
    %v2417 = vld [vmem:[#allocation7 + $0x150] sm:$0xf]
    %v2418 = vld [vmem:[#allocation7 + $0x154] sm:$0xf]
    %v2419 = vld [vmem:[#allocation7 + $0x158] sm:$0xf]
    %v2420 = vld [vmem:[#allocation7 + $0x15c] sm:$0xf]
    %v2421 = vld [vmem:[#allocation7 + $0x160] sm:$0xf]
    %v2422 = vld [vmem:[#allocation7 + $0x164] sm:$0xf]
    %v2423 = vld [vmem:[#allocation7 + $0x168] sm:$0xf]
    %v2424 = vld [vmem:[#allocation7 + $0x16c] sm:$0xf]
    %v2425 = vld [vmem:[#allocation7 + $0x170] sm:$0xf]
    %v2426 = vld [vmem:[#allocation7 + $0x174] sm:$0xf]
    %v2427 = vld [vmem:[#allocation7 + $0x178] sm:$0xf]
    %v2428 = vld [vmem:[#allocation7 + $0x17c] sm:$0xf]
    %v2429 = vld [vmem:[#allocation7 + $0x180] sm:$0xf]
    %v2430 = vld [vmem:[#allocation7 + $0x184] sm:$0xf]
    %v2431 = vld [vmem:[#allocation7 + $0x188] sm:$0xf]
    %v2432 = vld [vmem:[#allocation7 + $0x18c] sm:$0xf]
    %v2433 = vld [vmem:[#allocation7 + $0x190] sm:$0xf]
    %v2434 = vld [vmem:[#allocation7 + $0x194] sm:$0xf]
    %v2435 = vld [vmem:[#allocation7 + $0x198] sm:$0xf]
    %v2436 = vld [vmem:[#allocation7 + $0x19c] sm:$0xf]
    %v2437 = vld [vmem:[#allocation7 + $0x1a0] sm:$0xf]
    %v2438 = vld [vmem:[#allocation7 + $0x1a4] sm:$0xf]
    %v2439 = vld [vmem:[#allocation7 + $0x1a8] sm:$0xf]
    %v2440 = vld [vmem:[#allocation7 + $0x1ac] sm:$0xf]
    %v2441 = vld [vmem:[#allocation7 + $0x1b0] sm:$0xf]
    %v2442 = vld [vmem:[#allocation7 + $0x1b4] sm:$0xf]
    %v2443 = vld [vmem:[#allocation7 + $0x1b8] sm:$0xf]
    %v2444 = vld [vmem:[#allocation7 + $0x1bc] sm:$0xf]
    %v2445 = vld [vmem:[#allocation7 + $0x1c0] sm:$0xf]
    %v2446 = vld [vmem:[#allocation7 + $0x1c4] sm:$0xf]
    %v2447 = vld [vmem:[#allocation7 + $0x1c8] sm:$0xf]
    %v2448 = vld [vmem:[#allocation7 + $0x1cc] sm:$0xf]
    %v2449 = vld [vmem:[#allocation7 + $0x1d0] sm:$0xf]
    %v2450 = vld [vmem:[#allocation7 + $0x1d4] sm:$0xf]
    %v2451 = vld [vmem:[#allocation7 + $0x1d8] sm:$0xf]
    %v2452 = vld [vmem:[#allocation7 + $0x1dc] sm:$0xf]
    %v2453 = vld [vmem:[#allocation7 + $0x1e0] sm:$0xf]
    %v2454 = vld [vmem:[#allocation7 + $0x1e4] sm:$0xf]
    %v2455 = vld [vmem:[#allocation7 + $0x1e8] sm:$0xf]
    %v2456 = vld [vmem:[#allocation7 + $0x1ec] sm:$0xf]
    %v2457 = vld [vmem:[#allocation7 + $0x1f0] sm:$0xf]
    %v2458 = vld [vmem:[#allocation7 + $0x1f4] sm:$0xf]
    %v2459 = vld [vmem:[#allocation7 + $0x1f8] sm:$0xf]
    %v2460 = vld [vmem:[#allocation7 + $0x1fc] sm:$0xf]
    %v2461 = vld [vmem:[#allocation7 + $0x200] sm:$0xf]
    %v2462 = vld [vmem:[#allocation7 + $0x204] sm:$0xf]
    %v2463 = vld [vmem:[#allocation7 + $0x208] sm:$0xf]
    %v2464 = vld [vmem:[#allocation7 + $0x20c] sm:$0xf]
    %v2465 = vld [vmem:[#allocation7 + $0x210] sm:$0xf]
    %v2466 = vld [vmem:[#allocation7 + $0x214] sm:$0xf]
    %v2467 = vld [vmem:[#allocation7 + $0x218] sm:$0xf]
    %v2468 = vld [vmem:[#allocation7 + $0x21c] sm:$0xf]
    %v2469 = vld [vmem:[#allocation7 + $0x220] sm:$0xf]
    %v2470 = vld [vmem:[#allocation7 + $0x224] sm:$0xf]
    %v2471 = vld [vmem:[#allocation7 + $0x228] sm:$0xf]
    %v2472 = vld [vmem:[#allocation7 + $0x22c] sm:$0xf]
    %v2473 = vld [vmem:[#allocation7 + $0x230] sm:$0xf]
    %v2474 = vld [vmem:[#allocation7 + $0x234] sm:$0xf]
    %v2475 = vld [vmem:[#allocation7 + $0x238] sm:$0xf]
    %v2476 = vld [vmem:[#allocation7 + $0x23c] sm:$0xf]
    %v2477 = vld [vmem:[%s2] sm:$0x1]
    %v2479 = vperm.slane %v2477, 0
    %v2801 = vunpack.c.l.b16 %v2013
    %v2802 = vunpack.c.h.b16 %v2013
    %v2803 = vunpack.c.l.b16 %v2014
    %v2804 = vunpack.c.h.b16 %v2014
    %v2805 = vunpack.c.l.b16 %v2015
    %v2806 = vunpack.c.h.b16 %v2015
    %v2807 = vunpack.c.l.b16 %v2016
    %v2808 = vunpack.c.h.b16 %v2016
    %v2809 = vunpack.c.l.b16 %v2017
    %v2810 = vunpack.c.l.b16 %v2018
    %v2811 = vunpack.c.h.b16 %v2018
    %v2812 = vunpack.c.l.b16 %v2019
    %v2813 = vunpack.c.h.b16 %v2019
    %v2814 = vunpack.c.l.b16 %v2020
    %v2815 = vunpack.c.h.b16 %v2020
    %v2816 = vunpack.c.l.b16 %v2021
    %v2817 = vunpack.c.h.b16 %v2021
    %v2818 = vunpack.c.l.b16 %v2022
    %v2819 = vunpack.c.l.b16 %v2023
    %v2820 = vunpack.c.h.b16 %v2023
    %v2821 = vunpack.c.l.b16 %v2024
    %v2822 = vunpack.c.h.b16 %v2024
    %v2823 = vunpack.c.l.b16 %v2025
    %v2824 = vunpack.c.h.b16 %v2025
    %v2825 = vunpack.c.l.b16 %v2026
    %v2826 = vunpack.c.h.b16 %v2026
    %v2827 = vunpack.c.l.b16 %v2027
    %v2828 = vunpack.c.l.b16 %v2028
    %v2829 = vunpack.c.h.b16 %v2028
    %v2830 = vunpack.c.l.b16 %v2029
    %v2831 = vunpack.c.h.b16 %v2029
    %v2832 = vunpack.c.l.b16 %v2030
    %v2833 = vunpack.c.h.b16 %v2030
    %v2834 = vunpack.c.l.b16 %v2031
    %v2835 = vunpack.c.h.b16 %v2031
    %v2836 = vunpack.c.l.b16 %v2032
    %v2837 = vunpack.c.l.b16 %v2033
    %v2838 = vunpack.c.h.b16 %v2033
    %v2839 = vunpack.c.l.b16 %v2034
    %v2840 = vunpack.c.h.b16 %v2034
    %v2841 = vunpack.c.l.b16 %v2035
    %v2842 = vunpack.c.h.b16 %v2035
    %v2843 = vunpack.c.l.b16 %v2036
    %v2844 = vunpack.c.h.b16 %v2036
    %v2845 = vunpack.c.l.b16 %v2037
    %v2846 = vunpack.c.l.b16 %v2038
    %v2847 = vunpack.c.h.b16 %v2038
    %v2848 = vunpack.c.l.b16 %v2039
    %v2849 = vunpack.c.h.b16 %v2039
    %v2850 = vunpack.c.l.b16 %v2040
    %v2851 = vunpack.c.h.b16 %v2040
    %v2852 = vunpack.c.l.b16 %v2041
    %v2853 = vunpack.c.h.b16 %v2041
    %v2854 = vunpack.c.l.b16 %v2042
    %v2855 = vunpack.c.l.b16 %v2043
    %v2856 = vunpack.c.h.b16 %v2043
    %v2857 = vunpack.c.l.b16 %v2044
    %v2858 = vunpack.c.h.b16 %v2044
    %v2859 = vunpack.c.l.b16 %v2045
    %v2860 = vunpack.c.h.b16 %v2045
    %v2861 = vunpack.c.l.b16 %v2046
    %v2862 = vunpack.c.h.b16 %v2046
    %v2863 = vunpack.c.l.b16 %v2047
    %v2864 = vunpack.c.l.b16 %v2048
    %v2865 = vunpack.c.h.b16 %v2048
    %v2866 = vunpack.c.l.b16 %v2049
    %v2867 = vunpack.c.h.b16 %v2049
    %v2868 = vunpack.c.l.b16 %v2050
    %v2869 = vunpack.c.h.b16 %v2050
    %v2870 = vunpack.c.l.b16 %v2051
    %v2871 = vunpack.c.h.b16 %v2051
    %v2872 = vunpack.c.l.b16 %v2052
    %v2873 = vunpack.c.l.b16 %v2053
    %v2874 = vunpack.c.h.b16 %v2053
    %v2875 = vunpack.c.l.b16 %v2054
    %v2876 = vunpack.c.h.b16 %v2054
    %v2877 = vunpack.c.l.b16 %v2055
    %v2878 = vunpack.c.h.b16 %v2055
    %v2879 = vunpack.c.l.b16 %v2056
    %v2880 = vunpack.c.h.b16 %v2056
    %v2881 = vunpack.c.l.b16 %v2057
    %v2882 = vunpack.c.l.b16 %v2058
    %v2883 = vunpack.c.h.b16 %v2058
    %v2884 = vunpack.c.l.b16 %v2059
    %v2885 = vunpack.c.h.b16 %v2059
    %v2886 = vunpack.c.l.b16 %v2060
    %v2887 = vunpack.c.h.b16 %v2060
    %v2888 = vunpack.c.l.b16 %v2061
    %v2889 = vunpack.c.h.b16 %v2061
    %v2890 = vunpack.c.l.b16 %v2062
    %v2891 = vunpack.c.l.b16 %v2063
    %v2892 = vunpack.c.h.b16 %v2063
    %v2893 = vunpack.c.l.b16 %v2064
    %v2894 = vunpack.c.h.b16 %v2064
    %v2895 = vunpack.c.l.b16 %v2065
    %v2896 = vunpack.c.h.b16 %v2065
    %v2897 = vunpack.c.l.b16 %v2066
    %v2898 = vunpack.c.h.b16 %v2066
    %v2899 = vunpack.c.l.b16 %v2067
    %v2900 = vunpack.c.l.b16 %v2068
    %v2901 = vunpack.c.h.b16 %v2068
    %v2902 = vunpack.c.l.b16 %v2069
    %v2903 = vunpack.c.h.b16 %v2069
    %v2904 = vunpack.c.l.b16 %v2070
    %v2905 = vunpack.c.h.b16 %v2070
    %v2906 = vunpack.c.l.b16 %v2071
    %v2907 = vunpack.c.h.b16 %v2071
    %v2908 = vunpack.c.l.b16 %v2072
    %v2909 = vunpack.c.l.b16 %v2073
    %v2910 = vunpack.c.h.b16 %v2073
    %v2911 = vunpack.c.l.b16 %v2074
    %v2912 = vunpack.c.h.b16 %v2074
    %v2913 = vunpack.c.l.b16 %v2075
    %v2914 = vunpack.c.h.b16 %v2075
    %v2915 = vunpack.c.l.b16 %v2076
    %v2916 = vunpack.c.h.b16 %v2076
    %v2917 = vunpack.c.l.b16 %v2077
    %v2918 = vunpack.c.l.b16 %v2078
    %v2919 = vunpack.c.h.b16 %v2078
    %v2920 = vunpack.c.l.b16 %v2079
    %v2921 = vunpack.c.h.b16 %v2079
    %v2922 = vunpack.c.l.b16 %v2080
    %v2923 = vunpack.c.h.b16 %v2080
    %v2924 = vunpack.c.l.b16 %v2081
    %v2925 = vunpack.c.h.b16 %v2081
    %v2926 = vunpack.c.l.b16 %v2082
    %v2927 = vunpack.c.l.b16 %v2083
    %v2928 = vunpack.c.h.b16 %v2083
    %v2929 = vunpack.c.l.b16 %v2084
    %v2930 = vunpack.c.h.b16 %v2084
    %v2931 = vunpack.c.l.b16 %v2085
    %v2932 = vunpack.c.h.b16 %v2085
    %v2933 = vunpack.c.l.b16 %v2086
    %v2934 = vunpack.c.h.b16 %v2086
    %v2935 = vunpack.c.l.b16 %v2087
    %v2936 = vunpack.c.l.b16 %v2088
    %v2937 = vunpack.c.h.b16 %v2088
    %v2938 = vunpack.c.l.b16 %v2089
    %v2939 = vunpack.c.h.b16 %v2089
    %v2940 = vunpack.c.l.b16 %v2090
    %v2941 = vunpack.c.h.b16 %v2090
    %v2942 = vunpack.c.l.b16 %v2091
    %v2943 = vunpack.c.h.b16 %v2091
    %v2944 = vunpack.c.l.b16 %v2092
    %v2945 = vunpack.c.l.b16 %v2093
    %v2946 = vunpack.c.h.b16 %v2093
    %v2947 = vunpack.c.l.b16 %v2094
    %v2948 = vunpack.c.h.b16 %v2094
    %v2949 = vunpack.c.l.b16 %v2095
    %v2950 = vunpack.c.h.b16 %v2095
    %v2951 = vunpack.c.l.b16 %v2096
    %v2952 = vunpack.c.h.b16 %v2096
    %v2953 = vunpack.c.l.b16 %v2097
    %v2954 = vunpack.c.l.b16 %v2098
    %v2955 = vunpack.c.h.b16 %v2098
    %v2956 = vunpack.c.l.b16 %v2099
    %v2957 = vunpack.c.h.b16 %v2099
    %v2958 = vunpack.c.l.b16 %v2100
    %v2959 = vunpack.c.h.b16 %v2100
    %v2960 = vunpack.c.l.b16 %v2101
    %v2961 = vunpack.c.h.b16 %v2101
    %v2962 = vunpack.c.l.b16 %v2102
    %v2963 = vunpack.c.l.b16 %v2103
    %v2964 = vunpack.c.h.b16 %v2103
    %v2965 = vunpack.c.l.b16 %v2104
    %v2966 = vunpack.c.h.b16 %v2104
    %v2967 = vunpack.c.l.b16 %v2105
    %v2968 = vunpack.c.h.b16 %v2105
    %v2969 = vunpack.c.l.b16 %v2106
    %v2970 = vunpack.c.h.b16 %v2106
    %v2971 = vunpack.c.l.b16 %v2107
    %v2972 = vunpack.c.l.b16 %v2108
    %v2973 = vunpack.c.h.b16 %v2108
    %v2974 = vunpack.c.l.b16 %v2109
    %v2975 = vunpack.c.h.b16 %v2109
    %v2976 = vunpack.c.l.b16 %v2110
    %v2977 = vunpack.c.h.b16 %v2110
    %v2978 = vunpack.c.l.b16 %v2111
    %v2979 = vunpack.c.h.b16 %v2111
    %v2980 = vunpack.c.l.b16 %v2112
    %v2981 = vunpack.c.l.b16 %v2113
    %v2982 = vunpack.c.h.b16 %v2113
    %v2983 = vunpack.c.l.b16 %v2114
    %v2984 = vunpack.c.h.b16 %v2114
    %v2985 = vunpack.c.l.b16 %v2115
    %v2986 = vunpack.c.h.b16 %v2115
    %v2987 = vunpack.c.l.b16 %v2116
    %v2988 = vunpack.c.h.b16 %v2116
    %v2989 = vunpack.c.l.b16 %v2117
    %v2990 = vunpack.c.l.b16 %v2118
    %v2991 = vunpack.c.h.b16 %v2118
    %v2992 = vunpack.c.l.b16 %v2119
    %v2993 = vunpack.c.h.b16 %v2119
    %v2994 = vunpack.c.l.b16 %v2120
    %v2995 = vunpack.c.h.b16 %v2120
    %v2996 = vunpack.c.l.b16 %v2121
    %v2997 = vunpack.c.h.b16 %v2121
    %v2998 = vunpack.c.l.b16 %v2122
    %v2999 = vunpack.c.l.b16 %v2123
    %v3000 = vunpack.c.h.b16 %v2123
    %v3001 = vunpack.c.l.b16 %v2124
    %v3002 = vunpack.c.h.b16 %v2124
    %v3003 = vunpack.c.l.b16 %v2125
    %v3004 = vunpack.c.h.b16 %v2125
    %v3005 = vunpack.c.l.b16 %v2126
    %v3006 = vunpack.c.h.b16 %v2126
    %v3007 = vunpack.c.l.b16 %v2127
    %v3008 = vunpack.c.l.b16 %v2128
    %v3009 = vunpack.c.h.b16 %v2128
    %v3010 = vunpack.c.l.b16 %v2129
    %v3011 = vunpack.c.h.b16 %v2129
    %v3012 = vunpack.c.l.b16 %v2130
    %v3013 = vunpack.c.h.b16 %v2130
    %v3014 = vunpack.c.l.b16 %v2131
    %v3015 = vunpack.c.h.b16 %v2131
    %v3016 = vunpack.c.l.b16 %v2132
    %v3017 = vunpack.c.l.b16 %v2133
    %v3018 = vunpack.c.h.b16 %v2133
    %v3019 = vunpack.c.l.b16 %v2134
    %v3020 = vunpack.c.h.b16 %v2134
    %v3021 = vunpack.c.l.b16 %v2135
    %v3022 = vunpack.c.h.b16 %v2135
    %v3023 = vunpack.c.l.b16 %v2136
    %v3024 = vunpack.c.h.b16 %v2136
    %v3025 = vunpack.c.l.b16 %v2137
    %v3026 = vunpack.c.l.b16 %v2138
    %v3027 = vunpack.c.h.b16 %v2138
    %v3028 = vunpack.c.l.b16 %v2139
    %v3029 = vunpack.c.h.b16 %v2139
    %v3030 = vunpack.c.l.b16 %v2140
    %v3031 = vunpack.c.h.b16 %v2140
    %v3032 = vunpack.c.l.b16 %v2141
    %v3033 = vunpack.c.h.b16 %v2141
    %v3034 = vunpack.c.l.b16 %v2142
    %v3035 = vunpack.c.l.b16 %v2143
    %v3036 = vunpack.c.h.b16 %v2143
    %v3037 = vunpack.c.l.b16 %v2144
    %v3038 = vunpack.c.h.b16 %v2144
    %v3039 = vunpack.c.l.b16 %v2145
    %v3040 = vunpack.c.h.b16 %v2145
    %v3041 = vunpack.c.l.b16 %v2146
    %v3042 = vunpack.c.h.b16 %v2146
    %v3043 = vunpack.c.l.b16 %v2147
    %v3044 = vunpack.c.l.b16 %v2148
    %v3045 = vunpack.c.h.b16 %v2148
    %v3046 = vunpack.c.l.b16 %v2149
    %v3047 = vunpack.c.h.b16 %v2149
    %v3048 = vunpack.c.l.b16 %v2150
    %v3049 = vunpack.c.h.b16 %v2150
    %v3050 = vunpack.c.l.b16 %v2151
    %v3051 = vunpack.c.h.b16 %v2151
    %v3052 = vunpack.c.l.b16 %v2152
    %v3053 = vunpack.c.l.b16 %v2153
    %v3054 = vunpack.c.h.b16 %v2153
    %v3055 = vunpack.c.l.b16 %v2154
    %v3056 = vunpack.c.h.b16 %v2154
    %v3057 = vunpack.c.l.b16 %v2155
    %v3058 = vunpack.c.h.b16 %v2155
    %v3059 = vunpack.c.l.b16 %v2156
    %v3060 = vunpack.c.h.b16 %v2156
    %v3061 = vunpack.c.l.b16 %v2157
    %v3062 = vunpack.c.l.b16 %v2158
    %v3063 = vunpack.c.h.b16 %v2158
    %v3064 = vunpack.c.l.b16 %v2159
    %v3065 = vunpack.c.h.b16 %v2159
    %v3066 = vunpack.c.l.b16 %v2160
    %v3067 = vunpack.c.h.b16 %v2160
    %v3068 = vunpack.c.l.b16 %v2161
    %v3069 = vunpack.c.h.b16 %v2161
    %v3070 = vunpack.c.l.b16 %v2162
    %v3071 = vunpack.c.l.b16 %v2163
    %v3072 = vunpack.c.h.b16 %v2163
    %v3073 = vunpack.c.l.b16 %v2164
    %v3074 = vunpack.c.h.b16 %v2164
    %v3075 = vunpack.c.l.b16 %v2165
    %v3076 = vunpack.c.h.b16 %v2165
    %v3077 = vunpack.c.l.b16 %v2166
    %v3078 = vunpack.c.h.b16 %v2166
    %v3079 = vunpack.c.l.b16 %v2167
    %v3080 = vunpack.c.l.b16 %v2168
    %v3081 = vunpack.c.h.b16 %v2168
    %v3082 = vunpack.c.l.b16 %v2169
    %v3083 = vunpack.c.h.b16 %v2169
    %v3084 = vunpack.c.l.b16 %v2170
    %v3085 = vunpack.c.h.b16 %v2170
    %v3086 = vunpack.c.l.b16 %v2171
    %v3087 = vunpack.c.h.b16 %v2171
    %v3088 = vunpack.c.l.b16 %v2172
    %v3089 = vunpack.c.l.b16 %v2173
    %v3090 = vunpack.c.h.b16 %v2173
    %v3091 = vunpack.c.l.b16 %v2174
    %v3092 = vunpack.c.h.b16 %v2174
    %v3093 = vunpack.c.l.b16 %v2175
    %v3094 = vunpack.c.h.b16 %v2175
    %v3095 = vunpack.c.l.b16 %v2176
    %v3096 = vunpack.c.h.b16 %v2176
    %v3097 = vunpack.c.l.b16 %v2177
    %v3098 = vunpack.c.l.b16 %v2178
    %v3099 = vunpack.c.h.b16 %v2178
    %v3100 = vunpack.c.l.b16 %v2179
    %v3101 = vunpack.c.h.b16 %v2179
    %v3102 = vunpack.c.l.b16 %v2180
    %v3103 = vunpack.c.h.b16 %v2180
    %v3104 = vunpack.c.l.b16 %v2181
    %v3105 = vunpack.c.h.b16 %v2181
    %v3106 = vunpack.c.l.b16 %v2182
    %v3107 = vunpack.c.l.b16 %v2183
    %v3108 = vunpack.c.h.b16 %v2183
    %v3109 = vunpack.c.l.b16 %v2184
    %v3110 = vunpack.c.h.b16 %v2184
    %v3111 = vunpack.c.l.b16 %v2185
    %v3112 = vunpack.c.h.b16 %v2185
    %v3113 = vunpack.c.l.b16 %v2186
    %v3114 = vunpack.c.h.b16 %v2186
    %v3115 = vunpack.c.l.b16 %v2187
    %v3116 = vunpack.c.l.b16 %v2188
    %v3117 = vunpack.c.h.b16 %v2188
    %v3118 = vunpack.c.l.b16 %v2189
    %v3119 = vunpack.c.h.b16 %v2189
    %v3120 = vunpack.c.l.b16 %v2190
    %v3121 = vunpack.c.h.b16 %v2190
    %v3122 = vunpack.c.l.b16 %v2191
    %v3123 = vunpack.c.h.b16 %v2191
    %v3124 = vunpack.c.l.b16 %v2192
    %v3125 = vunpack.c.l.b16 %v2193
    %v3126 = vunpack.c.h.b16 %v2193
    %v3127 = vunpack.c.l.b16 %v2194
    %v3128 = vunpack.c.h.b16 %v2194
    %v3129 = vunpack.c.l.b16 %v2195
    %v3130 = vunpack.c.h.b16 %v2195
    %v3131 = vunpack.c.l.b16 %v2196
    %v3132 = vunpack.c.h.b16 %v2196
    %v3133 = vunpack.c.l.b16 %v2197
    %v3134 = vunpack.c.l.b16 %v2198
    %v3135 = vunpack.c.h.b16 %v2198
    %v3136 = vunpack.c.l.b16 %v2199
    %v3137 = vunpack.c.h.b16 %v2199
    %v3138 = vunpack.c.l.b16 %v2200
    %v3139 = vunpack.c.h.b16 %v2200
    %v3140 = vunpack.c.l.b16 %v2201
    %v3141 = vunpack.c.h.b16 %v2201
    %v3142 = vunpack.c.l.b16 %v2202
    %v3143 = vunpack.c.l.b16 %v2203
    %v3144 = vunpack.c.h.b16 %v2203
    %v3145 = vunpack.c.l.b16 %v2204
    %v3146 = vunpack.c.h.b16 %v2204
    %v3147 = vunpack.c.l.b16 %v2205
    %v3148 = vunpack.c.h.b16 %v2205
    %v3149 = vunpack.c.l.b16 %v2206
    %v3150 = vunpack.c.h.b16 %v2206
    %v3151 = vunpack.c.l.b16 %v2207
    %v3152 = vunpack.c.l.b16 %v2208
    %v3153 = vunpack.c.h.b16 %v2208
    %v3154 = vunpack.c.l.b16 %v2209
    %v3155 = vunpack.c.h.b16 %v2209
    %v3156 = vunpack.c.l.b16 %v2210
    %v3157 = vunpack.c.h.b16 %v2210
    %v3158 = vunpack.c.l.b16 %v2211
    %v3159 = vunpack.c.h.b16 %v2211
    %v3160 = vunpack.c.l.b16 %v2212
    %v3161 = vunpack.c.l.b16 %v2213
    %v3162 = vunpack.c.h.b16 %v2213
    %v3163 = vunpack.c.l.b16 %v2214
    %v3164 = vunpack.c.h.b16 %v2214
    %v3165 = vunpack.c.l.b16 %v2215
    %v3166 = vunpack.c.h.b16 %v2215
    %v3167 = vunpack.c.l.b16 %v2216
    %v3168 = vunpack.c.h.b16 %v2216
    %v3169 = vunpack.c.l.b16 %v2217
    %v3170 = vunpack.c.l.b16 %v2218
    %v3171 = vunpack.c.h.b16 %v2218
    %v3172 = vunpack.c.l.b16 %v2219
    %v3173 = vunpack.c.h.b16 %v2219
    %v3174 = vunpack.c.l.b16 %v2220
    %v3175 = vunpack.c.h.b16 %v2220
    %v3176 = vunpack.c.l.b16 %v2221
    %v3177 = vunpack.c.h.b16 %v2221
    %v3178 = vunpack.c.l.b16 %v2222
    %v3179 = vunpack.c.l.b16 %v2223
    %v3180 = vunpack.c.h.b16 %v2223
    %v3181 = vunpack.c.l.b16 %v2224
    %v3182 = vunpack.c.h.b16 %v2224
    %v3183 = vunpack.c.l.b16 %v2225
    %v3184 = vunpack.c.h.b16 %v2225
    %v3185 = vunpack.c.l.b16 %v2226
    %v3186 = vunpack.c.h.b16 %v2226
    %v3187 = vunpack.c.l.b16 %v2227
    %v3188 = vunpack.c.l.b16 %v2228
    %v3189 = vunpack.c.h.b16 %v2228
    %v3190 = vunpack.c.l.b16 %v2229
    %v3191 = vunpack.c.h.b16 %v2229
    %v3192 = vunpack.c.l.b16 %v2230
    %v3193 = vunpack.c.h.b16 %v2230
    %v3194 = vunpack.c.l.b16 %v2231
    %v3195 = vunpack.c.h.b16 %v2231
    %v3196 = vunpack.c.l.b16 %v2232
    %v3197 = vunpack.c.l.b16 %v2233
    %v3198 = vunpack.c.h.b16 %v2233
    %v3199 = vunpack.c.l.b16 %v2234
    %v3200 = vunpack.c.h.b16 %v2234
    %v3201 = vunpack.c.l.b16 %v2235
    %v3202 = vunpack.c.h.b16 %v2235
    %v3203 = vunpack.c.l.b16 %v2236
    %v3204 = vunpack.c.h.b16 %v2236
    %v3205 = vunpack.c.l.b16 %v2237
    %v3206 = vunpack.c.l.b16 %v2238
    %v3207 = vunpack.c.h.b16 %v2238
    %v3208 = vunpack.c.l.b16 %v2239
    %v3209 = vunpack.c.h.b16 %v2239
    %v3210 = vunpack.c.l.b16 %v2240
    %v3211 = vunpack.c.h.b16 %v2240
    %v3212 = vunpack.c.l.b16 %v2241
    %v3213 = vunpack.c.h.b16 %v2241
    %v3214 = vunpack.c.l.b16 %v2242
    %v3215 = vunpack.c.l.b16 %v2243
    %v3216 = vunpack.c.h.b16 %v2243
    %v3217 = vunpack.c.l.b16 %v2244
    %v3218 = vunpack.c.h.b16 %v2244
    %v3219 = vunpack.c.l.b16 %v2245
    %v3220 = vunpack.c.h.b16 %v2245
    %v3221 = vunpack.c.l.b16 %v2246
    %v3222 = vunpack.c.h.b16 %v2246
    %v3223 = vunpack.c.l.b16 %v2247
    %v3224 = vunpack.c.l.b16 %v2248
    %v3225 = vunpack.c.h.b16 %v2248
    %v3226 = vunpack.c.l.b16 %v2249
    %v3227 = vunpack.c.h.b16 %v2249
    %v3228 = vunpack.c.l.b16 %v2250
    %v3229 = vunpack.c.h.b16 %v2250
    %v3230 = vunpack.c.l.b16 %v2251
    %v3231 = vunpack.c.h.b16 %v2251
    %v3232 = vunpack.c.l.b16 %v2252
    %v3233 = vunpack.c.l.b16 %v2253
    %v3234 = vunpack.c.h.b16 %v2253
    %v3235 = vunpack.c.l.b16 %v2254
    %v3236 = vunpack.c.h.b16 %v2254
    %v3237 = vunpack.c.l.b16 %v2255
    %v3238 = vunpack.c.h.b16 %v2255
    %v3239 = vunpack.c.l.b16 %v2256
    %v3240 = vunpack.c.h.b16 %v2256
    %v3241 = vunpack.c.l.b16 %v2257
    %v3242 = vunpack.c.l.b16 %v2258
    %v3243 = vunpack.c.h.b16 %v2258
    %v3244 = vunpack.c.l.b16 %v2259
    %v3245 = vunpack.c.h.b16 %v2259
    %v3246 = vunpack.c.l.b16 %v2260
    %v3247 = vunpack.c.h.b16 %v2260
    %v3248 = vunpack.c.l.b16 %v2261
    %v3249 = vunpack.c.h.b16 %v2261
    %v3250 = vunpack.c.l.b16 %v2262
    %v3251 = vunpack.c.l.b16 %v2263
    %v3252 = vunpack.c.h.b16 %v2263
    %v3253 = vunpack.c.l.b16 %v2264
    %v3254 = vunpack.c.h.b16 %v2264
    %v3255 = vunpack.c.l.b16 %v2265
    %v3256 = vunpack.c.h.b16 %v2265
    %v3257 = vunpack.c.l.b16 %v2266
    %v3258 = vunpack.c.h.b16 %v2266
    %v3259 = vunpack.c.l.b16 %v2267
    %v3260 = vunpack.c.l.b16 %v2268
    %v3261 = vunpack.c.h.b16 %v2268
    %v3262 = vunpack.c.l.b16 %v2269
    %v3263 = vunpack.c.h.b16 %v2269
    %v3264 = vunpack.c.l.b16 %v2270
    %v3265 = vunpack.c.h.b16 %v2270
    %v3266 = vunpack.c.l.b16 %v2271
    %v3267 = vunpack.c.h.b16 %v2271
    %v3268 = vunpack.c.l.b16 %v2272
    %v3269 = vunpack.c.l.b16 %v2273
    %v3270 = vunpack.c.h.b16 %v2273
    %v3271 = vunpack.c.l.b16 %v2274
    %v3272 = vunpack.c.h.b16 %v2274
    %v3273 = vunpack.c.l.b16 %v2275
    %v3274 = vunpack.c.h.b16 %v2275
    %v3275 = vunpack.c.l.b16 %v2276
    %v3276 = vunpack.c.h.b16 %v2276
    %v3277 = vunpack.c.l.b16 %v2277
    %v3278 = vunpack.c.l.b16 %v2278
    %v3279 = vunpack.c.h.b16 %v2278
    %v3280 = vunpack.c.l.b16 %v2279
    %v3281 = vunpack.c.h.b16 %v2279
    %v3282 = vunpack.c.l.b16 %v2280
    %v3283 = vunpack.c.h.b16 %v2280
    %v3284 = vunpack.c.l.b16 %v2281
    %v3285 = vunpack.c.h.b16 %v2281
    %v3286 = vunpack.c.l.b16 %v2282
    %v3287 = vunpack.c.l.b16 %v2283
    %v3288 = vunpack.c.h.b16 %v2283
    %v3289 = vunpack.c.l.b16 %v2284
    %v3290 = vunpack.c.h.b16 %v2284
    %v3291 = vunpack.c.l.b16 %v2285
    %v3292 = vunpack.c.h.b16 %v2285
    %v3293 = vunpack.c.l.b16 %v2286
    %v3294 = vunpack.c.h.b16 %v2286
    %v3295 = vunpack.c.l.b16 %v2287
    %v3296 = vunpack.c.l.b16 %v2288
    %v3297 = vunpack.c.h.b16 %v2288
    %v3298 = vunpack.c.l.b16 %v2289
    %v3299 = vunpack.c.h.b16 %v2289
    %v3300 = vunpack.c.l.b16 %v2290
    %v3301 = vunpack.c.h.b16 %v2290
    %v3302 = vunpack.c.l.b16 %v2291
    %v3303 = vunpack.c.h.b16 %v2291
    %v3304 = vunpack.c.l.b16 %v2292
    %v3305 = vunpack.c.l.b16 %v2293
    %v3306 = vunpack.c.h.b16 %v2293
    %v3307 = vunpack.c.l.b16 %v2294
    %v3308 = vunpack.c.h.b16 %v2294
    %v3309 = vunpack.c.l.b16 %v2295
    %v3310 = vunpack.c.h.b16 %v2295
    %v3311 = vunpack.c.l.b16 %v2296
    %v3312 = vunpack.c.h.b16 %v2296
    %v3313 = vunpack.c.l.b16 %v2297
    %v3314 = vunpack.c.l.b16 %v2298
    %v3315 = vunpack.c.h.b16 %v2298
    %v3316 = vunpack.c.l.b16 %v2299
    %v3317 = vunpack.c.h.b16 %v2299
    %v3318 = vunpack.c.l.b16 %v2300
    %v3319 = vunpack.c.h.b16 %v2300
    %v3320 = vunpack.c.l.b16 %v2301
    %v3321 = vunpack.c.h.b16 %v2301
    %v3322 = vunpack.c.l.b16 %v2302
    %v3323 = vunpack.c.l.b16 %v2303
    %v3324 = vunpack.c.h.b16 %v2303
    %v3325 = vunpack.c.l.b16 %v2304
    %v3326 = vunpack.c.h.b16 %v2304
    %v3327 = vunpack.c.l.b16 %v2305
    %v3328 = vunpack.c.h.b16 %v2305
    %v3329 = vunpack.c.l.b16 %v2306
    %v3330 = vunpack.c.h.b16 %v2306
    %v3331 = vunpack.c.l.b16 %v2307
    %v3332 = vunpack.c.l.b16 %v2308
    %v3333 = vunpack.c.h.b16 %v2308
    %v3334 = vunpack.c.l.b16 %v2309
    %v3335 = vunpack.c.h.b16 %v2309
    %v3336 = vunpack.c.l.b16 %v2310
    %v3337 = vunpack.c.h.b16 %v2310
    %v3338 = vunpack.c.l.b16 %v2311
    %v3339 = vunpack.c.h.b16 %v2311
    %v3340 = vunpack.c.l.b16 %v2312
    %v3341 = vunpack.c.l.b16 %v2313
    %v3342 = vunpack.c.h.b16 %v2313
    %v3343 = vunpack.c.l.b16 %v2314
    %v3344 = vunpack.c.h.b16 %v2314
    %v3345 = vunpack.c.l.b16 %v2315
    %v3346 = vunpack.c.h.b16 %v2315
    %v3347 = vunpack.c.l.b16 %v2316
    %v3348 = vunpack.c.h.b16 %v2316
    %v3349 = vunpack.c.l.b16 %v2317
    %v3350 = vunpack.c.l.b16 %v2318
    %v3351 = vunpack.c.h.b16 %v2318
    %v3352 = vunpack.c.l.b16 %v2319
    %v3353 = vunpack.c.h.b16 %v2319
    %v3354 = vunpack.c.l.b16 %v2320
    %v3355 = vunpack.c.h.b16 %v2320
    %v3356 = vunpack.c.l.b16 %v2321
    %v3357 = vunpack.c.h.b16 %v2321
    %v3358 = vunpack.c.l.b16 %v2322
    %v3359 = vunpack.c.l.b16 %v2323
    %v3360 = vunpack.c.h.b16 %v2323
    %v3361 = vunpack.c.l.b16 %v2324
    %v3362 = vunpack.c.h.b16 %v2324
    %v3363 = vunpack.c.l.b16 %v2325
    %v3364 = vunpack.c.h.b16 %v2325
    %v3365 = vunpack.c.l.b16 %v2326
    %v3366 = vunpack.c.h.b16 %v2326
    %v3367 = vunpack.c.l.b16 %v2327
    %v3368 = vunpack.c.l.b16 %v2328
    %v3369 = vunpack.c.h.b16 %v2328
    %v3370 = vunpack.c.l.b16 %v2329
    %v3371 = vunpack.c.h.b16 %v2329
    %v3372 = vunpack.c.l.b16 %v2330
    %v3373 = vunpack.c.h.b16 %v2330
    %v3374 = vunpack.c.l.b16 %v2331
    %v3375 = vunpack.c.h.b16 %v2331
    %v3376 = vunpack.c.l.b16 %v2332
    %v3377 = vpack.c.b16 %v2810, %v2801
    %v3378 = vpack.c.b16 %v2811, %v2802
    %v3379 = vpack.c.b16 %v2812, %v2803
    %v3380 = vpack.c.b16 %v2813, %v2804
    %v3381 = vpack.c.b16 %v2814, %v2805
    %v3382 = vpack.c.b16 %v2815, %v2806
    %v3383 = vpack.c.b16 %v2816, %v2807
    %v3384 = vpack.c.b16 %v2817, %v2808
    %v3385 = vpack.c.b16 %v2818, %v2809
    %v3386 = vpack.c.b16 %v2828, %v2819
    %v3387 = vpack.c.b16 %v2829, %v2820
    %v3388 = vpack.c.b16 %v2830, %v2821
    %v3389 = vpack.c.b16 %v2831, %v2822
    %v3390 = vpack.c.b16 %v2832, %v2823
    %v3391 = vpack.c.b16 %v2833, %v2824
    %v3392 = vpack.c.b16 %v2834, %v2825
    %v3393 = vpack.c.b16 %v2835, %v2826
    %v3394 = vpack.c.b16 %v2836, %v2827
    %v3395 = vpack.c.b16 %v2846, %v2837
    %v3396 = vpack.c.b16 %v2847, %v2838
    %v3397 = vpack.c.b16 %v2848, %v2839
    %v3398 = vpack.c.b16 %v2849, %v2840
    %v3399 = vpack.c.b16 %v2850, %v2841
    %v3400 = vpack.c.b16 %v2851, %v2842
    %v3401 = vpack.c.b16 %v2852, %v2843
    %v3402 = vpack.c.b16 %v2853, %v2844
    %v3403 = vpack.c.b16 %v2854, %v2845
    %v3404 = vpack.c.b16 %v2864, %v2855
    %v3405 = vpack.c.b16 %v2865, %v2856
    %v3406 = vpack.c.b16 %v2866, %v2857
    %v3407 = vpack.c.b16 %v2867, %v2858
    %v3408 = vpack.c.b16 %v2868, %v2859
    %v3409 = vpack.c.b16 %v2869, %v2860
    %v3410 = vpack.c.b16 %v2870, %v2861
    %v3411 = vpack.c.b16 %v2871, %v2862
    %v3412 = vpack.c.b16 %v2872, %v2863
    %v3413 = vpack.c.b16 %v2882, %v2873
    %v3414 = vpack.c.b16 %v2883, %v2874
    %v3415 = vpack.c.b16 %v2884, %v2875
    %v3416 = vpack.c.b16 %v2885, %v2876
    %v3417 = vpack.c.b16 %v2886, %v2877
    %v3418 = vpack.c.b16 %v2887, %v2878
    %v3419 = vpack.c.b16 %v2888, %v2879
    %v3420 = vpack.c.b16 %v2889, %v2880
    %v3421 = vpack.c.b16 %v2890, %v2881
    %v3422 = vpack.c.b16 %v2900, %v2891
    %v3423 = vpack.c.b16 %v2901, %v2892
    %v3424 = vpack.c.b16 %v2902, %v2893
    %v3425 = vpack.c.b16 %v2903, %v2894
    %v3426 = vpack.c.b16 %v2904, %v2895
    %v3427 = vpack.c.b16 %v2905, %v2896
    %v3428 = vpack.c.b16 %v2906, %v2897
    %v3429 = vpack.c.b16 %v2907, %v2898
    %v3430 = vpack.c.b16 %v2908, %v2899
    %v3431 = vpack.c.b16 %v2918, %v2909
    %v3432 = vpack.c.b16 %v2919, %v2910
    %v3433 = vpack.c.b16 %v2920, %v2911
    %v3434 = vpack.c.b16 %v2921, %v2912
    %v3435 = vpack.c.b16 %v2922, %v2913
    %v3436 = vpack.c.b16 %v2923, %v2914
    %v3437 = vpack.c.b16 %v2924, %v2915
    %v3438 = vpack.c.b16 %v2925, %v2916
    %v3439 = vpack.c.b16 %v2926, %v2917
    %v3440 = vpack.c.b16 %v2936, %v2927
    %v3441 = vpack.c.b16 %v2937, %v2928
    %v3442 = vpack.c.b16 %v2938, %v2929
    %v3443 = vpack.c.b16 %v2939, %v2930
    %v3444 = vpack.c.b16 %v2940, %v2931
    %v3445 = vpack.c.b16 %v2941, %v2932
    %v3446 = vpack.c.b16 %v2942, %v2933
    %v3447 = vpack.c.b16 %v2943, %v2934
    %v3448 = vpack.c.b16 %v2944, %v2935
    %v3449 = vpack.c.b16 %v2954, %v2945
    %v3450 = vpack.c.b16 %v2955, %v2946
    %v3451 = vpack.c.b16 %v2956, %v2947
    %v3452 = vpack.c.b16 %v2957, %v2948
    %v3453 = vpack.c.b16 %v2958, %v2949
    %v3454 = vpack.c.b16 %v2959, %v2950
    %v3455 = vpack.c.b16 %v2960, %v2951
    %v3456 = vpack.c.b16 %v2961, %v2952
    %v3457 = vpack.c.b16 %v2962, %v2953
    %v3458 = vpack.c.b16 %v2972, %v2963
    %v3459 = vpack.c.b16 %v2973, %v2964
    %v3460 = vpack.c.b16 %v2974, %v2965
    %v3461 = vpack.c.b16 %v2975, %v2966
    %v3462 = vpack.c.b16 %v2976, %v2967
    %v3463 = vpack.c.b16 %v2977, %v2968
    %v3464 = vpack.c.b16 %v2978, %v2969
    %v3465 = vpack.c.b16 %v2979, %v2970
    %v3466 = vpack.c.b16 %v2980, %v2971
    %v3467 = vpack.c.b16 %v2990, %v2981
    %v3468 = vpack.c.b16 %v2991, %v2982
    %v3469 = vpack.c.b16 %v2992, %v2983
    %v3470 = vpack.c.b16 %v2993, %v2984
    %v3471 = vpack.c.b16 %v2994, %v2985
    %v3472 = vpack.c.b16 %v2995, %v2986
    %v3473 = vpack.c.b16 %v2996, %v2987
    %v3474 = vpack.c.b16 %v2997, %v2988
    %v3475 = vpack.c.b16 %v2998, %v2989
    %v3476 = vpack.c.b16 %v3008, %v2999
    %v3477 = vpack.c.b16 %v3009, %v3000
    %v3478 = vpack.c.b16 %v3010, %v3001
    %v3479 = vpack.c.b16 %v3011, %v3002
    %v3480 = vpack.c.b16 %v3012, %v3003
    %v3481 = vpack.c.b16 %v3013, %v3004
    %v3482 = vpack.c.b16 %v3014, %v3005
    %v3483 = vpack.c.b16 %v3015, %v3006
    %v3484 = vpack.c.b16 %v3016, %v3007
    %v3485 = vpack.c.b16 %v3026, %v3017
    %v3486 = vpack.c.b16 %v3027, %v3018
    %v3487 = vpack.c.b16 %v3028, %v3019
    %v3488 = vpack.c.b16 %v3029, %v3020
    %v3489 = vpack.c.b16 %v3030, %v3021
    %v3490 = vpack.c.b16 %v3031, %v3022
    %v3491 = vpack.c.b16 %v3032, %v3023
    %v3492 = vpack.c.b16 %v3033, %v3024
    %v3493 = vpack.c.b16 %v3034, %v3025
    %v3494 = vpack.c.b16 %v3044, %v3035
    %v3495 = vpack.c.b16 %v3045, %v3036
    %v3496 = vpack.c.b16 %v3046, %v3037
    %v3497 = vpack.c.b16 %v3047, %v3038
    %v3498 = vpack.c.b16 %v3048, %v3039
    %v3499 = vpack.c.b16 %v3049, %v3040
    %v3500 = vpack.c.b16 %v3050, %v3041
    %v3501 = vpack.c.b16 %v3051, %v3042
    %v3502 = vpack.c.b16 %v3052, %v3043
    %v3503 = vpack.c.b16 %v3062, %v3053
    %v3504 = vpack.c.b16 %v3063, %v3054
    %v3505 = vpack.c.b16 %v3064, %v3055
    %v3506 = vpack.c.b16 %v3065, %v3056
    %v3507 = vpack.c.b16 %v3066, %v3057
    %v3508 = vpack.c.b16 %v3067, %v3058
    %v3509 = vpack.c.b16 %v3068, %v3059
    %v3510 = vpack.c.b16 %v3069, %v3060
    %v3511 = vpack.c.b16 %v3070, %v3061
    %v3512 = vpack.c.b16 %v3080, %v3071
    %v3513 = vpack.c.b16 %v3081, %v3072
    %v3514 = vpack.c.b16 %v3082, %v3073
    %v3515 = vpack.c.b16 %v3083, %v3074
    %v3516 = vpack.c.b16 %v3084, %v3075
    %v3517 = vpack.c.b16 %v3085, %v3076
    %v3518 = vpack.c.b16 %v3086, %v3077
    %v3519 = vpack.c.b16 %v3087, %v3078
    %v3520 = vpack.c.b16 %v3088, %v3079
    %v3521 = vpack.c.b16 %v3098, %v3089
    %v3522 = vpack.c.b16 %v3099, %v3090
    %v3523 = vpack.c.b16 %v3100, %v3091
    %v3524 = vpack.c.b16 %v3101, %v3092
    %v3525 = vpack.c.b16 %v3102, %v3093
    %v3526 = vpack.c.b16 %v3103, %v3094
    %v3527 = vpack.c.b16 %v3104, %v3095
    %v3528 = vpack.c.b16 %v3105, %v3096
    %v3529 = vpack.c.b16 %v3106, %v3097
    %v3530 = vpack.c.b16 %v3116, %v3107
    %v3531 = vpack.c.b16 %v3117, %v3108
    %v3532 = vpack.c.b16 %v3118, %v3109
    %v3533 = vpack.c.b16 %v3119, %v3110
    %v3534 = vpack.c.b16 %v3120, %v3111
    %v3535 = vpack.c.b16 %v3121, %v3112
    %v3536 = vpack.c.b16 %v3122, %v3113
    %v3537 = vpack.c.b16 %v3123, %v3114
    %v3538 = vpack.c.b16 %v3124, %v3115
    %v3539 = vpack.c.b16 %v3134, %v3125
    %v3540 = vpack.c.b16 %v3135, %v3126
    %v3541 = vpack.c.b16 %v3136, %v3127
    %v3542 = vpack.c.b16 %v3137, %v3128
    %v3543 = vpack.c.b16 %v3138, %v3129
    %v3544 = vpack.c.b16 %v3139, %v3130
    %v3545 = vpack.c.b16 %v3140, %v3131
    %v3546 = vpack.c.b16 %v3141, %v3132
    %v3547 = vpack.c.b16 %v3142, %v3133
    %v3548 = vpack.c.b16 %v3152, %v3143
    %v3549 = vpack.c.b16 %v3153, %v3144
    %v3550 = vpack.c.b16 %v3154, %v3145
    %v3551 = vpack.c.b16 %v3155, %v3146
    %v3552 = vpack.c.b16 %v3156, %v3147
    %v3553 = vpack.c.b16 %v3157, %v3148
    %v3554 = vpack.c.b16 %v3158, %v3149
    %v3555 = vpack.c.b16 %v3159, %v3150
    %v3556 = vpack.c.b16 %v3160, %v3151
    %v3557 = vpack.c.b16 %v3170, %v3161
    %v3558 = vpack.c.b16 %v3171, %v3162
    %v3559 = vpack.c.b16 %v3172, %v3163
    %v3560 = vpack.c.b16 %v3173, %v3164
    %v3561 = vpack.c.b16 %v3174, %v3165
    %v3562 = vpack.c.b16 %v3175, %v3166
    %v3563 = vpack.c.b16 %v3176, %v3167
    %v3564 = vpack.c.b16 %v3177, %v3168
    %v3565 = vpack.c.b16 %v3178, %v3169
    %v3566 = vpack.c.b16 %v3188, %v3179
    %v3567 = vpack.c.b16 %v3189, %v3180
    %v3568 = vpack.c.b16 %v3190, %v3181
    %v3569 = vpack.c.b16 %v3191, %v3182
    %v3570 = vpack.c.b16 %v3192, %v3183
    %v3571 = vpack.c.b16 %v3193, %v3184
    %v3572 = vpack.c.b16 %v3194, %v3185
    %v3573 = vpack.c.b16 %v3195, %v3186
    %v3574 = vpack.c.b16 %v3196, %v3187
    %v3575 = vpack.c.b16 %v3206, %v3197
    %v3576 = vpack.c.b16 %v3207, %v3198
    %v3577 = vpack.c.b16 %v3208, %v3199
    %v3578 = vpack.c.b16 %v3209, %v3200
    %v3579 = vpack.c.b16 %v3210, %v3201
    %v3580 = vpack.c.b16 %v3211, %v3202
    %v3581 = vpack.c.b16 %v3212, %v3203
    %v3582 = vpack.c.b16 %v3213, %v3204
    %v3583 = vpack.c.b16 %v3214, %v3205
    %v3584 = vpack.c.b16 %v3224, %v3215
    %v3585 = vpack.c.b16 %v3225, %v3216
    %v3586 = vpack.c.b16 %v3226, %v3217
    %v3587 = vpack.c.b16 %v3227, %v3218
    %v3588 = vpack.c.b16 %v3228, %v3219
    %v3589 = vpack.c.b16 %v3229, %v3220
    %v3590 = vpack.c.b16 %v3230, %v3221
    %v3591 = vpack.c.b16 %v3231, %v3222
    %v3592 = vpack.c.b16 %v3232, %v3223
    %v3593 = vpack.c.b16 %v3242, %v3233
    %v3594 = vpack.c.b16 %v3243, %v3234
    %v3595 = vpack.c.b16 %v3244, %v3235
    %v3596 = vpack.c.b16 %v3245, %v3236
    %v3597 = vpack.c.b16 %v3246, %v3237
    %v3598 = vpack.c.b16 %v3247, %v3238
    %v3599 = vpack.c.b16 %v3248, %v3239
    %v3600 = vpack.c.b16 %v3249, %v3240
    %v3601 = vpack.c.b16 %v3250, %v3241
    %v3602 = vpack.c.b16 %v3260, %v3251
    %v3603 = vpack.c.b16 %v3261, %v3252
    %v3604 = vpack.c.b16 %v3262, %v3253
    %v3605 = vpack.c.b16 %v3263, %v3254
    %v3606 = vpack.c.b16 %v3264, %v3255
    %v3607 = vpack.c.b16 %v3265, %v3256
    %v3608 = vpack.c.b16 %v3266, %v3257
    %v3609 = vpack.c.b16 %v3267, %v3258
    %v3610 = vpack.c.b16 %v3268, %v3259
    %v3611 = vpack.c.b16 %v3278, %v3269
    %v3612 = vpack.c.b16 %v3279, %v3270
    %v3613 = vpack.c.b16 %v3280, %v3271
    %v3614 = vpack.c.b16 %v3281, %v3272
    %v3615 = vpack.c.b16 %v3282, %v3273
    %v3616 = vpack.c.b16 %v3283, %v3274
    %v3617 = vpack.c.b16 %v3284, %v3275
    %v3618 = vpack.c.b16 %v3285, %v3276
    %v3619 = vpack.c.b16 %v3286, %v3277
    %v3620 = vpack.c.b16 %v3296, %v3287
    %v3621 = vpack.c.b16 %v3297, %v3288
    %v3622 = vpack.c.b16 %v3298, %v3289
    %v3623 = vpack.c.b16 %v3299, %v3290
    %v3624 = vpack.c.b16 %v3300, %v3291
    %v3625 = vpack.c.b16 %v3301, %v3292
    %v3626 = vpack.c.b16 %v3302, %v3293
    %v3627 = vpack.c.b16 %v3303, %v3294
    %v3628 = vpack.c.b16 %v3304, %v3295
    %v3629 = vpack.c.b16 %v3314, %v3305
    %v3630 = vpack.c.b16 %v3315, %v3306
    %v3631 = vpack.c.b16 %v3316, %v3307
    %v3632 = vpack.c.b16 %v3317, %v3308
    %v3633 = vpack.c.b16 %v3318, %v3309
    %v3634 = vpack.c.b16 %v3319, %v3310
    %v3635 = vpack.c.b16 %v3320, %v3311
    %v3636 = vpack.c.b16 %v3321, %v3312
    %v3637 = vpack.c.b16 %v3322, %v3313
    %v3638 = vpack.c.b16 %v3332, %v3323
    %v3639 = vpack.c.b16 %v3333, %v3324
    %v3640 = vpack.c.b16 %v3334, %v3325
    %v3641 = vpack.c.b16 %v3335, %v3326
    %v3642 = vpack.c.b16 %v3336, %v3327
    %v3643 = vpack.c.b16 %v3337, %v3328
    %v3644 = vpack.c.b16 %v3338, %v3329
    %v3645 = vpack.c.b16 %v3339, %v3330
    %v3646 = vpack.c.b16 %v3340, %v3331
    %v3647 = vpack.c.b16 %v3350, %v3341
    %v3648 = vpack.c.b16 %v3351, %v3342
    %v3649 = vpack.c.b16 %v3352, %v3343
    %v3650 = vpack.c.b16 %v3353, %v3344
    %v3651 = vpack.c.b16 %v3354, %v3345
    %v3652 = vpack.c.b16 %v3355, %v3346
    %v3653 = vpack.c.b16 %v3356, %v3347
    %v3654 = vpack.c.b16 %v3357, %v3348
    %v3655 = vpack.c.b16 %v3358, %v3349
    %v3656 = vpack.c.b16 %v3368, %v3359
    %v3657 = vpack.c.b16 %v3369, %v3360
    %v3658 = vpack.c.b16 %v3370, %v3361
    %v3659 = vpack.c.b16 %v3371, %v3362
    %v3660 = vpack.c.b16 %v3372, %v3363
    %v3661 = vpack.c.b16 %v3373, %v3364
    %v3662 = vpack.c.b16 %v3374, %v3365
    %v3663 = vpack.c.b16 %v3375, %v3366
    %v3664 = vpack.c.b16 %v3376, %v3367
    %v4097 = vunpack.c.l.b16 %v2333
    %v4098 = vunpack.c.l.b16 %v2334
    %v4099 = vunpack.c.l.b16 %v2335
    %v4100 = vunpack.c.l.b16 %v2336
    %v4101 = vunpack.c.l.b16 %v2337
    %v4102 = vunpack.c.l.b16 %v2338
    %v4103 = vunpack.c.l.b16 %v2339
    %v4104 = vunpack.c.l.b16 %v2340
    %v4105 = vunpack.c.l.b16 %v2341
    %v4106 = vunpack.c.l.b16 %v2342
    %v4107 = vunpack.c.l.b16 %v2343
    %v4108 = vunpack.c.l.b16 %v2344
    %v4109 = vunpack.c.l.b16 %v2345
    %v4110 = vunpack.c.l.b16 %v2346
    %v4111 = vunpack.c.l.b16 %v2347
    %v4112 = vunpack.c.l.b16 %v2348
    %v4113 = vunpack.c.l.b16 %v2349
    %v4114 = vunpack.c.l.b16 %v2350
    %v4115 = vunpack.c.l.b16 %v2351
    %v4116 = vunpack.c.l.b16 %v2352
    %v4117 = vunpack.c.l.b16 %v2353
    %v4118 = vunpack.c.l.b16 %v2354
    %v4119 = vunpack.c.l.b16 %v2355
    %v4120 = vunpack.c.l.b16 %v2356
    %v4121 = vunpack.c.l.b16 %v2357
    %v4122 = vunpack.c.l.b16 %v2358
    %v4123 = vunpack.c.l.b16 %v2359
    %v4124 = vunpack.c.l.b16 %v2360
    %v4125 = vunpack.c.l.b16 %v2361
    %v4126 = vunpack.c.l.b16 %v2362
    %v4127 = vunpack.c.l.b16 %v2363
    %v4128 = vunpack.c.l.b16 %v2364
    %v4129 = vunpack.c.l.b16 %v2365
    %v4130 = vunpack.c.l.b16 %v2366
    %v4131 = vunpack.c.l.b16 %v2367
    %v4132 = vunpack.c.l.b16 %v2368
    %v4133 = vunpack.c.l.b16 %v2369
    %v4134 = vunpack.c.l.b16 %v2370
    %v4135 = vunpack.c.l.b16 %v2371
    %v4136 = vunpack.c.l.b16 %v2372
    %v4137 = vunpack.c.l.b16 %v2373
    %v4138 = vunpack.c.l.b16 %v2374
    %v4139 = vunpack.c.l.b16 %v2375
    %v4140 = vunpack.c.l.b16 %v2376
    %v4141 = vunpack.c.l.b16 %v2377
    %v4142 = vunpack.c.l.b16 %v2378
    %v4143 = vunpack.c.l.b16 %v2379
    %v4144 = vunpack.c.l.b16 %v2380
    %v4145 = vunpack.c.l.b16 %v2381
    %v4146 = vunpack.c.l.b16 %v2382
    %v4147 = vunpack.c.l.b16 %v2383
    %v4148 = vunpack.c.l.b16 %v2384
    %v4149 = vunpack.c.l.b16 %v2385
    %v4150 = vunpack.c.l.b16 %v2386
    %v4151 = vunpack.c.l.b16 %v2387
    %v4152 = vunpack.c.l.b16 %v2388
    %v4153 = vunpack.c.l.b16 %v2389
    %v4154 = vunpack.c.l.b16 %v2390
    %v4155 = vunpack.c.l.b16 %v2391
    %v4156 = vunpack.c.l.b16 %v2392
    %v4157 = vunpack.c.l.b16 %v2393
    %v4158 = vunpack.c.l.b16 %v2394
    %v4159 = vunpack.c.l.b16 %v2395
    %v4160 = vunpack.c.l.b16 %v2396
    %v4161 = vunpack.c.l.b16 %v2397
    %v4162 = vunpack.c.l.b16 %v2398
    %v4163 = vunpack.c.l.b16 %v2399
    %v4164 = vunpack.c.l.b16 %v2400
    %v4165 = vunpack.c.l.b16 %v2401
    %v4166 = vunpack.c.l.b16 %v2402
    %v4167 = vunpack.c.l.b16 %v2403
    %v4168 = vunpack.c.l.b16 %v2404
    %v4169 = vunpack.c.l.b16 %v2405
    %v4170 = vunpack.c.l.b16 %v2406
    %v4171 = vunpack.c.l.b16 %v2407
    %v4172 = vunpack.c.l.b16 %v2408
    %v4173 = vunpack.c.l.b16 %v2409
    %v4174 = vunpack.c.l.b16 %v2410
    %v4175 = vunpack.c.l.b16 %v2411
    %v4176 = vunpack.c.l.b16 %v2412
    %v4177 = vunpack.c.l.b16 %v2413
    %v4178 = vunpack.c.l.b16 %v2414
    %v4179 = vunpack.c.l.b16 %v2415
    %v4180 = vunpack.c.l.b16 %v2416
    %v4181 = vunpack.c.l.b16 %v2417
    %v4182 = vunpack.c.l.b16 %v2418
    %v4183 = vunpack.c.l.b16 %v2419
    %v4184 = vunpack.c.l.b16 %v2420
    %v4185 = vunpack.c.l.b16 %v2421
    %v4186 = vunpack.c.l.b16 %v2422
    %v4187 = vunpack.c.l.b16 %v2423
    %v4188 = vunpack.c.l.b16 %v2424
    %v4189 = vunpack.c.l.b16 %v2425
    %v4190 = vunpack.c.l.b16 %v2426
    %v4191 = vunpack.c.l.b16 %v2427
    %v4192 = vunpack.c.l.b16 %v2428
    %v4193 = vunpack.c.l.b16 %v2429
    %v4194 = vunpack.c.l.b16 %v2430
    %v4195 = vunpack.c.l.b16 %v2431
    %v4196 = vunpack.c.l.b16 %v2432
    %v4197 = vunpack.c.l.b16 %v2433
    %v4198 = vunpack.c.l.b16 %v2434
    %v4199 = vunpack.c.l.b16 %v2435
    %v4200 = vunpack.c.l.b16 %v2436
    %v4201 = vunpack.c.l.b16 %v2437
    %v4202 = vunpack.c.l.b16 %v2438
    %v4203 = vunpack.c.l.b16 %v2439
    %v4204 = vunpack.c.l.b16 %v2440
    %v4205 = vunpack.c.l.b16 %v2441
    %v4206 = vunpack.c.l.b16 %v2442
    %v4207 = vunpack.c.l.b16 %v2443
    %v4208 = vunpack.c.l.b16 %v2444
    %v4209 = vunpack.c.l.b16 %v2445
    %v4210 = vunpack.c.l.b16 %v2446
    %v4211 = vunpack.c.l.b16 %v2447
    %v4212 = vunpack.c.l.b16 %v2448
    %v4213 = vunpack.c.l.b16 %v2449
    %v4214 = vunpack.c.l.b16 %v2450
    %v4215 = vunpack.c.l.b16 %v2451
    %v4216 = vunpack.c.l.b16 %v2452
    %v4217 = vunpack.c.l.b16 %v2453
    %v4218 = vunpack.c.l.b16 %v2454
    %v4219 = vunpack.c.l.b16 %v2455
    %v4220 = vunpack.c.l.b16 %v2456
    %v4221 = vunpack.c.l.b16 %v2457
    %v4222 = vunpack.c.l.b16 %v2458
    %v4223 = vunpack.c.l.b16 %v2459
    %v4224 = vunpack.c.l.b16 %v2460
    %v4225 = vunpack.c.l.b16 %v2461
    %v4226 = vunpack.c.l.b16 %v2462
    %v4227 = vunpack.c.l.b16 %v2463
    %v4228 = vunpack.c.l.b16 %v2464
    %v4229 = vunpack.c.l.b16 %v2465
    %v4230 = vunpack.c.l.b16 %v2466
    %v4231 = vunpack.c.l.b16 %v2467
    %v4232 = vunpack.c.l.b16 %v2468
    %v4233 = vunpack.c.l.b16 %v2469
    %v4234 = vunpack.c.l.b16 %v2470
    %v4235 = vunpack.c.l.b16 %v2471
    %v4236 = vunpack.c.l.b16 %v2472
    %v4237 = vunpack.c.l.b16 %v2473
    %v4238 = vunpack.c.l.b16 %v2474
    %v4239 = vunpack.c.l.b16 %v2475
    %v4240 = vunpack.c.l.b16 %v2476
    %v4241 = vpack.c.b16 %v4098, %v4097
    %v4242 = vpack.c.b16 %v4100, %v4099
    %v4243 = vpack.c.b16 %v4102, %v4101
    %v4244 = vpack.c.b16 %v4104, %v4103
    %v4245 = vpack.c.b16 %v4106, %v4105
    %v4246 = vpack.c.b16 %v4108, %v4107
    %v4247 = vpack.c.b16 %v4110, %v4109
    %v4248 = vpack.c.b16 %v4112, %v4111
    %v4249 = vpack.c.b16 %v4114, %v4113
    %v4250 = vpack.c.b16 %v4116, %v4115
    %v4251 = vpack.c.b16 %v4118, %v4117
    %v4252 = vpack.c.b16 %v4120, %v4119
    %v4253 = vpack.c.b16 %v4122, %v4121
    %v4254 = vpack.c.b16 %v4124, %v4123
    %v4255 = vpack.c.b16 %v4126, %v4125
    %v4256 = vpack.c.b16 %v4128, %v4127
    %v4257 = vpack.c.b16 %v4130, %v4129
    %v4258 = vpack.c.b16 %v4132, %v4131
    %v4259 = vpack.c.b16 %v4134, %v4133
    %v4260 = vpack.c.b16 %v4136, %v4135
    %v4261 = vpack.c.b16 %v4138, %v4137
    %v4262 = vpack.c.b16 %v4140, %v4139
    %v4263 = vpack.c.b16 %v4142, %v4141
    %v4264 = vpack.c.b16 %v4144, %v4143
    %v4265 = vpack.c.b16 %v4146, %v4145
    %v4266 = vpack.c.b16 %v4148, %v4147
    %v4267 = vpack.c.b16 %v4150, %v4149
    %v4268 = vpack.c.b16 %v4152, %v4151
    %v4269 = vpack.c.b16 %v4154, %v4153
    %v4270 = vpack.c.b16 %v4156, %v4155
    %v4271 = vpack.c.b16 %v4158, %v4157
    %v4272 = vpack.c.b16 %v4160, %v4159
    %v4273 = vpack.c.b16 %v4162, %v4161
    %v4274 = vpack.c.b16 %v4164, %v4163
    %v4275 = vpack.c.b16 %v4166, %v4165
    %v4276 = vpack.c.b16 %v4168, %v4167
    %v4277 = vpack.c.b16 %v4170, %v4169
    %v4278 = vpack.c.b16 %v4172, %v4171
    %v4279 = vpack.c.b16 %v4174, %v4173
    %v4280 = vpack.c.b16 %v4176, %v4175
    %v4281 = vpack.c.b16 %v4178, %v4177
    %v4282 = vpack.c.b16 %v4180, %v4179
    %v4283 = vpack.c.b16 %v4182, %v4181
    %v4284 = vpack.c.b16 %v4184, %v4183
    %v4285 = vpack.c.b16 %v4186, %v4185
    %v4286 = vpack.c.b16 %v4188, %v4187
    %v4287 = vpack.c.b16 %v4190, %v4189
    %v4288 = vpack.c.b16 %v4192, %v4191
    %v4289 = vpack.c.b16 %v4194, %v4193
    %v4290 = vpack.c.b16 %v4196, %v4195
    %v4291 = vpack.c.b16 %v4198, %v4197
    %v4292 = vpack.c.b16 %v4200, %v4199
    %v4293 = vpack.c.b16 %v4202, %v4201
    %v4294 = vpack.c.b16 %v4204, %v4203
    %v4295 = vpack.c.b16 %v4206, %v4205
    %v4296 = vpack.c.b16 %v4208, %v4207
    %v4297 = vpack.c.b16 %v4210, %v4209
    %v4298 = vpack.c.b16 %v4212, %v4211
    %v4299 = vpack.c.b16 %v4214, %v4213
    %v4300 = vpack.c.b16 %v4216, %v4215
    %v4301 = vpack.c.b16 %v4218, %v4217
    %v4302 = vpack.c.b16 %v4220, %v4219
    %v4303 = vpack.c.b16 %v4222, %v4221
    %v4304 = vpack.c.b16 %v4224, %v4223
    %v4305 = vpack.c.b16 %v4226, %v4225
    %v4306 = vpack.c.b16 %v4228, %v4227
    %v4307 = vpack.c.b16 %v4230, %v4229
    %v4308 = vpack.c.b16 %v4232, %v4231
    %v4309 = vpack.c.b16 %v4234, %v4233
    %v4310 = vpack.c.b16 %v4236, %v4235
    %v4311 = vpack.c.b16 %v4238, %v4237
    %v4312 = vpack.c.b16 %v4240, %v4239
    %4385 = vmatpush.bf16.msra.mxu0 %v4248
    %4386 = vmatpush.bf16.msra.mxu0 %v4247
    %4387 = vmatpush.bf16.msra.mxu0 %v4246
    %4388 = vmatpush.bf16.msra.mxu0 %v4245
    %4389 = vmatpush.bf16.msra.mxu0 %v4244
    %4390 = vmatpush.bf16.msra.mxu0 %v4243
    %4391 = vmatpush.bf16.msra.mxu0 %v4242
    %4392 = vmatpush.bf16.msra.mxu0 %v4241
    %4393 = vmatmul.bf16.gmra.mxu0 %v3377
    %v4394 = vpop.f32.mrf.mxu0
    %v4395 = vadd.f32 %v2479, %v4394
    %v4396 = vpop.f32.mrf.mxu0
    %v4397 = vadd.f32 %v2479, %v4396
    %4398 = vmatmul.bf16.gmra.mxu0 %v3386
    %v4399 = vpop.f32.mrf.mxu0
    %v4400 = vadd.f32 %v2479, %v4399
    %v4401 = vpop.f32.mrf.mxu0
    %v4402 = vadd.f32 %v2479, %v4401
    %4403 = vmatmul.bf16.gmra.mxu0 %v3395
    %v4404 = vpop.f32.mrf.mxu0
    %v4405 = vadd.f32 %v2479, %v4404
    %v4406 = vpop.f32.mrf.mxu0
    %v4407 = vadd.f32 %v2479, %v4406
    %4408 = vmatmul.bf16.gmra.mxu0 %v3404
    %v4409 = vpop.f32.mrf.mxu0
    %v4410 = vadd.f32 %v2479, %v4409
    %v4411 = vpop.f32.mrf.mxu0
    %v4412 = vadd.f32 %v2479, %v4411
    %4413 = vmatmul.bf16.gmra.mxu0 %v3413
    %v4414 = vpop.f32.mrf.mxu0
    %v4415 = vadd.f32 %v2479, %v4414
    %v4416 = vpop.f32.mrf.mxu0
    %v4417 = vadd.f32 %v2479, %v4416
    %4418 = vmatmul.bf16.gmra.mxu0 %v3422
    %v4419 = vpop.f32.mrf.mxu0
    %v4420 = vadd.f32 %v2479, %v4419
    %v4421 = vpop.f32.mrf.mxu0
    %v4422 = vadd.f32 %v2479, %v4421
    %4423 = vmatmul.bf16.gmra.mxu0 %v3431
    %v4424 = vpop.f32.mrf.mxu0
    %v4425 = vadd.f32 %v2479, %v4424
    %v4426 = vpop.f32.mrf.mxu0
    %v4427 = vadd.f32 %v2479, %v4426
    %4428 = vmatmul.bf16.gmra.mxu0 %v3440
    %v4429 = vpop.f32.mrf.mxu0
    %v4430 = vadd.f32 %v2479, %v4429
    %v4431 = vpop.f32.mrf.mxu0
    %v4432 = vadd.f32 %v2479, %v4431
    %4433 = vmatmul.bf16.gmra.mxu0 %v3449
    %v4434 = vpop.f32.mrf.mxu0
    %v4435 = vadd.f32 %v2479, %v4434
    %v4436 = vpop.f32.mrf.mxu0
    %v4437 = vadd.f32 %v2479, %v4436
    %4438 = vmatmul.bf16.gmra.mxu0 %v3458
    %v4439 = vpop.f32.mrf.mxu0
    %v4440 = vadd.f32 %v2479, %v4439
    %v4441 = vpop.f32.mrf.mxu0
    %v4442 = vadd.f32 %v2479, %v4441
    %4443 = vmatmul.bf16.gmra.mxu0 %v3467
    %v4444 = vpop.f32.mrf.mxu0
    %v4445 = vadd.f32 %v2479, %v4444
    %v4446 = vpop.f32.mrf.mxu0
    %v4447 = vadd.f32 %v2479, %v4446
    %4448 = vmatmul.bf16.gmra.mxu0 %v3476
    %v4449 = vpop.f32.mrf.mxu0
    %v4450 = vadd.f32 %v2479, %v4449
    %v4451 = vpop.f32.mrf.mxu0
    %v4452 = vadd.f32 %v2479, %v4451
    %4453 = vmatmul.bf16.gmra.mxu0 %v3485
    %v4454 = vpop.f32.mrf.mxu0
    %v4455 = vadd.f32 %v2479, %v4454
    %v4456 = vpop.f32.mrf.mxu0
    %v4457 = vadd.f32 %v2479, %v4456
    %4458 = vmatmul.bf16.gmra.mxu0 %v3494
    %v4459 = vpop.f32.mrf.mxu0
    %v4460 = vadd.f32 %v2479, %v4459
    %v4461 = vpop.f32.mrf.mxu0
    %v4462 = vadd.f32 %v2479, %v4461
    %4463 = vmatmul.bf16.gmra.mxu0 %v3503
    %v4464 = vpop.f32.mrf.mxu0
    %v4465 = vadd.f32 %v2479, %v4464
    %v4466 = vpop.f32.mrf.mxu0
    %v4467 = vadd.f32 %v2479, %v4466
    %4468 = vmatmul.bf16.gmra.mxu0 %v3512
    %v4469 = vpop.f32.mrf.mxu0
    %v4470 = vadd.f32 %v2479, %v4469
    %v4471 = vpop.f32.mrf.mxu0
    %v4472 = vadd.f32 %v2479, %v4471
    %4473 = vmatmul.bf16.gmra.mxu0 %v3521
    %v4474 = vpop.f32.mrf.mxu0
    %v4475 = vadd.f32 %v2479, %v4474
    %v4476 = vpop.f32.mrf.mxu0
    %v4477 = vadd.f32 %v2479, %v4476
    %4478 = vmatmul.bf16.gmra.mxu0 %v3530
    %v4479 = vpop.f32.mrf.mxu0
    %v4480 = vadd.f32 %v2479, %v4479
    %v4481 = vpop.f32.mrf.mxu0
    %v4482 = vadd.f32 %v2479, %v4481
    %4483 = vmatmul.bf16.gmra.mxu0 %v3539
    %v4484 = vpop.f32.mrf.mxu0
    %v4485 = vadd.f32 %v2479, %v4484
    %v4486 = vpop.f32.mrf.mxu0
    %v4487 = vadd.f32 %v2479, %v4486
    %4488 = vmatmul.bf16.gmra.mxu0 %v3548
    %v4489 = vpop.f32.mrf.mxu0
    %v4490 = vadd.f32 %v2479, %v4489
    %v4491 = vpop.f32.mrf.mxu0
    %v4492 = vadd.f32 %v2479, %v4491
    %4493 = vmatmul.bf16.gmra.mxu0 %v3557
    %v4494 = vpop.f32.mrf.mxu0
    %v4495 = vadd.f32 %v2479, %v4494
    %v4496 = vpop.f32.mrf.mxu0
    %v4497 = vadd.f32 %v2479, %v4496
    %4498 = vmatmul.bf16.gmra.mxu0 %v3566
    %v4499 = vpop.f32.mrf.mxu0
    %v4500 = vadd.f32 %v2479, %v4499
    %v4501 = vpop.f32.mrf.mxu0
    %v4502 = vadd.f32 %v2479, %v4501
    %4503 = vmatmul.bf16.gmra.mxu0 %v3575
    %v4504 = vpop.f32.mrf.mxu0
    %v4505 = vadd.f32 %v2479, %v4504
    %v4506 = vpop.f32.mrf.mxu0
    %v4507 = vadd.f32 %v2479, %v4506
    %4508 = vmatmul.bf16.gmra.mxu0 %v3584
    %v4509 = vpop.f32.mrf.mxu0
    %v4510 = vadd.f32 %v2479, %v4509
    %v4511 = vpop.f32.mrf.mxu0
    %v4512 = vadd.f32 %v2479, %v4511
    %4513 = vmatmul.bf16.gmra.mxu0 %v3593
    %v4514 = vpop.f32.mrf.mxu0
    %v4515 = vadd.f32 %v2479, %v4514
    %v4516 = vpop.f32.mrf.mxu0
    %v4517 = vadd.f32 %v2479, %v4516
    %4518 = vmatmul.bf16.gmra.mxu0 %v3602
    %v4519 = vpop.f32.mrf.mxu0
    %v4520 = vadd.f32 %v2479, %v4519
    %v4521 = vpop.f32.mrf.mxu0
    %v4522 = vadd.f32 %v2479, %v4521
    %4523 = vmatmul.bf16.gmra.mxu0 %v3611
    %v4524 = vpop.f32.mrf.mxu0
    %v4525 = vadd.f32 %v2479, %v4524
    %v4526 = vpop.f32.mrf.mxu0
    %v4527 = vadd.f32 %v2479, %v4526
    %4528 = vmatmul.bf16.gmra.mxu0 %v3620
    %v4529 = vpop.f32.mrf.mxu0
    %v4530 = vadd.f32 %v2479, %v4529
    %v4531 = vpop.f32.mrf.mxu0
    %v4532 = vadd.f32 %v2479, %v4531
    %4533 = vmatmul.bf16.gmra.mxu0 %v3629
    %v4534 = vpop.f32.mrf.mxu0
    %v4535 = vadd.f32 %v2479, %v4534
    %v4536 = vpop.f32.mrf.mxu0
    %v4537 = vadd.f32 %v2479, %v4536
    %4538 = vmatmul.bf16.gmra.mxu0 %v3638
    %v4539 = vpop.f32.mrf.mxu0
    %v4540 = vadd.f32 %v2479, %v4539
    %v4541 = vpop.f32.mrf.mxu0
    %v4542 = vadd.f32 %v2479, %v4541
    %4543 = vmatmul.bf16.gmra.mxu0 %v3647
    %v4544 = vpop.f32.mrf.mxu0
    %v4545 = vadd.f32 %v2479, %v4544
    %v4546 = vpop.f32.mrf.mxu0
    %v4547 = vadd.f32 %v2479, %v4546
    %4548 = vmatmul.bf16.gmra.mxu0 %v3656
    %v4549 = vpop.f32.mrf.mxu0
    %v4550 = vadd.f32 %v2479, %v4549
    %v4551 = vpop.f32.mrf.mxu0
    %v4552 = vadd.f32 %v2479, %v4551
    %4553 = vdwg.mxu0
    %4554 = vmatpush.bf16.msra.mxu0 %v4256
    %4555 = vmatpush.bf16.msra.mxu0 %v4255
    %4556 = vmatpush.bf16.msra.mxu0 %v4254
    %4557 = vmatpush.bf16.msra.mxu0 %v4253
    %4558 = vmatpush.bf16.msra.mxu0 %v4252
    %4559 = vmatpush.bf16.msra.mxu0 %v4251
    %4560 = vmatpush.bf16.msra.mxu0 %v4250
    %4561 = vmatpush.bf16.msra.mxu0 %v4249
    %4562 = vmatmul.bf16.gmra.mxu0 %v3378
    %v4563 = vpop.f32.mrf.mxu0
    %v4564 = vadd.f32 %v4395, %v4563
    %v4565 = vpop.f32.mrf.mxu0
    %v4566 = vadd.f32 %v4397, %v4565
    %4567 = vmatmul.bf16.gmra.mxu0 %v3387
    %v4568 = vpop.f32.mrf.mxu0
    %v4569 = vadd.f32 %v4400, %v4568
    %v4570 = vpop.f32.mrf.mxu0
    %v4571 = vadd.f32 %v4402, %v4570
    %4572 = vmatmul.bf16.gmra.mxu0 %v3396
    %v4573 = vpop.f32.mrf.mxu0
    %v4574 = vadd.f32 %v4405, %v4573
    %v4575 = vpop.f32.mrf.mxu0
    %v4576 = vadd.f32 %v4407, %v4575
    %4577 = vmatmul.bf16.gmra.mxu0 %v3405
    %v4578 = vpop.f32.mrf.mxu0
    %v4579 = vadd.f32 %v4410, %v4578
    %v4580 = vpop.f32.mrf.mxu0
    %v4581 = vadd.f32 %v4412, %v4580
    %4582 = vmatmul.bf16.gmra.mxu0 %v3414
    %v4583 = vpop.f32.mrf.mxu0
    %v4584 = vadd.f32 %v4415, %v4583
    %v4585 = vpop.f32.mrf.mxu0
    %v4586 = vadd.f32 %v4417, %v4585
    %4587 = vmatmul.bf16.gmra.mxu0 %v3423
    %v4588 = vpop.f32.mrf.mxu0
    %v4589 = vadd.f32 %v4420, %v4588
    %v4590 = vpop.f32.mrf.mxu0
    %v4591 = vadd.f32 %v4422, %v4590
    %4592 = vmatmul.bf16.gmra.mxu0 %v3432
    %v4593 = vpop.f32.mrf.mxu0
    %v4594 = vadd.f32 %v4425, %v4593
    %v4595 = vpop.f32.mrf.mxu0
    %v4596 = vadd.f32 %v4427, %v4595
    %4597 = vmatmul.bf16.gmra.mxu0 %v3441
    %v4598 = vpop.f32.mrf.mxu0
    %v4599 = vadd.f32 %v4430, %v4598
    %v4600 = vpop.f32.mrf.mxu0
    %v4601 = vadd.f32 %v4432, %v4600
    %4602 = vmatmul.bf16.gmra.mxu0 %v3450
    %v4603 = vpop.f32.mrf.mxu0
    %v4604 = vadd.f32 %v4435, %v4603
    %v4605 = vpop.f32.mrf.mxu0
    %v4606 = vadd.f32 %v4437, %v4605
    %4607 = vmatmul.bf16.gmra.mxu0 %v3459
    %v4608 = vpop.f32.mrf.mxu0
    %v4609 = vadd.f32 %v4440, %v4608
    %v4610 = vpop.f32.mrf.mxu0
    %v4611 = vadd.f32 %v4442, %v4610
    %4612 = vmatmul.bf16.gmra.mxu0 %v3468
    %v4613 = vpop.f32.mrf.mxu0
    %v4614 = vadd.f32 %v4445, %v4613
    %v4615 = vpop.f32.mrf.mxu0
    %v4616 = vadd.f32 %v4447, %v4615
    %4617 = vmatmul.bf16.gmra.mxu0 %v3477
    %v4618 = vpop.f32.mrf.mxu0
    %v4619 = vadd.f32 %v4450, %v4618
    %v4620 = vpop.f32.mrf.mxu0
    %v4621 = vadd.f32 %v4452, %v4620
    %4622 = vmatmul.bf16.gmra.mxu0 %v3486
    %v4623 = vpop.f32.mrf.mxu0
    %v4624 = vadd.f32 %v4455, %v4623
    %v4625 = vpop.f32.mrf.mxu0
    %v4626 = vadd.f32 %v4457, %v4625
    %4627 = vmatmul.bf16.gmra.mxu0 %v3495
    %v4628 = vpop.f32.mrf.mxu0
    %v4629 = vadd.f32 %v4460, %v4628
    %v4630 = vpop.f32.mrf.mxu0
    %v4631 = vadd.f32 %v4462, %v4630
    %4632 = vmatmul.bf16.gmra.mxu0 %v3504
    %v4633 = vpop.f32.mrf.mxu0
    %v4634 = vadd.f32 %v4465, %v4633
    %v4635 = vpop.f32.mrf.mxu0
    %v4636 = vadd.f32 %v4467, %v4635
    %4637 = vmatmul.bf16.gmra.mxu0 %v3513
    %v4638 = vpop.f32.mrf.mxu0
    %v4639 = vadd.f32 %v4470, %v4638
    %v4640 = vpop.f32.mrf.mxu0
    %v4641 = vadd.f32 %v4472, %v4640
    %4642 = vmatmul.bf16.gmra.mxu0 %v3522
    %v4643 = vpop.f32.mrf.mxu0
    %v4644 = vadd.f32 %v4475, %v4643
    %v4645 = vpop.f32.mrf.mxu0
    %v4646 = vadd.f32 %v4477, %v4645
    %4647 = vmatmul.bf16.gmra.mxu0 %v3531
    %v4648 = vpop.f32.mrf.mxu0
    %v4649 = vadd.f32 %v4480, %v4648
    %v4650 = vpop.f32.mrf.mxu0
    %v4651 = vadd.f32 %v4482, %v4650
    %4652 = vmatmul.bf16.gmra.mxu0 %v3540
    %v4653 = vpop.f32.mrf.mxu0
    %v4654 = vadd.f32 %v4485, %v4653
    %v4655 = vpop.f32.mrf.mxu0
    %v4656 = vadd.f32 %v4487, %v4655
    %4657 = vmatmul.bf16.gmra.mxu0 %v3549
    %v4658 = vpop.f32.mrf.mxu0
    %v4659 = vadd.f32 %v4490, %v4658
    %v4660 = vpop.f32.mrf.mxu0
    %v4661 = vadd.f32 %v4492, %v4660
    %4662 = vmatmul.bf16.gmra.mxu0 %v3558
    %v4663 = vpop.f32.mrf.mxu0
    %v4664 = vadd.f32 %v4495, %v4663
    %v4665 = vpop.f32.mrf.mxu0
    %v4666 = vadd.f32 %v4497, %v4665
    %4667 = vmatmul.bf16.gmra.mxu0 %v3567
    %v4668 = vpop.f32.mrf.mxu0
    %v4669 = vadd.f32 %v4500, %v4668
    %v4670 = vpop.f32.mrf.mxu0
    %v4671 = vadd.f32 %v4502, %v4670
    %4672 = vmatmul.bf16.gmra.mxu0 %v3576
    %v4673 = vpop.f32.mrf.mxu0
    %v4674 = vadd.f32 %v4505, %v4673
    %v4675 = vpop.f32.mrf.mxu0
    %v4676 = vadd.f32 %v4507, %v4675
    %4677 = vmatmul.bf16.gmra.mxu0 %v3585
    %v4678 = vpop.f32.mrf.mxu0
    %v4679 = vadd.f32 %v4510, %v4678
    %v4680 = vpop.f32.mrf.mxu0
    %v4681 = vadd.f32 %v4512, %v4680
    %4682 = vmatmul.bf16.gmra.mxu0 %v3594
    %v4683 = vpop.f32.mrf.mxu0
    %v4684 = vadd.f32 %v4515, %v4683
    %v4685 = vpop.f32.mrf.mxu0
    %v4686 = vadd.f32 %v4517, %v4685
    %4687 = vmatmul.bf16.gmra.mxu0 %v3603
    %v4688 = vpop.f32.mrf.mxu0
    %v4689 = vadd.f32 %v4520, %v4688
    %v4690 = vpop.f32.mrf.mxu0
    %v4691 = vadd.f32 %v4522, %v4690
    %4692 = vmatmul.bf16.gmra.mxu0 %v3612
    %v4693 = vpop.f32.mrf.mxu0
    %v4694 = vadd.f32 %v4525, %v4693
    %v4695 = vpop.f32.mrf.mxu0
    %v4696 = vadd.f32 %v4527, %v4695
    %4697 = vmatmul.bf16.gmra.mxu0 %v3621
    %v4698 = vpop.f32.mrf.mxu0
    %v4699 = vadd.f32 %v4530, %v4698
    %v4700 = vpop.f32.mrf.mxu0
    %v4701 = vadd.f32 %v4532, %v4700
    %4702 = vmatmul.bf16.gmra.mxu0 %v3630
    %v4703 = vpop.f32.mrf.mxu0
    %v4704 = vadd.f32 %v4535, %v4703
    %v4705 = vpop.f32.mrf.mxu0
    %v4706 = vadd.f32 %v4537, %v4705
    %4707 = vmatmul.bf16.gmra.mxu0 %v3639
    %v4708 = vpop.f32.mrf.mxu0
    %v4709 = vadd.f32 %v4540, %v4708
    %v4710 = vpop.f32.mrf.mxu0
    %v4711 = vadd.f32 %v4542, %v4710
    %4712 = vmatmul.bf16.gmra.mxu0 %v3648
    %v4713 = vpop.f32.mrf.mxu0
    %v4714 = vadd.f32 %v4545, %v4713
    %v4715 = vpop.f32.mrf.mxu0
    %v4716 = vadd.f32 %v4547, %v4715
    %4717 = vmatmul.bf16.gmra.mxu0 %v3657
    %v4718 = vpop.f32.mrf.mxu0
    %v4719 = vadd.f32 %v4550, %v4718
    %v4720 = vpop.f32.mrf.mxu0
    %v4721 = vadd.f32 %v4552, %v4720
    %4722 = vdwg.mxu0
    %4723 = vmatpush.bf16.msra.mxu0 %v4264
    %4724 = vmatpush.bf16.msra.mxu0 %v4263
    %4725 = vmatpush.bf16.msra.mxu0 %v4262
    %4726 = vmatpush.bf16.msra.mxu0 %v4261
    %4727 = vmatpush.bf16.msra.mxu0 %v4260
    %4728 = vmatpush.bf16.msra.mxu0 %v4259
    %4729 = vmatpush.bf16.msra.mxu0 %v4258
    %4730 = vmatpush.bf16.msra.mxu0 %v4257
    %4731 = vmatmul.bf16.gmra.mxu0 %v3379
    %v4732 = vpop.f32.mrf.mxu0
    %v4733 = vadd.f32 %v4564, %v4732
    %v4734 = vpop.f32.mrf.mxu0
    %v4735 = vadd.f32 %v4566, %v4734
    %4736 = vmatmul.bf16.gmra.mxu0 %v3388
    %v4737 = vpop.f32.mrf.mxu0
    %v4738 = vadd.f32 %v4569, %v4737
    %v4739 = vpop.f32.mrf.mxu0
    %v4740 = vadd.f32 %v4571, %v4739
    %4741 = vmatmul.bf16.gmra.mxu0 %v3397
    %v4742 = vpop.f32.mrf.mxu0
    %v4743 = vadd.f32 %v4574, %v4742
    %v4744 = vpop.f32.mrf.mxu0
    %v4745 = vadd.f32 %v4576, %v4744
    %4746 = vmatmul.bf16.gmra.mxu0 %v3406
    %v4747 = vpop.f32.mrf.mxu0
    %v4748 = vadd.f32 %v4579, %v4747
    %v4749 = vpop.f32.mrf.mxu0
    %v4750 = vadd.f32 %v4581, %v4749
    %4751 = vmatmul.bf16.gmra.mxu0 %v3415
    %v4752 = vpop.f32.mrf.mxu0
    %v4753 = vadd.f32 %v4584, %v4752
    %v4754 = vpop.f32.mrf.mxu0
    %v4755 = vadd.f32 %v4586, %v4754
    %4756 = vmatmul.bf16.gmra.mxu0 %v3424
    %v4757 = vpop.f32.mrf.mxu0
    %v4758 = vadd.f32 %v4589, %v4757
    %v4759 = vpop.f32.mrf.mxu0
    %v4760 = vadd.f32 %v4591, %v4759
    %4761 = vmatmul.bf16.gmra.mxu0 %v3433
    %v4762 = vpop.f32.mrf.mxu0
    %v4763 = vadd.f32 %v4594, %v4762
    %v4764 = vpop.f32.mrf.mxu0
    %v4765 = vadd.f32 %v4596, %v4764
    %4766 = vmatmul.bf16.gmra.mxu0 %v3442
    %v4767 = vpop.f32.mrf.mxu0
    %v4768 = vadd.f32 %v4599, %v4767
    %v4769 = vpop.f32.mrf.mxu0
    %v4770 = vadd.f32 %v4601, %v4769
    %4771 = vmatmul.bf16.gmra.mxu0 %v3451
    %v4772 = vpop.f32.mrf.mxu0
    %v4773 = vadd.f32 %v4604, %v4772
    %v4774 = vpop.f32.mrf.mxu0
    %v4775 = vadd.f32 %v4606, %v4774
    %4776 = vmatmul.bf16.gmra.mxu0 %v3460
    %v4777 = vpop.f32.mrf.mxu0
    %v4778 = vadd.f32 %v4609, %v4777
    %v4779 = vpop.f32.mrf.mxu0
    %v4780 = vadd.f32 %v4611, %v4779
    %4781 = vmatmul.bf16.gmra.mxu0 %v3469
    %v4782 = vpop.f32.mrf.mxu0
    %v4783 = vadd.f32 %v4614, %v4782
    %v4784 = vpop.f32.mrf.mxu0
    %v4785 = vadd.f32 %v4616, %v4784
    %4786 = vmatmul.bf16.gmra.mxu0 %v3478
    %v4787 = vpop.f32.mrf.mxu0
    %v4788 = vadd.f32 %v4619, %v4787
    %v4789 = vpop.f32.mrf.mxu0
    %v4790 = vadd.f32 %v4621, %v4789
    %4791 = vmatmul.bf16.gmra.mxu0 %v3487
    %v4792 = vpop.f32.mrf.mxu0
    %v4793 = vadd.f32 %v4624, %v4792
    %v4794 = vpop.f32.mrf.mxu0
    %v4795 = vadd.f32 %v4626, %v4794
    %4796 = vmatmul.bf16.gmra.mxu0 %v3496
    %v4797 = vpop.f32.mrf.mxu0
    %v4798 = vadd.f32 %v4629, %v4797
    %v4799 = vpop.f32.mrf.mxu0
    %v4800 = vadd.f32 %v4631, %v4799
    %4801 = vmatmul.bf16.gmra.mxu0 %v3505
    %v4802 = vpop.f32.mrf.mxu0
    %v4803 = vadd.f32 %v4634, %v4802
    %v4804 = vpop.f32.mrf.mxu0
    %v4805 = vadd.f32 %v4636, %v4804
    %4806 = vmatmul.bf16.gmra.mxu0 %v3514
    %v4807 = vpop.f32.mrf.mxu0
    %v4808 = vadd.f32 %v4639, %v4807
    %v4809 = vpop.f32.mrf.mxu0
    %v4810 = vadd.f32 %v4641, %v4809
    %4811 = vmatmul.bf16.gmra.mxu0 %v3523
    %v4812 = vpop.f32.mrf.mxu0
    %v4813 = vadd.f32 %v4644, %v4812
    %v4814 = vpop.f32.mrf.mxu0
    %v4815 = vadd.f32 %v4646, %v4814
    %4816 = vmatmul.bf16.gmra.mxu0 %v3532
    %v4817 = vpop.f32.mrf.mxu0
    %v4818 = vadd.f32 %v4649, %v4817
    %v4819 = vpop.f32.mrf.mxu0
    %v4820 = vadd.f32 %v4651, %v4819
    %4821 = vmatmul.bf16.gmra.mxu0 %v3541
    %v4822 = vpop.f32.mrf.mxu0
    %v4823 = vadd.f32 %v4654, %v4822
    %v4824 = vpop.f32.mrf.mxu0
    %v4825 = vadd.f32 %v4656, %v4824
    %4826 = vmatmul.bf16.gmra.mxu0 %v3550
    %v4827 = vpop.f32.mrf.mxu0
    %v4828 = vadd.f32 %v4659, %v4827
    %v4829 = vpop.f32.mrf.mxu0
    %v4830 = vadd.f32 %v4661, %v4829
    %4831 = vmatmul.bf16.gmra.mxu0 %v3559
    %v4832 = vpop.f32.mrf.mxu0
    %v4833 = vadd.f32 %v4664, %v4832
    %v4834 = vpop.f32.mrf.mxu0
    %v4835 = vadd.f32 %v4666, %v4834
    %4836 = vmatmul.bf16.gmra.mxu0 %v3568
    %v4837 = vpop.f32.mrf.mxu0
    %v4838 = vadd.f32 %v4669, %v4837
    %v4839 = vpop.f32.mrf.mxu0
    %v4840 = vadd.f32 %v4671, %v4839
    %4841 = vmatmul.bf16.gmra.mxu0 %v3577
    %v4842 = vpop.f32.mrf.mxu0
    %v4843 = vadd.f32 %v4674, %v4842
    %v4844 = vpop.f32.mrf.mxu0
    %v4845 = vadd.f32 %v4676, %v4844
    %4846 = vmatmul.bf16.gmra.mxu0 %v3586
    %v4847 = vpop.f32.mrf.mxu0
    %v4848 = vadd.f32 %v4679, %v4847
    %v4849 = vpop.f32.mrf.mxu0
    %v4850 = vadd.f32 %v4681, %v4849
    %4851 = vmatmul.bf16.gmra.mxu0 %v3595
    %v4852 = vpop.f32.mrf.mxu0
    %v4853 = vadd.f32 %v4684, %v4852
    %v4854 = vpop.f32.mrf.mxu0
    %v4855 = vadd.f32 %v4686, %v4854
    %4856 = vmatmul.bf16.gmra.mxu0 %v3604
    %v4857 = vpop.f32.mrf.mxu0
    %v4858 = vadd.f32 %v4689, %v4857
    %v4859 = vpop.f32.mrf.mxu0
    %v4860 = vadd.f32 %v4691, %v4859
    %4861 = vmatmul.bf16.gmra.mxu0 %v3613
    %v4862 = vpop.f32.mrf.mxu0
    %v4863 = vadd.f32 %v4694, %v4862
    %v4864 = vpop.f32.mrf.mxu0
    %v4865 = vadd.f32 %v4696, %v4864
    %4866 = vmatmul.bf16.gmra.mxu0 %v3622
    %v4867 = vpop.f32.mrf.mxu0
    %v4868 = vadd.f32 %v4699, %v4867
    %v4869 = vpop.f32.mrf.mxu0
    %v4870 = vadd.f32 %v4701, %v4869
    %4871 = vmatmul.bf16.gmra.mxu0 %v3631
    %v4872 = vpop.f32.mrf.mxu0
    %v4873 = vadd.f32 %v4704, %v4872
    %v4874 = vpop.f32.mrf.mxu0
    %v4875 = vadd.f32 %v4706, %v4874
    %4876 = vmatmul.bf16.gmra.mxu0 %v3640
    %v4877 = vpop.f32.mrf.mxu0
    %v4878 = vadd.f32 %v4709, %v4877
    %v4879 = vpop.f32.mrf.mxu0
    %v4880 = vadd.f32 %v4711, %v4879
    %4881 = vmatmul.bf16.gmra.mxu0 %v3649
    %v4882 = vpop.f32.mrf.mxu0
    %v4883 = vadd.f32 %v4714, %v4882
    %v4884 = vpop.f32.mrf.mxu0
    %v4885 = vadd.f32 %v4716, %v4884
    %4886 = vmatmul.bf16.gmra.mxu0 %v3658
    %v4887 = vpop.f32.mrf.mxu0
    %v4888 = vadd.f32 %v4719, %v4887
    %v4889 = vpop.f32.mrf.mxu0
    %v4890 = vadd.f32 %v4721, %v4889
    %4891 = vdwg.mxu0
    %4892 = vmatpush.bf16.msra.mxu0 %v4272
    %4893 = vmatpush.bf16.msra.mxu0 %v4271
    %4894 = vmatpush.bf16.msra.mxu0 %v4270
    %4895 = vmatpush.bf16.msra.mxu0 %v4269
    %4896 = vmatpush.bf16.msra.mxu0 %v4268
    %4897 = vmatpush.bf16.msra.mxu0 %v4267
    %4898 = vmatpush.bf16.msra.mxu0 %v4266
    %4899 = vmatpush.bf16.msra.mxu0 %v4265
    %4900 = vmatmul.bf16.gmra.mxu0 %v3380
    %v4901 = vpop.f32.mrf.mxu0
    %v4902 = vadd.f32 %v4733, %v4901
    %v4903 = vpop.f32.mrf.mxu0
    %v4904 = vadd.f32 %v4735, %v4903
    %4905 = vmatmul.bf16.gmra.mxu0 %v3389
    %v4906 = vpop.f32.mrf.mxu0
    %v4907 = vadd.f32 %v4738, %v4906
    %v4908 = vpop.f32.mrf.mxu0
    %v4909 = vadd.f32 %v4740, %v4908
    %4910 = vmatmul.bf16.gmra.mxu0 %v3398
    %v4911 = vpop.f32.mrf.mxu0
    %v4912 = vadd.f32 %v4743, %v4911
    %v4913 = vpop.f32.mrf.mxu0
    %v4914 = vadd.f32 %v4745, %v4913
    %4915 = vmatmul.bf16.gmra.mxu0 %v3407
    %v4916 = vpop.f32.mrf.mxu0
    %v4917 = vadd.f32 %v4748, %v4916
    %v4918 = vpop.f32.mrf.mxu0
    %v4919 = vadd.f32 %v4750, %v4918
    %4920 = vmatmul.bf16.gmra.mxu0 %v3416
    %v4921 = vpop.f32.mrf.mxu0
    %v4922 = vadd.f32 %v4753, %v4921
    %v4923 = vpop.f32.mrf.mxu0
    %v4924 = vadd.f32 %v4755, %v4923
    %4925 = vmatmul.bf16.gmra.mxu0 %v3425
    %v4926 = vpop.f32.mrf.mxu0
    %v4927 = vadd.f32 %v4758, %v4926
    %v4928 = vpop.f32.mrf.mxu0
    %v4929 = vadd.f32 %v4760, %v4928
    %4930 = vmatmul.bf16.gmra.mxu0 %v3434
    %v4931 = vpop.f32.mrf.mxu0
    %v4932 = vadd.f32 %v4763, %v4931
    %v4933 = vpop.f32.mrf.mxu0
    %v4934 = vadd.f32 %v4765, %v4933
    %4935 = vmatmul.bf16.gmra.mxu0 %v3443
    %v4936 = vpop.f32.mrf.mxu0
    %v4937 = vadd.f32 %v4768, %v4936
    %v4938 = vpop.f32.mrf.mxu0
    %v4939 = vadd.f32 %v4770, %v4938
    %4940 = vmatmul.bf16.gmra.mxu0 %v3452
    %v4941 = vpop.f32.mrf.mxu0
    %v4942 = vadd.f32 %v4773, %v4941
    %v4943 = vpop.f32.mrf.mxu0
    %v4944 = vadd.f32 %v4775, %v4943
    %4945 = vmatmul.bf16.gmra.mxu0 %v3461
    %v4946 = vpop.f32.mrf.mxu0
    %v4947 = vadd.f32 %v4778, %v4946
    %v4948 = vpop.f32.mrf.mxu0
    %v4949 = vadd.f32 %v4780, %v4948
    %4950 = vmatmul.bf16.gmra.mxu0 %v3470
    %v4951 = vpop.f32.mrf.mxu0
    %v4952 = vadd.f32 %v4783, %v4951
    %v4953 = vpop.f32.mrf.mxu0
    %v4954 = vadd.f32 %v4785, %v4953
    %4955 = vmatmul.bf16.gmra.mxu0 %v3479
    %v4956 = vpop.f32.mrf.mxu0
    %v4957 = vadd.f32 %v4788, %v4956
    %v4958 = vpop.f32.mrf.mxu0
    %v4959 = vadd.f32 %v4790, %v4958
    %4960 = vmatmul.bf16.gmra.mxu0 %v3488
    %v4961 = vpop.f32.mrf.mxu0
    %v4962 = vadd.f32 %v4793, %v4961
    %v4963 = vpop.f32.mrf.mxu0
    %v4964 = vadd.f32 %v4795, %v4963
    %4965 = vmatmul.bf16.gmra.mxu0 %v3497
    %v4966 = vpop.f32.mrf.mxu0
    %v4967 = vadd.f32 %v4798, %v4966
    %v4968 = vpop.f32.mrf.mxu0
    %v4969 = vadd.f32 %v4800, %v4968
    %4970 = vmatmul.bf16.gmra.mxu0 %v3506
    %v4971 = vpop.f32.mrf.mxu0
    %v4972 = vadd.f32 %v4803, %v4971
    %v4973 = vpop.f32.mrf.mxu0
    %v4974 = vadd.f32 %v4805, %v4973
    %4975 = vmatmul.bf16.gmra.mxu0 %v3515
    %v4976 = vpop.f32.mrf.mxu0
    %v4977 = vadd.f32 %v4808, %v4976
    %v4978 = vpop.f32.mrf.mxu0
    %v4979 = vadd.f32 %v4810, %v4978
    %4980 = vmatmul.bf16.gmra.mxu0 %v3524
    %v4981 = vpop.f32.mrf.mxu0
    %v4982 = vadd.f32 %v4813, %v4981
    %v4983 = vpop.f32.mrf.mxu0
    %v4984 = vadd.f32 %v4815, %v4983
    %4985 = vmatmul.bf16.gmra.mxu0 %v3533
    %v4986 = vpop.f32.mrf.mxu0
    %v4987 = vadd.f32 %v4818, %v4986
    %v4988 = vpop.f32.mrf.mxu0
    %v4989 = vadd.f32 %v4820, %v4988
    %4990 = vmatmul.bf16.gmra.mxu0 %v3542
    %v4991 = vpop.f32.mrf.mxu0
    %v4992 = vadd.f32 %v4823, %v4991
    %v4993 = vpop.f32.mrf.mxu0
    %v4994 = vadd.f32 %v4825, %v4993
    %4995 = vmatmul.bf16.gmra.mxu0 %v3551
    %v4996 = vpop.f32.mrf.mxu0
    %v4997 = vadd.f32 %v4828, %v4996
    %v4998 = vpop.f32.mrf.mxu0
    %v4999 = vadd.f32 %v4830, %v4998
    %5000 = vmatmul.bf16.gmra.mxu0 %v3560
    %v5001 = vpop.f32.mrf.mxu0
    %v5002 = vadd.f32 %v4833, %v5001
    %v5003 = vpop.f32.mrf.mxu0
    %v5004 = vadd.f32 %v4835, %v5003
    %5005 = vmatmul.bf16.gmra.mxu0 %v3569
    %v5006 = vpop.f32.mrf.mxu0
    %v5007 = vadd.f32 %v4838, %v5006
    %v5008 = vpop.f32.mrf.mxu0
    %v5009 = vadd.f32 %v4840, %v5008
    %5010 = vmatmul.bf16.gmra.mxu0 %v3578
    %v5011 = vpop.f32.mrf.mxu0
    %v5012 = vadd.f32 %v4843, %v5011
    %v5013 = vpop.f32.mrf.mxu0
    %v5014 = vadd.f32 %v4845, %v5013
    %5015 = vmatmul.bf16.gmra.mxu0 %v3587
    %v5016 = vpop.f32.mrf.mxu0
    %v5017 = vadd.f32 %v4848, %v5016
    %v5018 = vpop.f32.mrf.mxu0
    %v5019 = vadd.f32 %v4850, %v5018
    %5020 = vmatmul.bf16.gmra.mxu0 %v3596
    %v5021 = vpop.f32.mrf.mxu0
    %v5022 = vadd.f32 %v4853, %v5021
    %v5023 = vpop.f32.mrf.mxu0
    %v5024 = vadd.f32 %v4855, %v5023
    %5025 = vmatmul.bf16.gmra.mxu0 %v3605
    %v5026 = vpop.f32.mrf.mxu0
    %v5027 = vadd.f32 %v4858, %v5026
    %v5028 = vpop.f32.mrf.mxu0
    %v5029 = vadd.f32 %v4860, %v5028
    %5030 = vmatmul.bf16.gmra.mxu0 %v3614
    %v5031 = vpop.f32.mrf.mxu0
    %v5032 = vadd.f32 %v4863, %v5031
    %v5033 = vpop.f32.mrf.mxu0
    %v5034 = vadd.f32 %v4865, %v5033
    %5035 = vmatmul.bf16.gmra.mxu0 %v3623
    %v5036 = vpop.f32.mrf.mxu0
    %v5037 = vadd.f32 %v4868, %v5036
    %v5038 = vpop.f32.mrf.mxu0
    %v5039 = vadd.f32 %v4870, %v5038
    %5040 = vmatmul.bf16.gmra.mxu0 %v3632
    %v5041 = vpop.f32.mrf.mxu0
    %v5042 = vadd.f32 %v4873, %v5041
    %v5043 = vpop.f32.mrf.mxu0
    %v5044 = vadd.f32 %v4875, %v5043
    %5045 = vmatmul.bf16.gmra.mxu0 %v3641
    %v5046 = vpop.f32.mrf.mxu0
    %v5047 = vadd.f32 %v4878, %v5046
    %v5048 = vpop.f32.mrf.mxu0
    %v5049 = vadd.f32 %v4880, %v5048
    %5050 = vmatmul.bf16.gmra.mxu0 %v3650
    %v5051 = vpop.f32.mrf.mxu0
    %v5052 = vadd.f32 %v4883, %v5051
    %v5053 = vpop.f32.mrf.mxu0
    %v5054 = vadd.f32 %v4885, %v5053
    %5055 = vmatmul.bf16.gmra.mxu0 %v3659
    %v5056 = vpop.f32.mrf.mxu0
    %v5057 = vadd.f32 %v4888, %v5056
    %v5058 = vpop.f32.mrf.mxu0
    %v5059 = vadd.f32 %v4890, %v5058
    %5060 = vdwg.mxu0
    %5061 = vmatpush.bf16.msra.mxu0 %v4280
    %5062 = vmatpush.bf16.msra.mxu0 %v4279
    %5063 = vmatpush.bf16.msra.mxu0 %v4278
    %5064 = vmatpush.bf16.msra.mxu0 %v4277
    %5065 = vmatpush.bf16.msra.mxu0 %v4276
    %5066 = vmatpush.bf16.msra.mxu0 %v4275
    %5067 = vmatpush.bf16.msra.mxu0 %v4274
    %5068 = vmatpush.bf16.msra.mxu0 %v4273
    %5069 = vmatmul.bf16.gmra.mxu0 %v3381
    %v5070 = vpop.f32.mrf.mxu0
    %v5071 = vadd.f32 %v4902, %v5070
    %v5072 = vpop.f32.mrf.mxu0
    %v5073 = vadd.f32 %v4904, %v5072
    %5074 = vmatmul.bf16.gmra.mxu0 %v3390
    %v5075 = vpop.f32.mrf.mxu0
    %v5076 = vadd.f32 %v4907, %v5075
    %v5077 = vpop.f32.mrf.mxu0
    %v5078 = vadd.f32 %v4909, %v5077
    %5079 = vmatmul.bf16.gmra.mxu0 %v3399
    %v5080 = vpop.f32.mrf.mxu0
    %v5081 = vadd.f32 %v4912, %v5080
    %v5082 = vpop.f32.mrf.mxu0
    %v5083 = vadd.f32 %v4914, %v5082
    %5084 = vmatmul.bf16.gmra.mxu0 %v3408
    %v5085 = vpop.f32.mrf.mxu0
    %v5086 = vadd.f32 %v4917, %v5085
    %v5087 = vpop.f32.mrf.mxu0
    %v5088 = vadd.f32 %v4919, %v5087
    %5089 = vmatmul.bf16.gmra.mxu0 %v3417
    %v5090 = vpop.f32.mrf.mxu0
    %v5091 = vadd.f32 %v4922, %v5090
    %v5092 = vpop.f32.mrf.mxu0
    %v5093 = vadd.f32 %v4924, %v5092
    %5094 = vmatmul.bf16.gmra.mxu0 %v3426
    %v5095 = vpop.f32.mrf.mxu0
    %v5096 = vadd.f32 %v4927, %v5095
    %v5097 = vpop.f32.mrf.mxu0
    %v5098 = vadd.f32 %v4929, %v5097
    %5099 = vmatmul.bf16.gmra.mxu0 %v3435
    %v5100 = vpop.f32.mrf.mxu0
    %v5101 = vadd.f32 %v4932, %v5100
    %v5102 = vpop.f32.mrf.mxu0
    %v5103 = vadd.f32 %v4934, %v5102
    %5104 = vmatmul.bf16.gmra.mxu0 %v3444
    %v5105 = vpop.f32.mrf.mxu0
    %v5106 = vadd.f32 %v4937, %v5105
    %v5107 = vpop.f32.mrf.mxu0
    %v5108 = vadd.f32 %v4939, %v5107
    %5109 = vmatmul.bf16.gmra.mxu0 %v3453
    %v5110 = vpop.f32.mrf.mxu0
    %v5111 = vadd.f32 %v4942, %v5110
    %v5112 = vpop.f32.mrf.mxu0
    %v5113 = vadd.f32 %v4944, %v5112
    %5114 = vmatmul.bf16.gmra.mxu0 %v3462
    %v5115 = vpop.f32.mrf.mxu0
    %v5116 = vadd.f32 %v4947, %v5115
    %v5117 = vpop.f32.mrf.mxu0
    %v5118 = vadd.f32 %v4949, %v5117
    %5119 = vmatmul.bf16.gmra.mxu0 %v3471
    %v5120 = vpop.f32.mrf.mxu0
    %v5121 = vadd.f32 %v4952, %v5120
    %v5122 = vpop.f32.mrf.mxu0
    %v5123 = vadd.f32 %v4954, %v5122
    %5124 = vmatmul.bf16.gmra.mxu0 %v3480
    %v5125 = vpop.f32.mrf.mxu0
    %v5126 = vadd.f32 %v4957, %v5125
    %v5127 = vpop.f32.mrf.mxu0
    %v5128 = vadd.f32 %v4959, %v5127
    %5129 = vmatmul.bf16.gmra.mxu0 %v3489
    %v5130 = vpop.f32.mrf.mxu0
    %v5131 = vadd.f32 %v4962, %v5130
    %v5132 = vpop.f32.mrf.mxu0
    %v5133 = vadd.f32 %v4964, %v5132
    %5134 = vmatmul.bf16.gmra.mxu0 %v3498
    %v5135 = vpop.f32.mrf.mxu0
    %v5136 = vadd.f32 %v4967, %v5135
    %v5137 = vpop.f32.mrf.mxu0
    %v5138 = vadd.f32 %v4969, %v5137
    %5139 = vmatmul.bf16.gmra.mxu0 %v3507
    %v5140 = vpop.f32.mrf.mxu0
    %v5141 = vadd.f32 %v4972, %v5140
    %v5142 = vpop.f32.mrf.mxu0
    %v5143 = vadd.f32 %v4974, %v5142
    %5144 = vmatmul.bf16.gmra.mxu0 %v3516
    %v5145 = vpop.f32.mrf.mxu0
    %v5146 = vadd.f32 %v4977, %v5145
    %v5147 = vpop.f32.mrf.mxu0
    %v5148 = vadd.f32 %v4979, %v5147
    %5149 = vmatmul.bf16.gmra.mxu0 %v3525
    %v5150 = vpop.f32.mrf.mxu0
    %v5151 = vadd.f32 %v4982, %v5150
    %v5152 = vpop.f32.mrf.mxu0
    %v5153 = vadd.f32 %v4984, %v5152
    %5154 = vmatmul.bf16.gmra.mxu0 %v3534
    %v5155 = vpop.f32.mrf.mxu0
    %v5156 = vadd.f32 %v4987, %v5155
    %v5157 = vpop.f32.mrf.mxu0
    %v5158 = vadd.f32 %v4989, %v5157
    %5159 = vmatmul.bf16.gmra.mxu0 %v3543
    %v5160 = vpop.f32.mrf.mxu0
    %v5161 = vadd.f32 %v4992, %v5160
    %v5162 = vpop.f32.mrf.mxu0
    %v5163 = vadd.f32 %v4994, %v5162
    %5164 = vmatmul.bf16.gmra.mxu0 %v3552
    %v5165 = vpop.f32.mrf.mxu0
    %v5166 = vadd.f32 %v4997, %v5165
    %v5167 = vpop.f32.mrf.mxu0
    %v5168 = vadd.f32 %v4999, %v5167
    %5169 = vmatmul.bf16.gmra.mxu0 %v3561
    %v5170 = vpop.f32.mrf.mxu0
    %v5171 = vadd.f32 %v5002, %v5170
    %v5172 = vpop.f32.mrf.mxu0
    %v5173 = vadd.f32 %v5004, %v5172
    %5174 = vmatmul.bf16.gmra.mxu0 %v3570
    %v5175 = vpop.f32.mrf.mxu0
    %v5176 = vadd.f32 %v5007, %v5175
    %v5177 = vpop.f32.mrf.mxu0
    %v5178 = vadd.f32 %v5009, %v5177
    %5179 = vmatmul.bf16.gmra.mxu0 %v3579
    %v5180 = vpop.f32.mrf.mxu0
    %v5181 = vadd.f32 %v5012, %v5180
    %v5182 = vpop.f32.mrf.mxu0
    %v5183 = vadd.f32 %v5014, %v5182
    %5184 = vmatmul.bf16.gmra.mxu0 %v3588
    %v5185 = vpop.f32.mrf.mxu0
    %v5186 = vadd.f32 %v5017, %v5185
    %v5187 = vpop.f32.mrf.mxu0
    %v5188 = vadd.f32 %v5019, %v5187
    %5189 = vmatmul.bf16.gmra.mxu0 %v3597
    %v5190 = vpop.f32.mrf.mxu0
    %v5191 = vadd.f32 %v5022, %v5190
    %v5192 = vpop.f32.mrf.mxu0
    %v5193 = vadd.f32 %v5024, %v5192
    %5194 = vmatmul.bf16.gmra.mxu0 %v3606
    %v5195 = vpop.f32.mrf.mxu0
    %v5196 = vadd.f32 %v5027, %v5195
    %v5197 = vpop.f32.mrf.mxu0
    %v5198 = vadd.f32 %v5029, %v5197
    %5199 = vmatmul.bf16.gmra.mxu0 %v3615
    %v5200 = vpop.f32.mrf.mxu0
    %v5201 = vadd.f32 %v5032, %v5200
    %v5202 = vpop.f32.mrf.mxu0
    %v5203 = vadd.f32 %v5034, %v5202
    %5204 = vmatmul.bf16.gmra.mxu0 %v3624
    %v5205 = vpop.f32.mrf.mxu0
    %v5206 = vadd.f32 %v5037, %v5205
    %v5207 = vpop.f32.mrf.mxu0
    %v5208 = vadd.f32 %v5039, %v5207
    %5209 = vmatmul.bf16.gmra.mxu0 %v3633
    %v5210 = vpop.f32.mrf.mxu0
    %v5211 = vadd.f32 %v5042, %v5210
    %v5212 = vpop.f32.mrf.mxu0
    %v5213 = vadd.f32 %v5044, %v5212
    %5214 = vmatmul.bf16.gmra.mxu0 %v3642
    %v5215 = vpop.f32.mrf.mxu0
    %v5216 = vadd.f32 %v5047, %v5215
    %v5217 = vpop.f32.mrf.mxu0
    %v5218 = vadd.f32 %v5049, %v5217
    %5219 = vmatmul.bf16.gmra.mxu0 %v3651
    %v5220 = vpop.f32.mrf.mxu0
    %v5221 = vadd.f32 %v5052, %v5220
    %v5222 = vpop.f32.mrf.mxu0
    %v5223 = vadd.f32 %v5054, %v5222
    %5224 = vmatmul.bf16.gmra.mxu0 %v3660
    %v5225 = vpop.f32.mrf.mxu0
    %v5226 = vadd.f32 %v5057, %v5225
    %v5227 = vpop.f32.mrf.mxu0
    %v5228 = vadd.f32 %v5059, %v5227
    %5229 = vdwg.mxu0
    %5230 = vmatpush.bf16.msra.mxu0 %v4288
    %5231 = vmatpush.bf16.msra.mxu0 %v4287
    %5232 = vmatpush.bf16.msra.mxu0 %v4286
    %5233 = vmatpush.bf16.msra.mxu0 %v4285
    %5234 = vmatpush.bf16.msra.mxu0 %v4284
    %5235 = vmatpush.bf16.msra.mxu0 %v4283
    %5236 = vmatpush.bf16.msra.mxu0 %v4282
    %5237 = vmatpush.bf16.msra.mxu0 %v4281
    %5238 = vmatmul.bf16.gmra.mxu0 %v3382
    %v5239 = vpop.f32.mrf.mxu0
    %v5240 = vadd.f32 %v5071, %v5239
    %v5241 = vpop.f32.mrf.mxu0
    %v5242 = vadd.f32 %v5073, %v5241
    %5243 = vmatmul.bf16.gmra.mxu0 %v3391
    %v5244 = vpop.f32.mrf.mxu0
    %v5245 = vadd.f32 %v5076, %v5244
    %v5246 = vpop.f32.mrf.mxu0
    %v5247 = vadd.f32 %v5078, %v5246
    %5248 = vmatmul.bf16.gmra.mxu0 %v3400
    %v5249 = vpop.f32.mrf.mxu0
    %v5250 = vadd.f32 %v5081, %v5249
    %v5251 = vpop.f32.mrf.mxu0
    %v5252 = vadd.f32 %v5083, %v5251
    %5253 = vmatmul.bf16.gmra.mxu0 %v3409
    %v5254 = vpop.f32.mrf.mxu0
    %v5255 = vadd.f32 %v5086, %v5254
    %v5256 = vpop.f32.mrf.mxu0
    %v5257 = vadd.f32 %v5088, %v5256
    %5258 = vmatmul.bf16.gmra.mxu0 %v3418
    %v5259 = vpop.f32.mrf.mxu0
    %v5260 = vadd.f32 %v5091, %v5259
    %v5261 = vpop.f32.mrf.mxu0
    %v5262 = vadd.f32 %v5093, %v5261
    %5263 = vmatmul.bf16.gmra.mxu0 %v3427
    %v5264 = vpop.f32.mrf.mxu0
    %v5265 = vadd.f32 %v5096, %v5264
    %v5266 = vpop.f32.mrf.mxu0
    %v5267 = vadd.f32 %v5098, %v5266
    %5268 = vmatmul.bf16.gmra.mxu0 %v3436
    %v5269 = vpop.f32.mrf.mxu0
    %v5270 = vadd.f32 %v5101, %v5269
    %v5271 = vpop.f32.mrf.mxu0
    %v5272 = vadd.f32 %v5103, %v5271
    %5273 = vmatmul.bf16.gmra.mxu0 %v3445
    %v5274 = vpop.f32.mrf.mxu0
    %v5275 = vadd.f32 %v5106, %v5274
    %v5276 = vpop.f32.mrf.mxu0
    %v5277 = vadd.f32 %v5108, %v5276
    %5278 = vmatmul.bf16.gmra.mxu0 %v3454
    %v5279 = vpop.f32.mrf.mxu0
    %v5280 = vadd.f32 %v5111, %v5279
    %v5281 = vpop.f32.mrf.mxu0
    %v5282 = vadd.f32 %v5113, %v5281
    %5283 = vmatmul.bf16.gmra.mxu0 %v3463
    %v5284 = vpop.f32.mrf.mxu0
    %v5285 = vadd.f32 %v5116, %v5284
    %v5286 = vpop.f32.mrf.mxu0
    %v5287 = vadd.f32 %v5118, %v5286
    %5288 = vmatmul.bf16.gmra.mxu0 %v3472
    %v5289 = vpop.f32.mrf.mxu0
    %v5290 = vadd.f32 %v5121, %v5289
    %v5291 = vpop.f32.mrf.mxu0
    %v5292 = vadd.f32 %v5123, %v5291
    %5293 = vmatmul.bf16.gmra.mxu0 %v3481
    %v5294 = vpop.f32.mrf.mxu0
    %v5295 = vadd.f32 %v5126, %v5294
    %v5296 = vpop.f32.mrf.mxu0
    %v5297 = vadd.f32 %v5128, %v5296
    %5298 = vmatmul.bf16.gmra.mxu0 %v3490
    %v5299 = vpop.f32.mrf.mxu0
    %v5300 = vadd.f32 %v5131, %v5299
    %v5301 = vpop.f32.mrf.mxu0
    %v5302 = vadd.f32 %v5133, %v5301
    %5303 = vmatmul.bf16.gmra.mxu0 %v3499
    %v5304 = vpop.f32.mrf.mxu0
    %v5305 = vadd.f32 %v5136, %v5304
    %v5306 = vpop.f32.mrf.mxu0
    %v5307 = vadd.f32 %v5138, %v5306
    %5308 = vmatmul.bf16.gmra.mxu0 %v3508
    %v5309 = vpop.f32.mrf.mxu0
    %v5310 = vadd.f32 %v5141, %v5309
    %v5311 = vpop.f32.mrf.mxu0
    %v5312 = vadd.f32 %v5143, %v5311
    %5313 = vmatmul.bf16.gmra.mxu0 %v3517
    %v5314 = vpop.f32.mrf.mxu0
    %v5315 = vadd.f32 %v5146, %v5314
    %v5316 = vpop.f32.mrf.mxu0
    %v5317 = vadd.f32 %v5148, %v5316
    %5318 = vmatmul.bf16.gmra.mxu0 %v3526
    %v5319 = vpop.f32.mrf.mxu0
    %v5320 = vadd.f32 %v5151, %v5319
    %v5321 = vpop.f32.mrf.mxu0
    %v5322 = vadd.f32 %v5153, %v5321
    %5323 = vmatmul.bf16.gmra.mxu0 %v3535
    %v5324 = vpop.f32.mrf.mxu0
    %v5325 = vadd.f32 %v5156, %v5324
    %v5326 = vpop.f32.mrf.mxu0
    %v5327 = vadd.f32 %v5158, %v5326
    %5328 = vmatmul.bf16.gmra.mxu0 %v3544
    %v5329 = vpop.f32.mrf.mxu0
    %v5330 = vadd.f32 %v5161, %v5329
    %v5331 = vpop.f32.mrf.mxu0
    %v5332 = vadd.f32 %v5163, %v5331
    %5333 = vmatmul.bf16.gmra.mxu0 %v3553
    %v5334 = vpop.f32.mrf.mxu0
    %v5335 = vadd.f32 %v5166, %v5334
    %v5336 = vpop.f32.mrf.mxu0
    %v5337 = vadd.f32 %v5168, %v5336
    %5338 = vmatmul.bf16.gmra.mxu0 %v3562
    %v5339 = vpop.f32.mrf.mxu0
    %v5340 = vadd.f32 %v5171, %v5339
    %v5341 = vpop.f32.mrf.mxu0
    %v5342 = vadd.f32 %v5173, %v5341
    %5343 = vmatmul.bf16.gmra.mxu0 %v3571
    %v5344 = vpop.f32.mrf.mxu0
    %v5345 = vadd.f32 %v5176, %v5344
    %v5346 = vpop.f32.mrf.mxu0
    %v5347 = vadd.f32 %v5178, %v5346
    %5348 = vmatmul.bf16.gmra.mxu0 %v3580
    %v5349 = vpop.f32.mrf.mxu0
    %v5350 = vadd.f32 %v5181, %v5349
    %v5351 = vpop.f32.mrf.mxu0
    %v5352 = vadd.f32 %v5183, %v5351
    %5353 = vmatmul.bf16.gmra.mxu0 %v3589
    %v5354 = vpop.f32.mrf.mxu0
    %v5355 = vadd.f32 %v5186, %v5354
    %v5356 = vpop.f32.mrf.mxu0
    %v5357 = vadd.f32 %v5188, %v5356
    %5358 = vmatmul.bf16.gmra.mxu0 %v3598
    %v5359 = vpop.f32.mrf.mxu0
    %v5360 = vadd.f32 %v5191, %v5359
    %v5361 = vpop.f32.mrf.mxu0
    %v5362 = vadd.f32 %v5193, %v5361
    %5363 = vmatmul.bf16.gmra.mxu0 %v3607
    %v5364 = vpop.f32.mrf.mxu0
    %v5365 = vadd.f32 %v5196, %v5364
    %v5366 = vpop.f32.mrf.mxu0
    %v5367 = vadd.f32 %v5198, %v5366
    %5368 = vmatmul.bf16.gmra.mxu0 %v3616
    %v5369 = vpop.f32.mrf.mxu0
    %v5370 = vadd.f32 %v5201, %v5369
    %v5371 = vpop.f32.mrf.mxu0
    %v5372 = vadd.f32 %v5203, %v5371
    %5373 = vmatmul.bf16.gmra.mxu0 %v3625
    %v5374 = vpop.f32.mrf.mxu0
    %v5375 = vadd.f32 %v5206, %v5374
    %v5376 = vpop.f32.mrf.mxu0
    %v5377 = vadd.f32 %v5208, %v5376
    %5378 = vmatmul.bf16.gmra.mxu0 %v3634
    %v5379 = vpop.f32.mrf.mxu0
    %v5380 = vadd.f32 %v5211, %v5379
    %v5381 = vpop.f32.mrf.mxu0
    %v5382 = vadd.f32 %v5213, %v5381
    %5383 = vmatmul.bf16.gmra.mxu0 %v3643
    %v5384 = vpop.f32.mrf.mxu0
    %v5385 = vadd.f32 %v5216, %v5384
    %v5386 = vpop.f32.mrf.mxu0
    %v5387 = vadd.f32 %v5218, %v5386
    %5388 = vmatmul.bf16.gmra.mxu0 %v3652
    %v5389 = vpop.f32.mrf.mxu0
    %v5390 = vadd.f32 %v5221, %v5389
    %v5391 = vpop.f32.mrf.mxu0
    %v5392 = vadd.f32 %v5223, %v5391
    %5393 = vmatmul.bf16.gmra.mxu0 %v3661
    %v5394 = vpop.f32.mrf.mxu0
    %v5395 = vadd.f32 %v5226, %v5394
    %v5396 = vpop.f32.mrf.mxu0
    %v5397 = vadd.f32 %v5228, %v5396
    %5398 = vdwg.mxu0
    %5399 = vmatpush.bf16.msra.mxu0 %v4296
    %5400 = vmatpush.bf16.msra.mxu0 %v4295
    %5401 = vmatpush.bf16.msra.mxu0 %v4294
    %5402 = vmatpush.bf16.msra.mxu0 %v4293
    %5403 = vmatpush.bf16.msra.mxu0 %v4292
    %5404 = vmatpush.bf16.msra.mxu0 %v4291
    %5405 = vmatpush.bf16.msra.mxu0 %v4290
    %5406 = vmatpush.bf16.msra.mxu0 %v4289
    %5407 = vmatmul.bf16.gmra.mxu0 %v3383
    %v5408 = vpop.f32.mrf.mxu0
    %v5409 = vadd.f32 %v5240, %v5408
    %v5410 = vpop.f32.mrf.mxu0
    %v5411 = vadd.f32 %v5242, %v5410
    %5412 = vmatmul.bf16.gmra.mxu0 %v3392
    %v5413 = vpop.f32.mrf.mxu0
    %v5414 = vadd.f32 %v5245, %v5413
    %v5415 = vpop.f32.mrf.mxu0
    %v5416 = vadd.f32 %v5247, %v5415
    %5417 = vmatmul.bf16.gmra.mxu0 %v3401
    %v5418 = vpop.f32.mrf.mxu0
    %v5419 = vadd.f32 %v5250, %v5418
    %v5420 = vpop.f32.mrf.mxu0
    %v5421 = vadd.f32 %v5252, %v5420
    %5422 = vmatmul.bf16.gmra.mxu0 %v3410
    %v5423 = vpop.f32.mrf.mxu0
    %v5424 = vadd.f32 %v5255, %v5423
    %v5425 = vpop.f32.mrf.mxu0
    %v5426 = vadd.f32 %v5257, %v5425
    %5427 = vmatmul.bf16.gmra.mxu0 %v3419
    %v5428 = vpop.f32.mrf.mxu0
    %v5429 = vadd.f32 %v5260, %v5428
    %v5430 = vpop.f32.mrf.mxu0
    %v5431 = vadd.f32 %v5262, %v5430
    %5432 = vmatmul.bf16.gmra.mxu0 %v3428
    %v5433 = vpop.f32.mrf.mxu0
    %v5434 = vadd.f32 %v5265, %v5433
    %v5435 = vpop.f32.mrf.mxu0
    %v5436 = vadd.f32 %v5267, %v5435
    %5437 = vmatmul.bf16.gmra.mxu0 %v3437
    %v5438 = vpop.f32.mrf.mxu0
    %v5439 = vadd.f32 %v5270, %v5438
    %v5440 = vpop.f32.mrf.mxu0
    %v5441 = vadd.f32 %v5272, %v5440
    %5442 = vmatmul.bf16.gmra.mxu0 %v3446
    %v5443 = vpop.f32.mrf.mxu0
    %v5444 = vadd.f32 %v5275, %v5443
    %v5445 = vpop.f32.mrf.mxu0
    %v5446 = vadd.f32 %v5277, %v5445
    %5447 = vmatmul.bf16.gmra.mxu0 %v3455
    %v5448 = vpop.f32.mrf.mxu0
    %v5449 = vadd.f32 %v5280, %v5448
    %v5450 = vpop.f32.mrf.mxu0
    %v5451 = vadd.f32 %v5282, %v5450
    %5452 = vmatmul.bf16.gmra.mxu0 %v3464
    %v5453 = vpop.f32.mrf.mxu0
    %v5454 = vadd.f32 %v5285, %v5453
    %v5455 = vpop.f32.mrf.mxu0
    %v5456 = vadd.f32 %v5287, %v5455
    %5457 = vmatmul.bf16.gmra.mxu0 %v3473
    %v5458 = vpop.f32.mrf.mxu0
    %v5459 = vadd.f32 %v5290, %v5458
    %v5460 = vpop.f32.mrf.mxu0
    %v5461 = vadd.f32 %v5292, %v5460
    %5462 = vmatmul.bf16.gmra.mxu0 %v3482
    %v5463 = vpop.f32.mrf.mxu0
    %v5464 = vadd.f32 %v5295, %v5463
    %v5465 = vpop.f32.mrf.mxu0
    %v5466 = vadd.f32 %v5297, %v5465
    %5467 = vmatmul.bf16.gmra.mxu0 %v3491
    %v5468 = vpop.f32.mrf.mxu0
    %v5469 = vadd.f32 %v5300, %v5468
    %v5470 = vpop.f32.mrf.mxu0
    %v5471 = vadd.f32 %v5302, %v5470
    %5472 = vmatmul.bf16.gmra.mxu0 %v3500
    %v5473 = vpop.f32.mrf.mxu0
    %v5474 = vadd.f32 %v5305, %v5473
    %v5475 = vpop.f32.mrf.mxu0
    %v5476 = vadd.f32 %v5307, %v5475
    %5477 = vmatmul.bf16.gmra.mxu0 %v3509
    %v5478 = vpop.f32.mrf.mxu0
    %v5479 = vadd.f32 %v5310, %v5478
    %v5480 = vpop.f32.mrf.mxu0
    %v5481 = vadd.f32 %v5312, %v5480
    %5482 = vmatmul.bf16.gmra.mxu0 %v3518
    %v5483 = vpop.f32.mrf.mxu0
    %v5484 = vadd.f32 %v5315, %v5483
    %v5485 = vpop.f32.mrf.mxu0
    %v5486 = vadd.f32 %v5317, %v5485
    %5487 = vmatmul.bf16.gmra.mxu0 %v3527
    %v5488 = vpop.f32.mrf.mxu0
    %v5489 = vadd.f32 %v5320, %v5488
    %v5490 = vpop.f32.mrf.mxu0
    %v5491 = vadd.f32 %v5322, %v5490
    %5492 = vmatmul.bf16.gmra.mxu0 %v3536
    %v5493 = vpop.f32.mrf.mxu0
    %v5494 = vadd.f32 %v5325, %v5493
    %v5495 = vpop.f32.mrf.mxu0
    %v5496 = vadd.f32 %v5327, %v5495
    %5497 = vmatmul.bf16.gmra.mxu0 %v3545
    %v5498 = vpop.f32.mrf.mxu0
    %v5499 = vadd.f32 %v5330, %v5498
    %v5500 = vpop.f32.mrf.mxu0
    %v5501 = vadd.f32 %v5332, %v5500
    %5502 = vmatmul.bf16.gmra.mxu0 %v3554
    %v5503 = vpop.f32.mrf.mxu0
    %v5504 = vadd.f32 %v5335, %v5503
    %v5505 = vpop.f32.mrf.mxu0
    %v5506 = vadd.f32 %v5337, %v5505
    %5507 = vmatmul.bf16.gmra.mxu0 %v3563
    %v5508 = vpop.f32.mrf.mxu0
    %v5509 = vadd.f32 %v5340, %v5508
    %v5510 = vpop.f32.mrf.mxu0
    %v5511 = vadd.f32 %v5342, %v5510
    %5512 = vmatmul.bf16.gmra.mxu0 %v3572
    %v5513 = vpop.f32.mrf.mxu0
    %v5514 = vadd.f32 %v5345, %v5513
    %v5515 = vpop.f32.mrf.mxu0
    %v5516 = vadd.f32 %v5347, %v5515
    %5517 = vmatmul.bf16.gmra.mxu0 %v3581
    %v5518 = vpop.f32.mrf.mxu0
    %v5519 = vadd.f32 %v5350, %v5518
    %v5520 = vpop.f32.mrf.mxu0
    %v5521 = vadd.f32 %v5352, %v5520
    %5522 = vmatmul.bf16.gmra.mxu0 %v3590
    %v5523 = vpop.f32.mrf.mxu0
    %v5524 = vadd.f32 %v5355, %v5523
    %v5525 = vpop.f32.mrf.mxu0
    %v5526 = vadd.f32 %v5357, %v5525
    %5527 = vmatmul.bf16.gmra.mxu0 %v3599
    %v5528 = vpop.f32.mrf.mxu0
    %v5529 = vadd.f32 %v5360, %v5528
    %v5530 = vpop.f32.mrf.mxu0
    %v5531 = vadd.f32 %v5362, %v5530
    %5532 = vmatmul.bf16.gmra.mxu0 %v3608
    %v5533 = vpop.f32.mrf.mxu0
    %v5534 = vadd.f32 %v5365, %v5533
    %v5535 = vpop.f32.mrf.mxu0
    %v5536 = vadd.f32 %v5367, %v5535
    %5537 = vmatmul.bf16.gmra.mxu0 %v3617
    %v5538 = vpop.f32.mrf.mxu0
    %v5539 = vadd.f32 %v5370, %v5538
    %v5540 = vpop.f32.mrf.mxu0
    %v5541 = vadd.f32 %v5372, %v5540
    %5542 = vmatmul.bf16.gmra.mxu0 %v3626
    %v5543 = vpop.f32.mrf.mxu0
    %v5544 = vadd.f32 %v5375, %v5543
    %v5545 = vpop.f32.mrf.mxu0
    %v5546 = vadd.f32 %v5377, %v5545
    %5547 = vmatmul.bf16.gmra.mxu0 %v3635
    %v5548 = vpop.f32.mrf.mxu0
    %v5549 = vadd.f32 %v5380, %v5548
    %v5550 = vpop.f32.mrf.mxu0
    %v5551 = vadd.f32 %v5382, %v5550
    %5552 = vmatmul.bf16.gmra.mxu0 %v3644
    %v5553 = vpop.f32.mrf.mxu0
    %v5554 = vadd.f32 %v5385, %v5553
    %v5555 = vpop.f32.mrf.mxu0
    %v5556 = vadd.f32 %v5387, %v5555
    %5557 = vmatmul.bf16.gmra.mxu0 %v3653
    %v5558 = vpop.f32.mrf.mxu0
    %v5559 = vadd.f32 %v5390, %v5558
    %v5560 = vpop.f32.mrf.mxu0
    %v5561 = vadd.f32 %v5392, %v5560
    %5562 = vmatmul.bf16.gmra.mxu0 %v3662
    %v5563 = vpop.f32.mrf.mxu0
    %v5564 = vadd.f32 %v5395, %v5563
    %v5565 = vpop.f32.mrf.mxu0
    %v5566 = vadd.f32 %v5397, %v5565
    %5567 = vdwg.mxu0
    %5568 = vmatpush.bf16.msra.mxu0 %v4304
    %5569 = vmatpush.bf16.msra.mxu0 %v4303
    %5570 = vmatpush.bf16.msra.mxu0 %v4302
    %5571 = vmatpush.bf16.msra.mxu0 %v4301
    %5572 = vmatpush.bf16.msra.mxu0 %v4300
    %5573 = vmatpush.bf16.msra.mxu0 %v4299
    %5574 = vmatpush.bf16.msra.mxu0 %v4298
    %5575 = vmatpush.bf16.msra.mxu0 %v4297
    %5576 = vmatmul.bf16.gmra.mxu0 %v3384
    %v5577 = vpop.f32.mrf.mxu0
    %v5578 = vadd.f32 %v5409, %v5577
    %v5579 = vpop.f32.mrf.mxu0
    %v5580 = vadd.f32 %v5411, %v5579
    %5581 = vmatmul.bf16.gmra.mxu0 %v3393
    %v5582 = vpop.f32.mrf.mxu0
    %v5583 = vadd.f32 %v5414, %v5582
    %v5584 = vpop.f32.mrf.mxu0
    %v5585 = vadd.f32 %v5416, %v5584
    %5586 = vmatmul.bf16.gmra.mxu0 %v3402
    %v5587 = vpop.f32.mrf.mxu0
    %v5588 = vadd.f32 %v5419, %v5587
    %v5589 = vpop.f32.mrf.mxu0
    %v5590 = vadd.f32 %v5421, %v5589
    %5591 = vmatmul.bf16.gmra.mxu0 %v3411
    %v5592 = vpop.f32.mrf.mxu0
    %v5593 = vadd.f32 %v5424, %v5592
    %v5594 = vpop.f32.mrf.mxu0
    %v5595 = vadd.f32 %v5426, %v5594
    %5596 = vmatmul.bf16.gmra.mxu0 %v3420
    %v5597 = vpop.f32.mrf.mxu0
    %v5598 = vadd.f32 %v5429, %v5597
    %v5599 = vpop.f32.mrf.mxu0
    %v5600 = vadd.f32 %v5431, %v5599
    %5601 = vmatmul.bf16.gmra.mxu0 %v3429
    %v5602 = vpop.f32.mrf.mxu0
    %v5603 = vadd.f32 %v5434, %v5602
    %v5604 = vpop.f32.mrf.mxu0
    %v5605 = vadd.f32 %v5436, %v5604
    %5606 = vmatmul.bf16.gmra.mxu0 %v3438
    %v5607 = vpop.f32.mrf.mxu0
    %v5608 = vadd.f32 %v5439, %v5607
    %v5609 = vpop.f32.mrf.mxu0
    %v5610 = vadd.f32 %v5441, %v5609
    %5611 = vmatmul.bf16.gmra.mxu0 %v3447
    %v5612 = vpop.f32.mrf.mxu0
    %v5613 = vadd.f32 %v5444, %v5612
    %v5614 = vpop.f32.mrf.mxu0
    %v5615 = vadd.f32 %v5446, %v5614
    %5616 = vmatmul.bf16.gmra.mxu0 %v3456
    %v5617 = vpop.f32.mrf.mxu0
    %v5618 = vadd.f32 %v5449, %v5617
    %v5619 = vpop.f32.mrf.mxu0
    %v5620 = vadd.f32 %v5451, %v5619
    %5621 = vmatmul.bf16.gmra.mxu0 %v3465
    %v5622 = vpop.f32.mrf.mxu0
    %v5623 = vadd.f32 %v5454, %v5622
    %v5624 = vpop.f32.mrf.mxu0
    %v5625 = vadd.f32 %v5456, %v5624
    %5626 = vmatmul.bf16.gmra.mxu0 %v3474
    %v5627 = vpop.f32.mrf.mxu0
    %v5628 = vadd.f32 %v5459, %v5627
    %v5629 = vpop.f32.mrf.mxu0
    %v5630 = vadd.f32 %v5461, %v5629
    %5631 = vmatmul.bf16.gmra.mxu0 %v3483
    %v5632 = vpop.f32.mrf.mxu0
    %v5633 = vadd.f32 %v5464, %v5632
    %v5634 = vpop.f32.mrf.mxu0
    %v5635 = vadd.f32 %v5466, %v5634
    %5636 = vmatmul.bf16.gmra.mxu0 %v3492
    %v5637 = vpop.f32.mrf.mxu0
    %v5638 = vadd.f32 %v5469, %v5637
    %v5639 = vpop.f32.mrf.mxu0
    %v5640 = vadd.f32 %v5471, %v5639
    %5641 = vmatmul.bf16.gmra.mxu0 %v3501
    %v5642 = vpop.f32.mrf.mxu0
    %v5643 = vadd.f32 %v5474, %v5642
    %v5644 = vpop.f32.mrf.mxu0
    %v5645 = vadd.f32 %v5476, %v5644
    %5646 = vmatmul.bf16.gmra.mxu0 %v3510
    %v5647 = vpop.f32.mrf.mxu0
    %v5648 = vadd.f32 %v5479, %v5647
    %v5649 = vpop.f32.mrf.mxu0
    %v5650 = vadd.f32 %v5481, %v5649
    %5651 = vmatmul.bf16.gmra.mxu0 %v3519
    %v5652 = vpop.f32.mrf.mxu0
    %v5653 = vadd.f32 %v5484, %v5652
    %v5654 = vpop.f32.mrf.mxu0
    %v5655 = vadd.f32 %v5486, %v5654
    %5656 = vmatmul.bf16.gmra.mxu0 %v3528
    %v5657 = vpop.f32.mrf.mxu0
    %v5658 = vadd.f32 %v5489, %v5657
    %v5659 = vpop.f32.mrf.mxu0
    %v5660 = vadd.f32 %v5491, %v5659
    %5661 = vmatmul.bf16.gmra.mxu0 %v3537
    %v5662 = vpop.f32.mrf.mxu0
    %v5663 = vadd.f32 %v5494, %v5662
    %v5664 = vpop.f32.mrf.mxu0
    %v5665 = vadd.f32 %v5496, %v5664
    %5666 = vmatmul.bf16.gmra.mxu0 %v3546
    %v5667 = vpop.f32.mrf.mxu0
    %v5668 = vadd.f32 %v5499, %v5667
    %v5669 = vpop.f32.mrf.mxu0
    %v5670 = vadd.f32 %v5501, %v5669
    %5671 = vmatmul.bf16.gmra.mxu0 %v3555
    %v5672 = vpop.f32.mrf.mxu0
    %v5673 = vadd.f32 %v5504, %v5672
    %v5674 = vpop.f32.mrf.mxu0
    %v5675 = vadd.f32 %v5506, %v5674
    %5676 = vmatmul.bf16.gmra.mxu0 %v3564
    %v5677 = vpop.f32.mrf.mxu0
    %v5678 = vadd.f32 %v5509, %v5677
    %v5679 = vpop.f32.mrf.mxu0
    %v5680 = vadd.f32 %v5511, %v5679
    %5681 = vmatmul.bf16.gmra.mxu0 %v3573
    %v5682 = vpop.f32.mrf.mxu0
    %v5683 = vadd.f32 %v5514, %v5682
    %v5684 = vpop.f32.mrf.mxu0
    %v5685 = vadd.f32 %v5516, %v5684
    %5686 = vmatmul.bf16.gmra.mxu0 %v3582
    %v5687 = vpop.f32.mrf.mxu0
    %v5688 = vadd.f32 %v5519, %v5687
    %v5689 = vpop.f32.mrf.mxu0
    %v5690 = vadd.f32 %v5521, %v5689
    %5691 = vmatmul.bf16.gmra.mxu0 %v3591
    %v5692 = vpop.f32.mrf.mxu0
    %v5693 = vadd.f32 %v5524, %v5692
    %v5694 = vpop.f32.mrf.mxu0
    %v5695 = vadd.f32 %v5526, %v5694
    %5696 = vmatmul.bf16.gmra.mxu0 %v3600
    %v5697 = vpop.f32.mrf.mxu0
    %v5698 = vadd.f32 %v5529, %v5697
    %v5699 = vpop.f32.mrf.mxu0
    %v5700 = vadd.f32 %v5531, %v5699
    %5701 = vmatmul.bf16.gmra.mxu0 %v3609
    %v5702 = vpop.f32.mrf.mxu0
    %v5703 = vadd.f32 %v5534, %v5702
    %v5704 = vpop.f32.mrf.mxu0
    %v5705 = vadd.f32 %v5536, %v5704
    %5706 = vmatmul.bf16.gmra.mxu0 %v3618
    %v5707 = vpop.f32.mrf.mxu0
    %v5708 = vadd.f32 %v5539, %v5707
    %v5709 = vpop.f32.mrf.mxu0
    %v5710 = vadd.f32 %v5541, %v5709
    %5711 = vmatmul.bf16.gmra.mxu0 %v3627
    %v5712 = vpop.f32.mrf.mxu0
    %v5713 = vadd.f32 %v5544, %v5712
    %v5714 = vpop.f32.mrf.mxu0
    %v5715 = vadd.f32 %v5546, %v5714
    %5716 = vmatmul.bf16.gmra.mxu0 %v3636
    %v5717 = vpop.f32.mrf.mxu0
    %v5718 = vadd.f32 %v5549, %v5717
    %v5719 = vpop.f32.mrf.mxu0
    %v5720 = vadd.f32 %v5551, %v5719
    %5721 = vmatmul.bf16.gmra.mxu0 %v3645
    %v5722 = vpop.f32.mrf.mxu0
    %v5723 = vadd.f32 %v5554, %v5722
    %v5724 = vpop.f32.mrf.mxu0
    %v5725 = vadd.f32 %v5556, %v5724
    %5726 = vmatmul.bf16.gmra.mxu0 %v3654
    %v5727 = vpop.f32.mrf.mxu0
    %v5728 = vadd.f32 %v5559, %v5727
    %v5729 = vpop.f32.mrf.mxu0
    %v5730 = vadd.f32 %v5561, %v5729
    %5731 = vmatmul.bf16.gmra.mxu0 %v3663
    %v5732 = vpop.f32.mrf.mxu0
    %v5733 = vadd.f32 %v5564, %v5732
    %v5734 = vpop.f32.mrf.mxu0
    %v5735 = vadd.f32 %v5566, %v5734
    %5736 = vdwg.mxu0
    %5737 = vmatpush.bf16.msra.mxu0 %v4312
    %5738 = vmatpush.bf16.msra.mxu0 %v4311
    %5739 = vmatpush.bf16.msra.mxu0 %v4310
    %5740 = vmatpush.bf16.msra.mxu0 %v4309
    %5741 = vmatpush.bf16.msra.mxu0 %v4308
    %5742 = vmatpush.bf16.msra.mxu0 %v4307
    %5743 = vmatpush.bf16.msra.mxu0 %v4306
    %5744 = vmatpush.bf16.msra.mxu0 %v4305
    %5745 = vmatmul.bf16.gmra.mxu0 %v3385
    %v5746 = vpop.f32.mrf.mxu0
    %v5747 = vadd.f32 %v5578, %v5746
    %v5748 = vpop.f32.mrf.mxu0
    %v5749 = vadd.f32 %v5580, %v5748
    %5750 = vmatmul.bf16.gmra.mxu0 %v3394
    %v5751 = vpop.f32.mrf.mxu0
    %v5752 = vadd.f32 %v5583, %v5751
    %v5753 = vpop.f32.mrf.mxu0
    %v5754 = vadd.f32 %v5585, %v5753
    %5755 = vmatmul.bf16.gmra.mxu0 %v3403
    %v5756 = vpop.f32.mrf.mxu0
    %v5757 = vadd.f32 %v5588, %v5756
    %v5758 = vpop.f32.mrf.mxu0
    %v5759 = vadd.f32 %v5590, %v5758
    %5760 = vmatmul.bf16.gmra.mxu0 %v3412
    %v5761 = vpop.f32.mrf.mxu0
    %v5762 = vadd.f32 %v5593, %v5761
    %v5763 = vpop.f32.mrf.mxu0
    %v5764 = vadd.f32 %v5595, %v5763
    %5765 = vmatmul.bf16.gmra.mxu0 %v3421
    %v5766 = vpop.f32.mrf.mxu0
    %v5767 = vadd.f32 %v5598, %v5766
    %v5768 = vpop.f32.mrf.mxu0
    %v5769 = vadd.f32 %v5600, %v5768
    %5770 = vmatmul.bf16.gmra.mxu0 %v3430
    %v5771 = vpop.f32.mrf.mxu0
    %v5772 = vadd.f32 %v5603, %v5771
    %v5773 = vpop.f32.mrf.mxu0
    %v5774 = vadd.f32 %v5605, %v5773
    %5775 = vmatmul.bf16.gmra.mxu0 %v3439
    %v5776 = vpop.f32.mrf.mxu0
    %v5777 = vadd.f32 %v5608, %v5776
    %v5778 = vpop.f32.mrf.mxu0
    %v5779 = vadd.f32 %v5610, %v5778
    %5780 = vmatmul.bf16.gmra.mxu0 %v3448
    %v5781 = vpop.f32.mrf.mxu0
    %v5782 = vadd.f32 %v5613, %v5781
    %v5783 = vpop.f32.mrf.mxu0
    %v5784 = vadd.f32 %v5615, %v5783
    %5785 = vmatmul.bf16.gmra.mxu0 %v3457
    %v5786 = vpop.f32.mrf.mxu0
    %v5787 = vadd.f32 %v5618, %v5786
    %v5788 = vpop.f32.mrf.mxu0
    %v5789 = vadd.f32 %v5620, %v5788
    %5790 = vmatmul.bf16.gmra.mxu0 %v3466
    %v5791 = vpop.f32.mrf.mxu0
    %v5792 = vadd.f32 %v5623, %v5791
    %v5793 = vpop.f32.mrf.mxu0
    %v5794 = vadd.f32 %v5625, %v5793
    %5795 = vmatmul.bf16.gmra.mxu0 %v3475
    %v5796 = vpop.f32.mrf.mxu0
    %v5797 = vadd.f32 %v5628, %v5796
    %v5798 = vpop.f32.mrf.mxu0
    %v5799 = vadd.f32 %v5630, %v5798
    %5800 = vmatmul.bf16.gmra.mxu0 %v3484
    %v5801 = vpop.f32.mrf.mxu0
    %v5802 = vadd.f32 %v5633, %v5801
    %v5803 = vpop.f32.mrf.mxu0
    %v5804 = vadd.f32 %v5635, %v5803
    %5805 = vmatmul.bf16.gmra.mxu0 %v3493
    %v5806 = vpop.f32.mrf.mxu0
    %v5807 = vadd.f32 %v5638, %v5806
    %v5808 = vpop.f32.mrf.mxu0
    %v5809 = vadd.f32 %v5640, %v5808
    %5810 = vmatmul.bf16.gmra.mxu0 %v3502
    %v5811 = vpop.f32.mrf.mxu0
    %v5812 = vadd.f32 %v5643, %v5811
    %v5813 = vpop.f32.mrf.mxu0
    %v5814 = vadd.f32 %v5645, %v5813
    %5815 = vmatmul.bf16.gmra.mxu0 %v3511
    %v5816 = vpop.f32.mrf.mxu0
    %v5817 = vadd.f32 %v5648, %v5816
    %v5818 = vpop.f32.mrf.mxu0
    %v5819 = vadd.f32 %v5650, %v5818
    %5820 = vmatmul.bf16.gmra.mxu0 %v3520
    %v5821 = vpop.f32.mrf.mxu0
    %v5822 = vadd.f32 %v5653, %v5821
    %v5823 = vpop.f32.mrf.mxu0
    %v5824 = vadd.f32 %v5655, %v5823
    %5825 = vmatmul.bf16.gmra.mxu0 %v3529
    %v5826 = vpop.f32.mrf.mxu0
    %v5827 = vadd.f32 %v5658, %v5826
    %v5828 = vpop.f32.mrf.mxu0
    %v5829 = vadd.f32 %v5660, %v5828
    %5830 = vmatmul.bf16.gmra.mxu0 %v3538
    %v5831 = vpop.f32.mrf.mxu0
    %v5832 = vadd.f32 %v5663, %v5831
    %v5833 = vpop.f32.mrf.mxu0
    %v5834 = vadd.f32 %v5665, %v5833
    %5835 = vmatmul.bf16.gmra.mxu0 %v3547
    %v5836 = vpop.f32.mrf.mxu0
    %v5837 = vadd.f32 %v5668, %v5836
    %v5838 = vpop.f32.mrf.mxu0
    %v5839 = vadd.f32 %v5670, %v5838
    %5840 = vmatmul.bf16.gmra.mxu0 %v3556
    %v5841 = vpop.f32.mrf.mxu0
    %v5842 = vadd.f32 %v5673, %v5841
    %v5843 = vpop.f32.mrf.mxu0
    %v5844 = vadd.f32 %v5675, %v5843
    %5845 = vmatmul.bf16.gmra.mxu0 %v3565
    %v5846 = vpop.f32.mrf.mxu0
    %v5847 = vadd.f32 %v5678, %v5846
    %v5848 = vpop.f32.mrf.mxu0
    %v5849 = vadd.f32 %v5680, %v5848
    %5850 = vmatmul.bf16.gmra.mxu0 %v3574
    %v5851 = vpop.f32.mrf.mxu0
    %v5852 = vadd.f32 %v5683, %v5851
    %v5853 = vpop.f32.mrf.mxu0
    %v5854 = vadd.f32 %v5685, %v5853
    %5855 = vmatmul.bf16.gmra.mxu0 %v3583
    %v5856 = vpop.f32.mrf.mxu0
    %v5857 = vadd.f32 %v5688, %v5856
    %v5858 = vpop.f32.mrf.mxu0
    %v5859 = vadd.f32 %v5690, %v5858
    %5860 = vmatmul.bf16.gmra.mxu0 %v3592
    %v5861 = vpop.f32.mrf.mxu0
    %v5862 = vadd.f32 %v5693, %v5861
    %v5863 = vpop.f32.mrf.mxu0
    %v5864 = vadd.f32 %v5695, %v5863
    %5865 = vmatmul.bf16.gmra.mxu0 %v3601
    %v5866 = vpop.f32.mrf.mxu0
    %v5867 = vadd.f32 %v5698, %v5866
    %v5868 = vpop.f32.mrf.mxu0
    %v5869 = vadd.f32 %v5700, %v5868
    %5870 = vmatmul.bf16.gmra.mxu0 %v3610
    %v5871 = vpop.f32.mrf.mxu0
    %v5872 = vadd.f32 %v5703, %v5871
    %v5873 = vpop.f32.mrf.mxu0
    %v5874 = vadd.f32 %v5705, %v5873
    %5875 = vmatmul.bf16.gmra.mxu0 %v3619
    %v5876 = vpop.f32.mrf.mxu0
    %v5877 = vadd.f32 %v5708, %v5876
    %v5878 = vpop.f32.mrf.mxu0
    %v5879 = vadd.f32 %v5710, %v5878
    %5880 = vmatmul.bf16.gmra.mxu0 %v3628
    %v5881 = vpop.f32.mrf.mxu0
    %v5882 = vadd.f32 %v5713, %v5881
    %v5883 = vpop.f32.mrf.mxu0
    %v5884 = vadd.f32 %v5715, %v5883
    %5885 = vmatmul.bf16.gmra.mxu0 %v3637
    %v5886 = vpop.f32.mrf.mxu0
    %v5887 = vadd.f32 %v5718, %v5886
    %v5888 = vpop.f32.mrf.mxu0
    %v5889 = vadd.f32 %v5720, %v5888
    %5890 = vmatmul.bf16.gmra.mxu0 %v3646
    %v5891 = vpop.f32.mrf.mxu0
    %v5892 = vadd.f32 %v5723, %v5891
    %v5893 = vpop.f32.mrf.mxu0
    %v5894 = vadd.f32 %v5725, %v5893
    %5895 = vmatmul.bf16.gmra.mxu0 %v3655
    %v5896 = vpop.f32.mrf.mxu0
    %v5897 = vadd.f32 %v5728, %v5896
    %v5898 = vpop.f32.mrf.mxu0
    %v5899 = vadd.f32 %v5730, %v5898
    %5900 = vmatmul.bf16.gmra.mxu0 %v3664
    %v5901 = vpop.f32.mrf.mxu0
    %v5902 = vadd.f32 %v5733, %v5901
    %v5903 = vpop.f32.mrf.mxu0
    %v5904 = vadd.f32 %v5735, %v5903
    %5905 = vdwg.mxu0
    %5906 = vst [vmem:[#allocation9] sm:$0xff] %v5747
    %5907 = vst [vmem:[#allocation9 + $0x8] sm:$0xff] %v5749
    %5908 = vst [vmem:[#allocation9 + $0x10] sm:$0xff] %v5752
    %5909 = vst [vmem:[#allocation9 + $0x18] sm:$0xff] %v5754
    %5910 = vst [vmem:[#allocation9 + $0x20] sm:$0xff] %v5757
    %5911 = vst [vmem:[#allocation9 + $0x28] sm:$0xff] %v5759
    %5912 = vst [vmem:[#allocation9 + $0x30] sm:$0xff] %v5762
    %5913 = vst [vmem:[#allocation9 + $0x38] sm:$0xff] %v5764
    %5914 = vst [vmem:[#allocation9 + $0x40] sm:$0xff] %v5767
    %5915 = vst [vmem:[#allocation9 + $0x48] sm:$0xff] %v5769
    %5916 = vst [vmem:[#allocation9 + $0x50] sm:$0xff] %v5772
    %5917 = vst [vmem:[#allocation9 + $0x58] sm:$0xff] %v5774
    %5918 = vst [vmem:[#allocation9 + $0x60] sm:$0xff] %v5777
    %5919 = vst [vmem:[#allocation9 + $0x68] sm:$0xff] %v5779
    %5920 = vst [vmem:[#allocation9 + $0x70] sm:$0xff] %v5782
    %5921 = vst [vmem:[#allocation9 + $0x78] sm:$0xff] %v5784
    %5922 = vst [vmem:[#allocation9 + $0x80] sm:$0xff] %v5787
    %5923 = vst [vmem:[#allocation9 + $0x88] sm:$0xff] %v5789
    %5924 = vst [vmem:[#allocation9 + $0x90] sm:$0xff] %v5792
    %5925 = vst [vmem:[#allocation9 + $0x98] sm:$0xff] %v5794
    %5926 = vst [vmem:[#allocation9 + $0xa0] sm:$0xff] %v5797
    %5927 = vst [vmem:[#allocation9 + $0xa8] sm:$0xff] %v5799
    %5928 = vst [vmem:[#allocation9 + $0xb0] sm:$0xff] %v5802
    %5929 = vst [vmem:[#allocation9 + $0xb8] sm:$0xff] %v5804
    %5930 = vst [vmem:[#allocation9 + $0xc0] sm:$0xff] %v5807
    %5931 = vst [vmem:[#allocation9 + $0xc8] sm:$0xff] %v5809
    %5932 = vst [vmem:[#allocation9 + $0xd0] sm:$0xff] %v5812
    %5933 = vst [vmem:[#allocation9 + $0xd8] sm:$0xff] %v5814
    %5934 = vst [vmem:[#allocation9 + $0xe0] sm:$0xff] %v5817
    %5935 = vst [vmem:[#allocation9 + $0xe8] sm:$0xff] %v5819
    %5936 = vst [vmem:[#allocation9 + $0xf0] sm:$0xff] %v5822
    %5937 = vst [vmem:[#allocation9 + $0xf8] sm:$0xff] %v5824
    %5938 = vst [vmem:[#allocation9 + $0x100] sm:$0xff] %v5827
    %5939 = vst [vmem:[#allocation9 + $0x108] sm:$0xff] %v5829
    %5940 = vst [vmem:[#allocation9 + $0x110] sm:$0xff] %v5832
    %5941 = vst [vmem:[#allocation9 + $0x118] sm:$0xff] %v5834
    %5942 = vst [vmem:[#allocation9 + $0x120] sm:$0xff] %v5837
    %5943 = vst [vmem:[#allocation9 + $0x128] sm:$0xff] %v5839
    %5944 = vst [vmem:[#allocation9 + $0x130] sm:$0xff] %v5842
    %5945 = vst [vmem:[#allocation9 + $0x138] sm:$0xff] %v5844
    %5946 = vst [vmem:[#allocation9 + $0x140] sm:$0xff] %v5847
    %5947 = vst [vmem:[#allocation9 + $0x148] sm:$0xff] %v5849
    %5948 = vst [vmem:[#allocation9 + $0x150] sm:$0xff] %v5852
    %5949 = vst [vmem:[#allocation9 + $0x158] sm:$0xff] %v5854
    %5950 = vst [vmem:[#allocation9 + $0x160] sm:$0xff] %v5857
    %5951 = vst [vmem:[#allocation9 + $0x168] sm:$0xff] %v5859
    %5952 = vst [vmem:[#allocation9 + $0x170] sm:$0xff] %v5862
    %5953 = vst [vmem:[#allocation9 + $0x178] sm:$0xff] %v5864
    %5954 = vst [vmem:[#allocation9 + $0x180] sm:$0xff] %v5867
    %5955 = vst [vmem:[#allocation9 + $0x188] sm:$0xff] %v5869
    %5956 = vst [vmem:[#allocation9 + $0x190] sm:$0xff] %v5872
    %5957 = vst [vmem:[#allocation9 + $0x198] sm:$0xff] %v5874
    %5958 = vst [vmem:[#allocation9 + $0x1a0] sm:$0xff] %v5877
    %5959 = vst [vmem:[#allocation9 + $0x1a8] sm:$0xff] %v5879
    %5960 = vst [vmem:[#allocation9 + $0x1b0] sm:$0xff] %v5882
    %5961 = vst [vmem:[#allocation9 + $0x1b8] sm:$0xff] %v5884
    %5962 = vst [vmem:[#allocation9 + $0x1c0] sm:$0xff] %v5887
    %5963 = vst [vmem:[#allocation9 + $0x1c8] sm:$0xff] %v5889
    %5964 = vst [vmem:[#allocation9 + $0x1d0] sm:$0xff] %v5892
    %5965 = vst [vmem:[#allocation9 + $0x1d8] sm:$0xff] %v5894
    %5966 = vst [vmem:[#allocation9 + $0x1e0] sm:$0xff] %v5897
    %5967 = vst [vmem:[#allocation9 + $0x1e8] sm:$0xff] %v5899
    %5968 = vst [vmem:[#allocation9 + $0x1f0] sm:$0xff] %v5902
    %5969 = vst [vmem:[#allocation9 + $0x1f8] sm:$0xff] %v5904
    // Predicated region
    $region22: #{tpu_custom_call.1} parent=1 // pred_check
      _
    $region23: #{tpu_custom_call.1} parent=1 // pred_check_branch
      %5971 = sbr.rel (0) target = $region25
    $region24: #{tpu_custom_call.1} parent=1 // pred_region
      %5973 = vsyncadd [#allocation6], 0
      %s5974 = sshll.u32 [#allocation9], 4
      %s5975 = int_to_ptr.vmem [resolvable:$true] %s5974
      %s5976 = sshll.u32 %s3, 4
      %s5977 = int_to_ptr.hbm [resolvable:$true] %s5976
      %5982 = dma.vmem_to_hbm [thread:$0]  %s5975, 8192, %s5977, [#allocation6], 128, 128, 8
    $region25: #{tpu_custom_call.1} parent=1 // pred_fallthru
      _
    // Predicated region
    $region26: #{tpu_custom_call.1} parent=1 // pred_check
      _
    $region27: #{tpu_custom_call.1} parent=1 // pred_check_branch
      %5984 = sbr.rel (0) target = $region29
    $region28: #{tpu_custom_call.1} parent=1 // pred_region
      %5986 = dma.done [#allocation6], 8192
    $region29: #{tpu_custom_call.1} parent=1 // pred_fallthru
      _
    %5987 = vsyncpa [#allocation5], 1
    %5988 = vsyncpa [#allocation8], 1
    %5989 = vsyncpa [#allocation6], 1

</llo_original>
